<compile_context>
chip_gen: v7x
topology: tpu7x:2x2x1
jax: 0.10.0
libtpu: 0.0.40
codegen_flags: <defaults>
</compile_context>

<pallas_src>
import functools

import jax
import jax.numpy as jnp
from jax.experimental import pallas as pl
from jax.experimental.pallas import tpu as pltpu


def _bic_kernel(x_ref, wc_ref, bc_ref, pw_ref, wl_ref, bl_ref, o_ref, acc_ref,
                *, H, W, batch_block):
    """One batch block (whole image per step).

    x_ref  : (BB, Sp, C)      bf16  halo-padded, spatially-flattened NHWC image
    wc_ref : (9, C, F_pad)    f32   conv weights, one (C, F_pad) slab per tap
    bc_ref : (1, F_pad)       f32   conv bias (zero-padded)
    pw_ref : (1, Pa)          f32   pooling weights: 1/(H*W) at valid anchors
    wl_ref : (F_pad, NC_pad)  f32   classifier weight (transposed, padded)
    bl_ref : (1, NC_pad)      f32   classifier bias (padded)
    o_ref  : (BB, 1, NC_pad)  f32   logits (lane-dense)
    acc_ref: (Pa, F_pad)      f32   conv accumulator (reused per image)
    """
    Wp = W + 2                       # padded row width
    Pa = H * Wp                      # anchors (conv outputs) computed per image

    for b in range(batch_block):
        # 3x3 conv as 9 shifted-slice accumulating matmuls over the flattened
        # padded image.  Anchor a = h*Wp + w is the window top-left; tap
        # (dh, dw) reads flat index a + dh*Wp + dw (always in bounds thanks to
        # the extra bottom halo row added in the wrapper).
        for t in range(9):
            dh, dw = divmod(t, 3)
            off = dh * Wp + dw
            slab = x_ref[b, pl.ds(off, Pa), :].astype(jnp.float32)    # (Pa, C)
            contrib = jnp.dot(slab, wc_ref[t],
                              preferred_element_type=jnp.float32)     # (Pa, F_pad)
            if t == 0:
                acc_ref[...] = contrib
            else:
                acc_ref[...] += contrib

        y = jnp.maximum(acc_ref[...] + bc_ref[...], 0.0)              # (Pa, F_pad)

        # Masked global-average-pool folded into one small matmul: pw is
        # 1/(H*W) at valid anchors and 0 at the right-halo garbage anchors.
        feat = jnp.dot(pw_ref[...], y,
                       preferred_element_type=jnp.float32)            # (1, F_pad)
        logits = jnp.dot(feat, wl_ref[...],
                         preferred_element_type=jnp.float32) + bl_ref[...]
        o_ref[b] = logits                                              # (1, NC_pad)


def _vmem_budget_bytes():
    # Per-generation scoped-VMEM budget: ~3/4 of per-TensorCore capacity
    # (48 MiB on v7x's 64 MiB, 96 MiB on v5e/v6e's 128 MiB), capped at 100 MiB.
    cap = 64 * 1024 * 1024
    try:
        cap = int(pltpu.get_tpu_info().vmem_capacity_bytes)
    except Exception:
        pass
    return min((cap * 3) // 4, 100 * 1024 * 1024)


def _pick_batch_block(batch, per_image_bytes, fixed_bytes, budget_bytes):
    # Largest divisor of `batch` that (a) leaves >= 2 grid blocks so both v7x
    # TensorCores get work under the "parallel" batch axis, and (b) keeps the
    # double-buffered activation tile plus fixed scratch/weights inside the
    # per-generation VMEM budget.
    best = 1
    for bb in range(1, batch + 1):
        if batch % bb:
            continue
        if batch > 1 and batch // bb < 2:
            break
        if fixed_bytes + 2 * bb * per_image_bytes <= budget_bytes:
            best = bb
    return best


def bic_model_forward(x_nchw, params):
    """Equivalent of Model.forward(x): classifier(backbone(x)['features'])."""
    w_conv, b_conv, w_cls, b_cls = params
    B, C, H, W = x_nchw.shape
    F = w_conv.shape[-1]
    NC = w_cls.shape[0]

    Wp = W + 2                       # 1-pixel left/right halo
    Hp = H + 3                       # 1-row top halo + 2-row bottom halo so
                                     # every shifted tap slice stays in bounds
    Sp = Hp * Wp                     # flattened padded spatial extent
    Pa = H * Wp                      # anchors computed per image
    F_pad = max(128, ((F + 127) // 128) * 128)
    NC_pad = max(128, ((NC + 127) // 128) * 128)

    # --- wrapper-side layout prep: bf16 BEFORE any expansion, zero halo,
    # spatial flatten (free reshape).  No 9x im2col blow-up in HBM.
    x_nhwc = jnp.transpose(x_nchw, (0, 2, 3, 1)).astype(jnp.bfloat16)
    x_pad = jnp.pad(x_nhwc, ((0, 0), (1, 2), (1, 1), (0, 0)))
    x_flat = x_pad.reshape(B, Sp, C)

    wc = jnp.zeros((9, C, F_pad), jnp.float32)
    wc = wc.at[:, :, :F].set(w_conv.reshape(9, C, F).astype(jnp.float32))
    bc = jnp.zeros((1, F_pad), jnp.float32).at[:, :F].set(b_conv.astype(jnp.float32))
    pw = jnp.zeros((H, Wp), jnp.float32).at[:, :W].set(1.0 / float(H * W))
    pw = pw.reshape(1, Pa)
    wl = jnp.zeros((F_pad, NC_pad), jnp.float32)
    wl = wl.at[:F, :NC].set(w_cls.T.astype(jnp.float32))
    bl = jnp.zeros((1, NC_pad), jnp.float32).at[:, :NC].set(b_cls.astype(jnp.float32))

    # --- VMEM-budget-aware batch-block / grid choice -------------------------
    budget = _vmem_budget_bytes()
    sp_tile = ((Sp + 15) // 16) * 16 * 128 * 2            # lane-padded bf16 activation tile
    pa_tile = ((Pa + 7) // 8) * 8 * F_pad * 4             # f32 (Pa, F_pad) slab
    fixed = pa_tile * 3                                    # acc scratch + live temporaries
    fixed += 2 * 4 * (9 * C * F_pad + F_pad + Pa + F_pad * NC_pad + NC_pad)  # weights, 2-buffered
    BB = _pick_batch_block(B, sp_tile, fixed, budget)
    grid = (B // BB,)
    # TODO(synk): add a halo'd spatial (row-chunk) grid axis for images whose
    # (Pa, F_pad) working set no longer fits the per-generation VMEM budget.

    kernel = functools.partial(_bic_kernel, H=H, W=W, batch_block=BB)

    flops = B * (2 * Pa * C * F_pad * 9 + 2 * Pa * F_pad + 2 * F_pad * NC_pad)
    bytes_accessed = int(x_flat.size * 2 + wc.size * 4 + bc.size * 4 + pw.size * 4
                         + wl.size * 4 + bl.size * 4 + B * NC_pad * 4)

    logits_pad = pl.pallas_call(
        kernel,
        out_shape=jax.ShapeDtypeStruct((B, 1, NC_pad), jnp.float32),
        grid_spec=pltpu.PrefetchScalarGridSpec(
            num_scalar_prefetch=0,
            grid=grid,
            in_specs=[
                pl.BlockSpec((BB, Sp, C), lambda i: (i, 0, 0)),
                pl.BlockSpec((9, C, F_pad), lambda i: (0, 0, 0)),
                pl.BlockSpec((1, F_pad), lambda i: (0, 0)),
                pl.BlockSpec((1, Pa), lambda i: (0, 0)),
                pl.BlockSpec((F_pad, NC_pad), lambda i: (0, 0)),
                pl.BlockSpec((1, NC_pad), lambda i: (0, 0)),
            ],
            out_specs=pl.BlockSpec((BB, 1, NC_pad), lambda i: (i, 0, 0)),
            scratch_shapes=[pltpu.VMEM((Pa, F_pad), jnp.float32)],
        ),
        compiler_params=pltpu.CompilerParams(
            dimension_semantics=("parallel",),
            vmem_limit_bytes=budget,
        ),
        cost_estimate=pl.CostEstimate(
            flops=flops, transcendentals=0, bytes_accessed=bytes_accessed),
    )(x_flat, wc, bc, pw, wl, bl)

    return logits_pad.reshape(B, NC_pad)[:, :NC]


def init_params(key, in_ch, feat_dim, num_class):
    k1, k2, k3, k4 = jax.random.split(key, 4)
    fan_conv = 3 * 3 * in_ch
    w_conv = jax.random.normal(k1, (3, 3, in_ch, feat_dim), jnp.float32)
    w_conv = w_conv * (1.0 / jnp.sqrt(fan_conv))
    b_conv = jax.random.normal(k2, (feat_dim,), jnp.float32) * 0.01
    # nn.Linear(feat_dim, num_class): weight (num_class, feat_dim), bias (num_class,)
    w_cls = jax.random.normal(k3, (num_class, feat_dim), jnp.float32)
    w_cls = w_cls * (1.0 / jnp.sqrt(feat_dim))
    b_cls = jax.random.normal(k4, (num_class,), jnp.float32) * 0.01
    return w_conv, b_conv, w_cls, b_cls


def reference_forward(x_nchw, params):
    """Plain-JAX f32 reference for correctness checking."""
    w_conv, b_conv, w_cls, b_cls = params
    x_nhwc = jnp.transpose(x_nchw, (0, 2, 3, 1)).astype(jnp.float32)
    y = jax.lax.conv_general_dilated(
        x_nhwc, w_conv, window_strides=(1, 1), padding="SAME",
        dimension_numbers=("NHWC", "HWIO", "NHWC"))
    y = jax.nn.relu(y + b_conv)
    feat = jnp.mean(y, axis=(1, 2))                 # (B, feat_dim)
    return feat @ w_cls.T + b_cls


if __name__ == "__main__":
    B, C, H, W = 2, 4, 16, 16
    feat_dim, num_class = 32, 10

    key = jax.random.PRNGKey(0)
    kx, kp = jax.random.split(key)
    x = jax.random.normal(kx, (B, C, H, W), jnp.float32)
    params = init_params(kp, C, feat_dim, num_class)

    fwd = jax.jit(bic_model_forward)
    logits = jax.block_until_ready(fwd(x, params))
    ref = jax.block_until_ready(reference_forward(x, params))

    assert logits.shape == (B, num_class)
    max_err = float(jnp.max(jnp.abs(logits - ref)))
    # Only the activation is bf16-quantized; everything else accumulates in f32.
    assert jnp.allclose(logits, ref, atol=2e-2, rtol=2e-2), max_err
    print("KERNEL_OK")
</pallas_src>

<mosaic_0001>
module attributes {stable_mosaic.version = 11 : i64} {
  func.func @_bic_kernel(%arg0: i32, %arg1: memref<1x342x4xbf16, #tpu.memory_space<vmem>>, %arg2: memref<9x4x128xf32, #tpu.memory_space<vmem>>, %arg3: memref<1x128xf32, #tpu.memory_space<vmem>>, %arg4: memref<1x288xf32, #tpu.memory_space<vmem>>, %arg5: memref<128x128xf32, #tpu.memory_space<vmem>>, %arg6: memref<1x128xf32, #tpu.memory_space<vmem>>, %arg7: memref<1x1x128xf32, #tpu.memory_space<vmem>>, %arg8: memref<288x128xf32, #tpu.memory_space<vmem>>) attributes {dimension_semantics = [#tpu.dimension_semantics<parallel>], iteration_bounds = array<i64: 2>, scalar_prefetch = 0 : i64, scratch_operands = 1 : i64, tpu.core_type = #tpu.core_type<tc>, window_params = [{transform_indices = @transform_0, window_bounds = array<i64: 1, 342, 4>}, {pipeline_mode = #tpu.pipeline_mode<synchronous>, transform_indices = @transform_1, window_bounds = array<i64: 9, 4, 128>}, {pipeline_mode = #tpu.pipeline_mode<synchronous>, transform_indices = @transform_2, window_bounds = array<i64: 1, 128>}, {pipeline_mode = #tpu.pipeline_mode<synchronous>, transform_indices = @transform_3, window_bounds = array<i64: 1, 288>}, {pipeline_mode = #tpu.pipeline_mode<synchronous>, transform_indices = @transform_4, window_bounds = array<i64: 128, 128>}, {pipeline_mode = #tpu.pipeline_mode<synchronous>, transform_indices = @transform_5, window_bounds = array<i64: 1, 128>}, {transform_indices = @transform_6, window_bounds = array<i64: 1, 1, 128>}]} {
    %c0 = arith.constant 0 : index
    %c0_0 = arith.constant 0 : index
    %c0_1 = arith.constant 0 : index
    %0 = vector.load %arg1[%c0, %c0_0, %c0_1] : memref<1x342x4xbf16, #tpu.memory_space<vmem>>, vector<1x288x4xbf16>
    %1 = vector.shape_cast %0 : vector<1x288x4xbf16> to vector<288x4xbf16>
    %2 = arith.extf %1 : vector<288x4xbf16> to vector<288x4xf32>
    %c0_2 = arith.constant 0 : index
    %c0_3 = arith.constant 0 : index
    %c0_4 = arith.constant 0 : index
    %3 = vector.load %arg2[%c0_2, %c0_3, %c0_4] : memref<9x4x128xf32, #tpu.memory_space<vmem>>, vector<1x4x128xf32>
    %4 = vector.shape_cast %3 : vector<1x4x128xf32> to vector<4x128xf32>
    %cst = arith.constant dense<0.000000e+00> : vector<288x128xf32>
    %5 = tpu.matmul %2, %4, %cst {dimension_numbers = #tpu.dot_dimension_numbers<[1], [0], [0], [1], [0, 0, 1, 1], [], []>} : vector<288x4xf32>, vector<4x128xf32>, vector<288x128xf32> -> vector<288x128xf32>
    %c0_5 = arith.constant 0 : index
    %c0_6 = arith.constant 0 : index
    %6 = vector.load %arg8[%c0_5, %c0_6] : memref<288x128xf32, #tpu.memory_space<vmem>>, vector<288x128xf32>
    tpu.vector_store %arg8[%c0_5, %c0_6], %5 {strides = array<i32>} : memref<288x128xf32, #tpu.memory_space<vmem>>, vector<288x128xf32>,
    %c0_7 = arith.constant 0 : index
    %c1 = arith.constant 1 : index
    %c0_8 = arith.constant 0 : index
    %7 = vector.load %arg1[%c0_7, %c1, %c0_8] : memref<1x342x4xbf16, #tpu.memory_space<vmem>>, vector<1x288x4xbf16>
    %8 = vector.shape_cast %7 : vector<1x288x4xbf16> to vector<288x4xbf16>
    %9 = arith.extf %8 : vector<288x4xbf16> to vector<288x4xf32>
    %c1_9 = arith.constant 1 : index
    %c0_10 = arith.constant 0 : index
    %c0_11 = arith.constant 0 : index
    %10 = vector.load %arg2[%c1_9, %c0_10, %c0_11] : memref<9x4x128xf32, #tpu.memory_space<vmem>>, vector<1x4x128xf32>
    %11 = vector.shape_cast %10 : vector<1x4x128xf32> to vector<4x128xf32>
    %cst_12 = arith.constant dense<0.000000e+00> : vector<288x128xf32>
    %12 = tpu.matmul %9, %11, %cst_12 {dimension_numbers = #tpu.dot_dimension_numbers<[1], [0], [0], [1], [0, 0, 1, 1], [], []>} : vector<288x4xf32>, vector<4x128xf32>, vector<288x128xf32> -> vector<288x128xf32>
    %c0_13 = arith.constant 0 : index
    %c0_14 = arith.constant 0 : index
    %13 = vector.load %arg8[%c0_13, %c0_14] : memref<288x128xf32, #tpu.memory_space<vmem>>, vector<288x128xf32>
    %14 = arith.addf %13, %12 : vector<288x128xf32>
    %c0_15 = arith.constant 0 : index
    %c0_16 = arith.constant 0 : index
    %15 = vector.load %arg8[%c0_15, %c0_16] : memref<288x128xf32, #tpu.memory_space<vmem>>, vector<288x128xf32>
    tpu.vector_store %arg8[%c0_15, %c0_16], %14 {strides = array<i32>} : memref<288x128xf32, #tpu.memory_space<vmem>>, vector<288x128xf32>,
    %c0_17 = arith.constant 0 : index
    %c2 = arith.constant 2 : index
    %c0_18 = arith.constant 0 : index
    %16 = vector.load %arg1[%c0_17, %c2, %c0_18] : memref<1x342x4xbf16, #tpu.memory_space<vmem>>, vector<1x288x4xbf16>
    %17 = vector.shape_cast %16 : vector<1x288x4xbf16> to vector<288x4xbf16>
    %18 = arith.extf %17 : vector<288x4xbf16> to vector<288x4xf32>
    %c2_19 = arith.constant 2 : index
    %c0_20 = arith.constant 0 : index
    %c0_21 = arith.constant 0 : index
    %19 = vector.load %arg2[%c2_19, %c0_20, %c0_21] : memref<9x4x128xf32, #tpu.memory_space<vmem>>, vector<1x4x128xf32>
    %20 = vector.shape_cast %19 : vector<1x4x128xf32> to vector<4x128xf32>
    %cst_22 = arith.constant dense<0.000000e+00> : vector<288x128xf32>
    %21 = tpu.matmul %18, %20, %cst_22 {dimension_numbers = #tpu.dot_dimension_numbers<[1], [0], [0], [1], [0, 0, 1, 1], [], []>} : vector<288x4xf32>, vector<4x128xf32>, vector<288x128xf32> -> vector<288x128xf32>
    %c0_23 = arith.constant 0 : index
    %c0_24 = arith.constant 0 : index
    %22 = vector.load %arg8[%c0_23, %c0_24] : memref<288x128xf32, #tpu.memory_space<vmem>>, vector<288x128xf32>
    %23 = arith.addf %22, %21 : vector<288x128xf32>
    %c0_25 = arith.constant 0 : index
    %c0_26 = arith.constant 0 : index
    %24 = vector.load %arg8[%c0_25, %c0_26] : memref<288x128xf32, #tpu.memory_space<vmem>>, vector<288x128xf32>
    tpu.vector_store %arg8[%c0_25, %c0_26], %23 {strides = array<i32>} : memref<288x128xf32, #tpu.memory_space<vmem>>, vector<288x128xf32>,
    %c0_27 = arith.constant 0 : index
    %c18 = arith.constant 18 : index
    %c0_28 = arith.constant 0 : index
    %25 = vector.load %arg1[%c0_27, %c18, %c0_28] : memref<1x342x4xbf16, #tpu.memory_space<vmem>>, vector<1x288x4xbf16>
    %26 = vector.shape_cast %25 : vector<1x288x4xbf16> to vector<288x4xbf16>
    %27 = arith.extf %26 : vector<288x4xbf16> to vector<288x4xf32>
    %c3 = arith.constant 3 : index
    %c0_29 = arith.constant 0 : index
    %c0_30 = arith.constant 0 : index
    %28 = vector.load %arg2[%c3, %c0_29, %c0_30] : memref<9x4x128xf32, #tpu.memory_space<vmem>>, vector<1x4x128xf32>
    %29 = vector.shape_cast %28 : vector<1x4x128xf32> to vector<4x128xf32>
    %cst_31 = arith.constant dense<0.000000e+00> : vector<288x128xf32>
    %30 = tpu.matmul %27, %29, %cst_31 {dimension_numbers = #tpu.dot_dimension_numbers<[1], [0], [0], [1], [0, 0, 1, 1], [], []>} : vector<288x4xf32>, vector<4x128xf32>, vector<288x128xf32> -> vector<288x128xf32>
    %c0_32 = arith.constant 0 : index
    %c0_33 = arith.constant 0 : index
    %31 = vector.load %arg8[%c0_32, %c0_33] : memref<288x128xf32, #tpu.memory_space<vmem>>, vector<288x128xf32>
    %32 = arith.addf %31, %30 : vector<288x128xf32>
    %c0_34 = arith.constant 0 : index
    %c0_35 = arith.constant 0 : index
    %33 = vector.load %arg8[%c0_34, %c0_35] : memref<288x128xf32, #tpu.memory_space<vmem>>, vector<288x128xf32>
    tpu.vector_store %arg8[%c0_34, %c0_35], %32 {strides = array<i32>} : memref<288x128xf32, #tpu.memory_space<vmem>>, vector<288x128xf32>,
    %c0_36 = arith.constant 0 : index
    %c19 = arith.constant 19 : index
    %c0_37 = arith.constant 0 : index
    %34 = vector.load %arg1[%c0_36, %c19, %c0_37] : memref<1x342x4xbf16, #tpu.memory_space<vmem>>, vector<1x288x4xbf16>
    %35 = vector.shape_cast %34 : vector<1x288x4xbf16> to vector<288x4xbf16>
    %36 = arith.extf %35 : vector<288x4xbf16> to vector<288x4xf32>
    %c4 = arith.constant 4 : index
    %c0_38 = arith.constant 0 : index
    %c0_39 = arith.constant 0 : index
    %37 = vector.load %arg2[%c4, %c0_38, %c0_39] : memref<9x4x128xf32, #tpu.memory_space<vmem>>, vector<1x4x128xf32>
    %38 = vector.shape_cast %37 : vector<1x4x128xf32> to vector<4x128xf32>
    %cst_40 = arith.constant dense<0.000000e+00> : vector<288x128xf32>
    %39 = tpu.matmul %36, %38, %cst_40 {dimension_numbers = #tpu.dot_dimension_numbers<[1], [0], [0], [1], [0, 0, 1, 1], [], []>} : vector<288x4xf32>, vector<4x128xf32>, vector<288x128xf32> -> vector<288x128xf32>
    %c0_41 = arith.constant 0 : index
    %c0_42 = arith.constant 0 : index
    %40 = vector.load %arg8[%c0_41, %c0_42] : memref<288x128xf32, #tpu.memory_space<vmem>>, vector<288x128xf32>
    %41 = arith.addf %40, %39 : vector<288x128xf32>
    %c0_43 = arith.constant 0 : index
    %c0_44 = arith.constant 0 : index
    %42 = vector.load %arg8[%c0_43, %c0_44] : memref<288x128xf32, #tpu.memory_space<vmem>>, vector<288x128xf32>
    tpu.vector_store %arg8[%c0_43, %c0_44], %41 {strides = array<i32>} : memref<288x128xf32, #tpu.memory_space<vmem>>, vector<288x128xf32>,
    %c0_45 = arith.constant 0 : index
    %c20 = arith.constant 20 : index
    %c0_46 = arith.constant 0 : index
    %43 = vector.load %arg1[%c0_45, %c20, %c0_46] : memref<1x342x4xbf16, #tpu.memory_space<vmem>>, vector<1x288x4xbf16>
    %44 = vector.shape_cast %43 : vector<1x288x4xbf16> to vector<288x4xbf16>
    %45 = arith.extf %44 : vector<288x4xbf16> to vector<288x4xf32>
    %c5 = arith.constant 5 : index
    %c0_47 = arith.constant 0 : index
    %c0_48 = arith.constant 0 : index
    %46 = vector.load %arg2[%c5, %c0_47, %c0_48] : memref<9x4x128xf32, #tpu.memory_space<vmem>>, vector<1x4x128xf32>
    %47 = vector.shape_cast %46 : vector<1x4x128xf32> to vector<4x128xf32>
    %cst_49 = arith.constant dense<0.000000e+00> : vector<288x128xf32>
    %48 = tpu.matmul %45, %47, %cst_49 {dimension_numbers = #tpu.dot_dimension_numbers<[1], [0], [0], [1], [0, 0, 1, 1], [], []>} : vector<288x4xf32>, vector<4x128xf32>, vector<288x128xf32> -> vector<288x128xf32>
    %c0_50 = arith.constant 0 : index
    %c0_51 = arith.constant 0 : index
    %49 = vector.load %arg8[%c0_50, %c0_51] : memref<288x128xf32, #tpu.memory_space<vmem>>, vector<288x128xf32>
    %50 = arith.addf %49, %48 : vector<288x128xf32>
    %c0_52 = arith.constant 0 : index
    %c0_53 = arith.constant 0 : index
    %51 = vector.load %arg8[%c0_52, %c0_53] : memref<288x128xf32, #tpu.memory_space<vmem>>, vector<288x128xf32>
    tpu.vector_store %arg8[%c0_52, %c0_53], %50 {strides = array<i32>} : memref<288x128xf32, #tpu.memory_space<vmem>>, vector<288x128xf32>,
    %c0_54 = arith.constant 0 : index
    %c36 = arith.constant 36 : index
    %c0_55 = arith.constant 0 : index
    %52 = vector.load %arg1[%c0_54, %c36, %c0_55] : memref<1x342x4xbf16, #tpu.memory_space<vmem>>, vector<1x288x4xbf16>
    %53 = vector.shape_cast %52 : vector<1x288x4xbf16> to vector<288x4xbf16>
    %54 = arith.extf %53 : vector<288x4xbf16> to vector<288x4xf32>
    %c6 = arith.constant 6 : index
    %c0_56 = arith.constant 0 : index
    %c0_57 = arith.constant 0 : index
    %55 = vector.load %arg2[%c6, %c0_56, %c0_57] : memref<9x4x128xf32, #tpu.memory_space<vmem>>, vector<1x4x128xf32>
    %56 = vector.shape_cast %55 : vector<1x4x128xf32> to vector<4x128xf32>
    %cst_58 = arith.constant dense<0.000000e+00> : vector<288x128xf32>
    %57 = tpu.matmul %54, %56, %cst_58 {dimension_numbers = #tpu.dot_dimension_numbers<[1], [0], [0], [1], [0, 0, 1, 1], [], []>} : vector<288x4xf32>, vector<4x128xf32>, vector<288x128xf32> -> vector<288x128xf32>
    %c0_59 = arith.constant 0 : index
    %c0_60 = arith.constant 0 : index
    %58 = vector.load %arg8[%c0_59, %c0_60] : memref<288x128xf32, #tpu.memory_space<vmem>>, vector<288x128xf32>
    %59 = arith.addf %58, %57 : vector<288x128xf32>
    %c0_61 = arith.constant 0 : index
    %c0_62 = arith.constant 0 : index
    %60 = vector.load %arg8[%c0_61, %c0_62] : memref<288x128xf32, #tpu.memory_space<vmem>>, vector<288x128xf32>
    tpu.vector_store %arg8[%c0_61, %c0_62], %59 {strides = array<i32>} : memref<288x128xf32, #tpu.memory_space<vmem>>, vector<288x128xf32>,
    %c0_63 = arith.constant 0 : index
    %c37 = arith.constant 37 : index
    %c0_64 = arith.constant 0 : index
    %61 = vector.load %arg1[%c0_63, %c37, %c0_64] : memref<1x342x4xbf16, #tpu.memory_space<vmem>>, vector<1x288x4xbf16>
    %62 = vector.shape_cast %61 : vector<1x288x4xbf16> to vector<288x4xbf16>
    %63 = arith.extf %62 : vector<288x4xbf16> to vector<288x4xf32>
    %c7 = arith.constant 7 : index
    %c0_65 = arith.constant 0 : index
    %c0_66 = arith.constant 0 : index
    %64 = vector.load %arg2[%c7, %c0_65, %c0_66] : memref<9x4x128xf32, #tpu.memory_space<vmem>>, vector<1x4x128xf32>
    %65 = vector.shape_cast %64 : vector<1x4x128xf32> to vector<4x128xf32>
    %cst_67 = arith.constant dense<0.000000e+00> : vector<288x128xf32>
    %66 = tpu.matmul %63, %65, %cst_67 {dimension_numbers = #tpu.dot_dimension_numbers<[1], [0], [0], [1], [0, 0, 1, 1], [], []>} : vector<288x4xf32>, vector<4x128xf32>, vector<288x128xf32> -> vector<288x128xf32>
    %c0_68 = arith.constant 0 : index
    %c0_69 = arith.constant 0 : index
    %67 = vector.load %arg8[%c0_68, %c0_69] : memref<288x128xf32, #tpu.memory_space<vmem>>, vector<288x128xf32>
    %68 = arith.addf %67, %66 : vector<288x128xf32>
    %c0_70 = arith.constant 0 : index
    %c0_71 = arith.constant 0 : index
    %69 = vector.load %arg8[%c0_70, %c0_71] : memref<288x128xf32, #tpu.memory_space<vmem>>, vector<288x128xf32>
    tpu.vector_store %arg8[%c0_70, %c0_71], %68 {strides = array<i32>} : memref<288x128xf32, #tpu.memory_space<vmem>>, vector<288x128xf32>,
    %c0_72 = arith.constant 0 : index
    %c38 = arith.constant 38 : index
    %c0_73 = arith.constant 0 : index
    %70 = vector.load %arg1[%c0_72, %c38, %c0_73] : memref<1x342x4xbf16, #tpu.memory_space<vmem>>, vector<1x288x4xbf16>
    %71 = vector.shape_cast %70 : vector<1x288x4xbf16> to vector<288x4xbf16>
    %72 = arith.extf %71 : vector<288x4xbf16> to vector<288x4xf32>
    %c8 = arith.constant 8 : index
    %c0_74 = arith.constant 0 : index
    %c0_75 = arith.constant 0 : index
    %73 = vector.load %arg2[%c8, %c0_74, %c0_75] : memref<9x4x128xf32, #tpu.memory_space<vmem>>, vector<1x4x128xf32>
    %74 = vector.shape_cast %73 : vector<1x4x128xf32> to vector<4x128xf32>
    %cst_76 = arith.constant dense<0.000000e+00> : vector<288x128xf32>
    %75 = tpu.matmul %72, %74, %cst_76 {dimension_numbers = #tpu.dot_dimension_numbers<[1], [0], [0], [1], [0, 0, 1, 1], [], []>} : vector<288x4xf32>, vector<4x128xf32>, vector<288x128xf32> -> vector<288x128xf32>
    %c0_77 = arith.constant 0 : index
    %c0_78 = arith.constant 0 : index
    %76 = vector.load %arg8[%c0_77, %c0_78] : memref<288x128xf32, #tpu.memory_space<vmem>>, vector<288x128xf32>
    %77 = arith.addf %76, %75 : vector<288x128xf32>
    %c0_79 = arith.constant 0 : index
    %c0_80 = arith.constant 0 : index
    %78 = vector.load %arg8[%c0_79, %c0_80] : memref<288x128xf32, #tpu.memory_space<vmem>>, vector<288x128xf32>
    tpu.vector_store %arg8[%c0_79, %c0_80], %77 {strides = array<i32>} : memref<288x128xf32, #tpu.memory_space<vmem>>, vector<288x128xf32>,
    %c0_81 = arith.constant 0 : index
    %c0_82 = arith.constant 0 : index
    %79 = vector.load %arg8[%c0_81, %c0_82] : memref<288x128xf32, #tpu.memory_space<vmem>>, vector<288x128xf32>
    %c0_83 = arith.constant 0 : index
    %c0_84 = arith.constant 0 : index
    %80 = vector.load %arg3[%c0_83, %c0_84] : memref<1x128xf32, #tpu.memory_space<vmem>>, vector<1x128xf32>
    %81 = vector.broadcast %80 : vector<1x128xf32> to vector<288x128xf32>
    %82 = arith.addf %79, %81 : vector<288x128xf32>
    %cst_85 = arith.constant 0.000000e+00 : f32
    %83 = vector.broadcast %cst_85 : f32 to vector<288x128xf32>
    %84 = arith.maximumf %82, %83 : vector<288x128xf32>
    %c0_86 = arith.constant 0 : index
    %c0_87 = arith.constant 0 : index
    %85 = vector.load %arg4[%c0_86, %c0_87] : memref<1x288xf32, #tpu.memory_space<vmem>>, vector<1x288xf32>
    %cst_88 = arith.constant dense<0.000000e+00> : vector<1x128xf32>
    %86 = tpu.matmul %85, %84, %cst_88 {dimension_numbers = #tpu.dot_dimension_numbers<[1], [0], [0], [1], [0, 0, 1, 1], [], []>} : vector<1x288xf32>, vector<288x128xf32>, vector<1x128xf32> -> vector<1x128xf32>
    %c0_89 = arith.constant 0 : index
    %c0_90 = arith.constant 0 : index
    %87 = vector.load %arg5[%c0_89, %c0_90] : memref<128x128xf32, #tpu.memory_space<vmem>>, vector<128x128xf32>
    %cst_91 = arith.constant dense<0.000000e+00> : vector<1x128xf32>
    %88 = tpu.matmul %86, %87, %cst_91 {dimension_numbers = #tpu.dot_dimension_numbers<[1], [0], [0], [1], [0, 0, 1, 1], [], []>} : vector<1x128xf32>, vector<128x128xf32>, vector<1x128xf32> -> vector<1x128xf32>
    %c0_92 = arith.constant 0 : index
    %c0_93 = arith.constant 0 : index
    %89 = vector.load %arg6[%c0_92, %c0_93] : memref<1x128xf32, #tpu.memory_space<vmem>>, vector<1x128xf32>
    %90 = arith.addf %88, %89 : vector<1x128xf32>
    %c0_94 = arith.constant 0 : index
    %c0_95 = arith.constant 0 : index
    %c0_96 = arith.constant 0 : index
    %91 = vector.load %arg7[%c0_94, %c0_95, %c0_96] : memref<1x1x128xf32, #tpu.memory_space<vmem>>, vector<1x1x128xf32>
    %92 = vector.shape_cast %91 : vector<1x1x128xf32> to vector<1x128xf32>
    %93 = vector.shape_cast %90 : vector<1x128xf32> to vector<1x1x128xf32>
    tpu.vector_store %arg7[%c0_94, %c0_95, %c0_96], %93 {strides = array<i32>} : memref<1x1x128xf32, #tpu.memory_space<vmem>>, vector<1x1x128xf32>,
    return
  }
  func.func @transform_0(%arg0: i32) -> (i32, i32, i32) {
    %c0_i32 = arith.constant 0 : i32
    %c0_i32_0 = arith.constant 0 : i32
    %c0_i32_1 = arith.constant 0 : i32
    return %arg0, %c0_i32, %c0_i32_0 : i32, i32, i32
  }
  func.func @transform_1(%arg0: i32) -> (i32, i32, i32) {
    %c0_i32 = arith.constant 0 : i32
    %c0_i32_0 = arith.constant 0 : i32
    %c0_i32_1 = arith.constant 0 : i32
    %c0_i32_2 = arith.constant 0 : i32
    return %c0_i32, %c0_i32_0, %c0_i32_1 : i32, i32, i32
  }
  func.func @transform_2(%arg0: i32) -> (i32, i32) {
    %c0_i32 = arith.constant 0 : i32
    %c0_i32_0 = arith.constant 0 : i32
    %c0_i32_1 = arith.constant 0 : i32
    return %c0_i32, %c0_i32_0 : i32, i32
  }
  func.func @transform_3(%arg0: i32) -> (i32, i32) {
    %c0_i32 = arith.constant 0 : i32
    %c0_i32_0 = arith.constant 0 : i32
    %c0_i32_1 = arith.constant 0 : i32
    return %c0_i32, %c0_i32_0 : i32, i32
  }
  func.func @transform_4(%arg0: i32) -> (i32, i32) {
    %c0_i32 = arith.constant 0 : i32
    %c0_i32_0 = arith.constant 0 : i32
    %c0_i32_1 = arith.constant 0 : i32
    return %c0_i32, %c0_i32_0 : i32, i32
  }
  func.func @transform_5(%arg0: i32) -> (i32, i32) {
    %c0_i32 = arith.constant 0 : i32
    %c0_i32_0 = arith.constant 0 : i32
    %c0_i32_1 = arith.constant 0 : i32
    return %c0_i32, %c0_i32_0 : i32, i32
  }
  func.func @transform_6(%arg0: i32) -> (i32, i32, i32) {
    %c0_i32 = arith.constant 0 : i32
    %c0_i32_0 = arith.constant 0 : i32
    %c0_i32_1 = arith.constant 0 : i32
    return %arg0, %c0_i32, %c0_i32_0 : i32, i32, i32
  }
}

</mosaic_0001>

<llo_original>
// kernel: bic_model_forward.1
$region0: #{bic_model_forward.1}
  #allocation0 [shape = 'u32[]', space=smem, size = 0x4, offset = 0x4, fixed_abs, tag = 'smem constant byte address 0x4 - core index']
  #allocation1 [shape = 'u32[144,128]{1,0:T(1,128)}', space=vmem, size = 0x12000, scoped, tag = 'internal scratch']
  #allocation2 [shape = 'f32[288,128]{1,0:T(8,128)}', space=vmem, size = 0x24000, scoped, tag = 'scratch operand']
  %s0 = inlined_call_operand.vmem [shape: bf16[2,342,4], index: 0, kind: input, shape index: {}]
  %s1 = inlined_call_operand.vmem [shape: f32[9,4,128], index: 1, kind: input, shape index: {}]
  %s2 = inlined_call_operand.vmem [shape: f32[1,128], index: 2, kind: input, shape index: {}]
  %s3 = inlined_call_operand.vmem [shape: f32[1,288], index: 3, kind: input, shape index: {}]
  %s4 = inlined_call_operand.vmem [shape: f32[128,128], index: 4, kind: input, shape index: {}]
  %s5 = inlined_call_operand.vmem [shape: f32[1,128], index: 5, kind: input, shape index: {}]
  %s6 = inlined_call_operand.hbm [shape: f32[2,1,128], index: 6, kind: output, shape index: {}]
  %s7 = sld [smem:[#allocation0]]
  $region57: #{bic_model_forward.1} parent=0
    _
  %s9 = ssub.s32 1, %s7
  %s10 = scalar_select 0, %s9, %s7
  $region1: #{bic_model_forward.1} parent=0
    #allocation3 [shape = 'u8[1024]{0}', space=vmem, size = 0x400, scoped, tag = 'output window, operand 0']
    #allocation4 [shape = 's32[2]{0}', space=sflag, size = 0x8, scoped, tag = 'scoped memory for bic_model_forward.1']
    %11 = vsyncpa [#allocation4], 0
    %s12 = scalar_lea.sflag [#allocation4], 1
    %13 = vsyncpa %s12, 0
    loop: start=0, step=1, limit=4
    $region2: #{bic_model_forward.1} parent=1 // loop_pre_header
      _
    $region3: #{bic_model_forward.1} parent=1 // loop_header
      %s15 = sphi 0, %s19
      %p16 = scmp.ge.s32.totalorder %s15, 4
      %s25 = sphi 0, %s27
      %s28 = sphi 0, %s25
      %s29 = sphi 0, %s28
      %s45 = sphi 0, %s29
      %s49 = sphi 0, %s49
      %s51 = sphi 0, %s49
      %s52 = sphi 0, %s51
      %s66 = sphi 0, %s52
      %s70 = sphi 0, %s70
      %s72 = sphi 0, %s70
      %s73 = sphi 0, %s72
      %s87 = sphi 0, %s73
      %s91 = sphi 0, %s91
      %s93 = sphi 0, %s91
      %s94 = sphi 0, %s93
      %s108 = sphi 0, %s94
      %s112 = sphi 0, %s112
      %s114 = sphi 0, %s112
      %s115 = sphi 0, %s114
      %s129 = sphi 0, %s115
      %s133 = sphi 0, %s133
      %s135 = sphi 0, %s133
      %s136 = sphi 0, %s135
      %s150 = sphi 0, %s136
      %s156 = sphi 0, %s158
      %s159 = sphi 0, %s156
      %s160 = sphi 0, %s159
      %s176 = sphi 0, %s160
    $region4: #{bic_model_forward.1} parent=1 // loop_header_branch
      %18 = sbr.rel (%p16) target = $region8
    $region5: #{bic_model_forward.1} parent=1 // loop_body
      %s20 = ssub.s32 %s15, 1
      %s21 = ssub.s32 %s15, 2
      %s22 = sadd.s32 %s15, 1
      %s23 = ssub.s32 %s15, %s22
      %p24 = scmp.eq.s32.totalorder %s23, 0
      %s26 = sadd.s32 %s25, 1
      %s27 = scalar_select %p24, %s25, %s26
      %p30 = pneg %p24
      %p31 = scmp.eq.s32.totalorder %s15, 1
      %p32 = por %p30, %p31
      %p33 = scmp.ne.s32.totalorder %s25, %s28
      %p34 = scmp.eq.s32.totalorder %s15, 0
      %p35 = por %p33, %p34
      %p36 = scmp.ne.s32.totalorder %s25, %s28
      %p37 = scmp.eq.s32.totalorder %s20, 1
      %p38 = por %p36, %p37
      %p39 = scmp.ne.s32.totalorder %s28, %s29
      %p40 = scmp.eq.s32.totalorder %s20, 0
      %p41 = por %p39, %p40
      %p42 = scmp.ne.s32.totalorder %s28, %s29
      %p43 = scmp.eq.s32.totalorder %s21, 1
      %p44 = por %p42, %p43
      %p46 = scmp.ne.s32.totalorder %s29, %s45
      %p47 = scmp.eq.s32.totalorder %s21, 0
      %p48 = por %p46, %p47
      %s50 = sadd.s32 %s49, 1
      %p53 = scmp.eq.s32.totalorder %s15, 1
      %p54 = scmp.ne.s32.totalorder %s49, %s51
      %p55 = scmp.eq.s32.totalorder %s15, 0
      %p56 = por %p54, %p55
      %p57 = scmp.ne.s32.totalorder %s49, %s51
      %p58 = scmp.eq.s32.totalorder %s20, 1
      %p59 = por %p57, %p58
      %p60 = scmp.ne.s32.totalorder %s51, %s52
      %p61 = scmp.eq.s32.totalorder %s20, 0
      %p62 = por %p60, %p61
      %p63 = scmp.ne.s32.totalorder %s51, %s52
      %p64 = scmp.eq.s32.totalorder %s21, 1
      %p65 = por %p63, %p64
      %p67 = scmp.ne.s32.totalorder %s52, %s66
      %p68 = scmp.eq.s32.totalorder %s21, 0
      %p69 = por %p67, %p68
      %s71 = sadd.s32 %s70, 1
      %p74 = scmp.eq.s32.totalorder %s15, 1
      %p75 = scmp.ne.s32.totalorder %s70, %s72
      %p76 = scmp.eq.s32.totalorder %s15, 0
      %p77 = por %p75, %p76
      %p78 = scmp.ne.s32.totalorder %s70, %s72
      %p79 = scmp.eq.s32.totalorder %s20, 1
      %p80 = por %p78, %p79
      %p81 = scmp.ne.s32.totalorder %s72, %s73
      %p82 = scmp.eq.s32.totalorder %s20, 0
      %p83 = por %p81, %p82
      %p84 = scmp.ne.s32.totalorder %s72, %s73
      %p85 = scmp.eq.s32.totalorder %s21, 1
      %p86 = por %p84, %p85
      %p88 = scmp.ne.s32.totalorder %s73, %s87
      %p89 = scmp.eq.s32.totalorder %s21, 0
      %p90 = por %p88, %p89
      %s92 = sadd.s32 %s91, 1
      %p95 = scmp.eq.s32.totalorder %s15, 1
      %p96 = scmp.ne.s32.totalorder %s91, %s93
      %p97 = scmp.eq.s32.totalorder %s15, 0
      %p98 = por %p96, %p97
      %p99 = scmp.ne.s32.totalorder %s91, %s93
      %p100 = scmp.eq.s32.totalorder %s20, 1
      %p101 = por %p99, %p100
      %p102 = scmp.ne.s32.totalorder %s93, %s94
      %p103 = scmp.eq.s32.totalorder %s20, 0
      %p104 = por %p102, %p103
      %p105 = scmp.ne.s32.totalorder %s93, %s94
      %p106 = scmp.eq.s32.totalorder %s21, 1
      %p107 = por %p105, %p106
      %p109 = scmp.ne.s32.totalorder %s94, %s108
      %p110 = scmp.eq.s32.totalorder %s21, 0
      %p111 = por %p109, %p110
      %s113 = sadd.s32 %s112, 1
      %p116 = scmp.eq.s32.totalorder %s15, 1
      %p117 = scmp.ne.s32.totalorder %s112, %s114
      %p118 = scmp.eq.s32.totalorder %s15, 0
      %p119 = por %p117, %p118
      %p120 = scmp.ne.s32.totalorder %s112, %s114
      %p121 = scmp.eq.s32.totalorder %s20, 1
      %p122 = por %p120, %p121
      %p123 = scmp.ne.s32.totalorder %s114, %s115
      %p124 = scmp.eq.s32.totalorder %s20, 0
      %p125 = por %p123, %p124
      %p126 = scmp.ne.s32.totalorder %s114, %s115
      %p127 = scmp.eq.s32.totalorder %s21, 1
      %p128 = por %p126, %p127
      %p130 = scmp.ne.s32.totalorder %s115, %s129
      %p131 = scmp.eq.s32.totalorder %s21, 0
      %p132 = por %p130, %p131
      %s134 = sadd.s32 %s133, 1
      %p137 = scmp.eq.s32.totalorder %s15, 1
      %p138 = scmp.ne.s32.totalorder %s133, %s135
      %p139 = scmp.eq.s32.totalorder %s15, 0
      %p140 = por %p138, %p139
      %p141 = scmp.ne.s32.totalorder %s133, %s135
      %p142 = scmp.eq.s32.totalorder %s20, 1
      %p143 = por %p141, %p142
      %p144 = scmp.ne.s32.totalorder %s135, %s136
      %p145 = scmp.eq.s32.totalorder %s20, 0
      %p146 = por %p144, %p145
      %p147 = scmp.ne.s32.totalorder %s135, %s136
      %p148 = scmp.eq.s32.totalorder %s21, 1
      %p149 = por %p147, %p148
      %p151 = scmp.ne.s32.totalorder %s136, %s150
      %p152 = scmp.eq.s32.totalorder %s21, 0
      %p153 = por %p151, %p152
      %s154 = ssub.s32 %s15, %s22
      %p155 = scmp.eq.s32.totalorder %s154, 0
      %s157 = sadd.s32 %s156, 1
      %s158 = scalar_select %p155, %s156, %s157
      %p161 = pneg %p155
      %p162 = scmp.eq.s32.totalorder %s15, 1
      %p163 = por %p161, %p162
      %p164 = scmp.ne.s32.totalorder %s156, %s159
      %p165 = scmp.eq.s32.totalorder %s15, 0
      %p166 = por %p164, %p165
      %p167 = scmp.ne.s32.totalorder %s156, %s159
      %p168 = scmp.eq.s32.totalorder %s20, 1
      %p169 = por %p167, %p168
      %p170 = scmp.ne.s32.totalorder %s159, %s160
      %p171 = scmp.eq.s32.totalorder %s20, 0
      %p172 = por %p170, %p171
      %p173 = scmp.ne.s32.totalorder %s159, %s160
      %p174 = scmp.eq.s32.totalorder %s21, 1
      %p175 = por %p173, %p174
      %p177 = scmp.ne.s32.totalorder %s160, %s176
      %p178 = scmp.eq.s32.totalorder %s21, 0
      %p179 = por %p177, %p178
      %p180 = scmp.le.s32.totalorder 1, %s15
      %p181 = scmp.lt.s32.totalorder %s15, 3
      %p182 = pnand %p180, %p181
      %p183 = pneg %p182
      // Predicated region
      $region9: #{bic_model_forward.1} parent=5 // pred_check
        _
      $region10: #{bic_model_forward.1} parent=5 // pred_check_branch
        %185 = sbr.rel (%p182) target = $region12
      $region11: #{bic_model_forward.1} parent=5 // pred_region
        %s186 = ssub.s32 %s15, 1
        // Predicated region
        $region13: #{bic_model_forward.1} parent=11 // pred_check
          %p187 = pneg %p62
        $region14: #{bic_model_forward.1} parent=11 // pred_check_branch
          %189 = sbr.rel (%p187) target = $region16
        $region15: #{bic_model_forward.1} parent=11 // pred_region
          _
        $region16: #{bic_model_forward.1} parent=11 // pred_fallthru
          _
        // Predicated region
        $region17: #{bic_model_forward.1} parent=11 // pred_check
          %p190 = pneg %p83
        $region18: #{bic_model_forward.1} parent=11 // pred_check_branch
          %192 = sbr.rel (%p190) target = $region20
        $region19: #{bic_model_forward.1} parent=11 // pred_region
          _
        $region20: #{bic_model_forward.1} parent=11 // pred_fallthru
          _
        // Predicated region
        $region21: #{bic_model_forward.1} parent=11 // pred_check
          %p193 = pneg %p104
        $region22: #{bic_model_forward.1} parent=11 // pred_check_branch
          %195 = sbr.rel (%p193) target = $region24
        $region23: #{bic_model_forward.1} parent=11 // pred_region
          _
        $region24: #{bic_model_forward.1} parent=11 // pred_fallthru
          _
        // Predicated region
        $region25: #{bic_model_forward.1} parent=11 // pred_check
          %p196 = pneg %p125
        $region26: #{bic_model_forward.1} parent=11 // pred_check_branch
          %198 = sbr.rel (%p196) target = $region28
        $region27: #{bic_model_forward.1} parent=11 // pred_region
          _
        $region28: #{bic_model_forward.1} parent=11 // pred_fallthru
          _
        // Predicated region
        $region29: #{bic_model_forward.1} parent=11 // pred_check
          %p199 = pneg %p146
        $region30: #{bic_model_forward.1} parent=11 // pred_check_branch
          %201 = sbr.rel (%p199) target = $region32
        $region31: #{bic_model_forward.1} parent=11 // pred_region
          _
        $region32: #{bic_model_forward.1} parent=11 // pred_fallthru
          _
      $region12: #{bic_model_forward.1} parent=5 // pred_fallthru
        _
      %p202 = scmp.lt.s32.totalorder %s15, 2
      // Predicated region
      $region33: #{bic_model_forward.1} parent=5 // pred_check
        %p203 = pneg %p202
      $region34: #{bic_model_forward.1} parent=5 // pred_check_branch
        %205 = sbr.rel (%p203) target = $region36
      $region35: #{bic_model_forward.1} parent=5 // pred_region
        // Predicated region
        $region37: #{bic_model_forward.1} parent=35 // pred_check
          %p206 = pneg %p35
        $region38: #{bic_model_forward.1} parent=35 // pred_check_branch
          %208 = sbr.rel (%p206) target = $region40
        $region39: #{bic_model_forward.1} parent=35 // pred_region
          %p209 = scmp.lt.s32.totalorder %s15, 1
          %s210 = scalar_select %p209, %s15, 1
          %s211 = smul.addr %s210, 43
          %s212 = smul.addr %s211, 4
          %s213 = scalar_lea.vmem %s0, %s212
        $region40: #{bic_model_forward.1} parent=35 // pred_fallthru
          _
      $region36: #{bic_model_forward.1} parent=5 // pred_fallthru
        _
      %p214 = scmp.le.s32.totalorder 1, %s15
      %p215 = scmp.lt.s32.totalorder %s15, 3
      %p216 = pnand %p214, %p215
      %p217 = pneg %p216
      // Predicated region
      $region41: #{bic_model_forward.1} parent=5 // pred_check
        _
      $region42: #{bic_model_forward.1} parent=5 // pred_check_branch
        %219 = sbr.rel (%p216) target = $region44
      $region43: #{bic_model_forward.1} parent=5 // pred_region
        %s220 = ssub.s32 %s15, 1
        %p221 = scmp.lt.s32.totalorder %s20, 1
        %s222 = scalar_select %p221, %s20, 1
        %s223 = smul.addr %s222, 43
        %s224 = smul.addr %s223, 4
        %s225 = scalar_lea.vmem %s0, %s224
        %p226 = pneg %p41
        %p227 = pneg %p38
        %p228 = pneg %p62
        %p229 = pneg %p59
        %p230 = pneg %p83
        %p231 = pneg %p80
        %p232 = pneg %p104
        %p233 = pneg %p101
        %p234 = pneg %p125
        %p235 = pneg %p122
        %p236 = pneg %p146
        %p237 = pneg %p143
        %p238 = pneg %p172
        %p239 = pneg %p169
        %s240 = sand.u32 %s159, 1
        %s241 = scalar_lea.sflag [#allocation4], %s240
        %s242 = sand.u32 %s159, 1
        %s243 = scalar_lea.vmem [#allocation3], %s242
        %p244 = scmp.lt.s32.totalorder %s20, 1
        %s245 = scalar_select %p244, %s20, 1
        %s246 = smul.addr %s245, 43
        %s247 = smul.addr %s246, 4
        %s248 = scalar_lea.vmem %s0, %s247
        %v249 = vld [vmem:[%s248] sm:$0xf]
        %v250 = vld [vmem:[%s248 + $0x4] sm:$0xf]
        %v251 = vld [vmem:[%s248 + $0x8] sm:$0xf]
        %v252 = vld [vmem:[%s248 + $0xc] sm:$0xf]
        %v253 = vld [vmem:[%s248 + $0x10] sm:$0xf]
        %v254 = vld [vmem:[%s248 + $0x14] sm:$0xf]
        %v255 = vld [vmem:[%s248 + $0x18] sm:$0xf]
        %v256 = vld [vmem:[%s248 + $0x1c] sm:$0xf]
        %v257 = vld [vmem:[%s248 + $0x20] sm:$0xf]
        %v258 = vld [vmem:[%s248 + $0x24] sm:$0xf]
        %v259 = vld [vmem:[%s248 + $0x28] sm:$0xf]
        %v260 = vld [vmem:[%s248 + $0x2c] sm:$0xf]
        %v261 = vld [vmem:[%s248 + $0x30] sm:$0xf]
        %v262 = vld [vmem:[%s248 + $0x34] sm:$0xf]
        %v263 = vld [vmem:[%s248 + $0x38] sm:$0xf]
        %v264 = vld [vmem:[%s248 + $0x3c] sm:$0xf]
        %v265 = vld [vmem:[%s248 + $0x40] sm:$0xf]
        %v266 = vld [vmem:[%s248 + $0x44] sm:$0xf]
        %v267 = vld [vmem:[%s248 + $0x48] sm:$0xf]
        %v268 = vld [vmem:[%s248 + $0x4c] sm:$0xf]
        %v269 = vld [vmem:[%s248 + $0x50] sm:$0xf]
        %v270 = vld [vmem:[%s248 + $0x54] sm:$0xf]
        %v271 = vld [vmem:[%s248 + $0x58] sm:$0xf]
        %v272 = vld [vmem:[%s248 + $0x5c] sm:$0xf]
        %v273 = vld [vmem:[%s248 + $0x60] sm:$0xf]
        %v274 = vld [vmem:[%s248 + $0x64] sm:$0xf]
        %v275 = vld [vmem:[%s248 + $0x68] sm:$0xf]
        %v276 = vld [vmem:[%s248 + $0x6c] sm:$0xf]
        %v277 = vld [vmem:[%s248 + $0x70] sm:$0xf]
        %v278 = vld [vmem:[%s248 + $0x74] sm:$0xf]
        %v279 = vld [vmem:[%s248 + $0x78] sm:$0xf]
        %v280 = vld [vmem:[%s248 + $0x7c] sm:$0xf]
        %v281 = vld [vmem:[%s248 + $0x80] sm:$0xf]
        %v282 = vld [vmem:[%s248 + $0x84] sm:$0xf]
        %v283 = vld [vmem:[%s248 + $0x88] sm:$0xf]
        %v284 = vld [vmem:[%s248 + $0x8c] sm:$0xf]
        %v285 = vunpack.c.l.bf16 %v249
        %v286 = vunpack.c.l.bf16 %v250
        %v287 = vunpack.c.l.bf16 %v251
        %v288 = vunpack.c.l.bf16 %v252
        %v289 = vunpack.c.l.bf16 %v253
        %v290 = vunpack.c.l.bf16 %v254
        %v291 = vunpack.c.l.bf16 %v255
        %v292 = vunpack.c.l.bf16 %v256
        %v293 = vunpack.c.l.bf16 %v257
        %v294 = vunpack.c.l.bf16 %v258
        %v295 = vunpack.c.l.bf16 %v259
        %v296 = vunpack.c.l.bf16 %v260
        %v297 = vunpack.c.l.bf16 %v261
        %v298 = vunpack.c.l.bf16 %v262
        %v299 = vunpack.c.l.bf16 %v263
        %v300 = vunpack.c.l.bf16 %v264
        %v301 = vunpack.c.l.bf16 %v265
        %v302 = vunpack.c.l.bf16 %v266
        %v303 = vunpack.c.l.bf16 %v267
        %v304 = vunpack.c.l.bf16 %v268
        %v305 = vunpack.c.l.bf16 %v269
        %v306 = vunpack.c.l.bf16 %v270
        %v307 = vunpack.c.l.bf16 %v271
        %v308 = vunpack.c.l.bf16 %v272
        %v309 = vunpack.c.l.bf16 %v273
        %v310 = vunpack.c.l.bf16 %v274
        %v311 = vunpack.c.l.bf16 %v275
        %v312 = vunpack.c.l.bf16 %v276
        %v313 = vunpack.c.l.bf16 %v277
        %v314 = vunpack.c.l.bf16 %v278
        %v315 = vunpack.c.l.bf16 %v279
        %v316 = vunpack.c.l.bf16 %v280
        %v317 = vunpack.c.l.bf16 %v281
        %v318 = vunpack.c.l.bf16 %v282
        %v319 = vunpack.c.l.bf16 %v283
        %v320 = vunpack.c.l.bf16 %v284
        %v321 = vld [vmem:[%s1] sm:$0xf]
        %vm322 = vcmask 31744
        %v324 = vsel %vm322, %v285, 0
        %v327 = vsel %vm322, %v286, 0
        %v330 = vsel %vm322, %v287, 0
        %v333 = vsel %vm322, %v288, 0
        %v336 = vsel %vm322, %v289, 0
        %v339 = vsel %vm322, %v290, 0
        %v342 = vsel %vm322, %v291, 0
        %v345 = vsel %vm322, %v292, 0
        %v348 = vsel %vm322, %v293, 0
        %v351 = vsel %vm322, %v294, 0
        %v354 = vsel %vm322, %v295, 0
        %v357 = vsel %vm322, %v296, 0
        %v360 = vsel %vm322, %v297, 0
        %v363 = vsel %vm322, %v298, 0
        %v366 = vsel %vm322, %v299, 0
        %v369 = vsel %vm322, %v300, 0
        %v372 = vsel %vm322, %v301, 0
        %v375 = vsel %vm322, %v302, 0
        %v378 = vsel %vm322, %v303, 0
        %v381 = vsel %vm322, %v304, 0
        %v384 = vsel %vm322, %v305, 0
        %v387 = vsel %vm322, %v306, 0
        %v390 = vsel %vm322, %v307, 0
        %v393 = vsel %vm322, %v308, 0
        %v396 = vsel %vm322, %v309, 0
        %v399 = vsel %vm322, %v310, 0
        %v402 = vsel %vm322, %v311, 0
        %v405 = vsel %vm322, %v312, 0
        %v408 = vsel %vm322, %v313, 0
        %v411 = vsel %vm322, %v314, 0
        %v414 = vsel %vm322, %v315, 0
        %v417 = vsel %vm322, %v316, 0
        %v420 = vsel %vm322, %v317, 0
        %v423 = vsel %vm322, %v318, 0
        %v426 = vsel %vm322, %v319, 0
        %v429 = vsel %vm322, %v320, 0
        %vm431 = vcmask 1043456
        %v433 = vsel %vm431, %v321, 0
        %435 = vmatprep.subr.mxu0 0.0
        %436 = vmatpush1.msra.mxu0 %v433
        %437 = vmatprep.subr.mxu0 0.0
        %438 = vmatpush1.msra.mxu0 0.0
        %439 = vmatprep.subr.mxu0 0.0
        %440 = vmatpush1.msra.mxu0 0.0
        %441 = vmatprep.subr.mxu0 0.0
        %442 = vmatpush1.msra.mxu0 0.0
        %443 = vmatprep.subr.mxu0 0.0
        %444 = vmatpush1.msra.mxu0 0.0
        %445 = vmatprep.subr.mxu0 0.0
        %446 = vmatpush1.msra.mxu0 0.0
        %447 = vmatprep.subr.mxu0 0.0
        %448 = vmatpush1.msra.mxu0 0.0
        %449 = vmatprep.subr.mxu0 0.0
        %450 = vmatpush1.msra.mxu0 0.0
        %451 = vmatprep.subr.mxu0 0.0
        %452 = vmatpush1.msra.mxu0 0.0
        %453 = vmatprep.subr.mxu0 0.0
        %454 = vmatpush1.msra.mxu0 0.0
        %455 = vmatprep.subr.mxu0 0.0
        %456 = vmatpush1.msra.mxu0 0.0
        %457 = vmatprep.subr.mxu0 0.0
        %458 = vmatpush1.msra.mxu0 0.0
        %459 = vmatprep.subr.mxu0 0.0
        %460 = vmatpush1.msra.mxu0 0.0
        %461 = vmatprep.subr.mxu0 0.0
        %462 = vmatpush1.msra.mxu0 0.0
        %463 = vmatprep.subr.mxu0 0.0
        %464 = vmatpush1.msra.mxu0 0.0
        %465 = vmatprep.subr.mxu0 0.0
        %466 = vmatpush1.msra.mxu0 0.0
        %467 = vmatprep.subr.mxu0 0.0
        %468 = vmatpush1.msra.mxu0 0.0
        %469 = vmatprep.subr.mxu0 0.0
        %470 = vmatpush1.msra.mxu0 0.0
        %471 = vmatprep.subr.mxu0 0.0
        %472 = vmatpush1.msra.mxu0 0.0
        %473 = vmatprep.subr.mxu0 0.0
        %474 = vmatpush1.msra.mxu0 0.0
        %475 = vmatprep.subr.mxu0 0.0
        %476 = vmatpush1.msra.mxu0 0.0
        %477 = vmatprep.subr.mxu0 0.0
        %478 = vmatpush1.msra.mxu0 0.0
        %479 = vmatprep.subr.mxu0 0.0
        %480 = vmatpush1.msra.mxu0 0.0
        %481 = vmatprep.subr.mxu0 0.0
        %482 = vmatpush1.msra.mxu0 0.0
        %483 = vmatprep.subr.mxu0 0.0
        %484 = vmatpush1.msra.mxu0 0.0
        %485 = vmatprep.subr.mxu0 0.0
        %486 = vmatpush1.msra.mxu0 0.0
        %487 = vmatprep.subr.mxu0 0.0
        %488 = vmatpush1.msra.mxu0 0.0
        %489 = vmatprep.subr.mxu0 0.0
        %490 = vmatpush1.msra.mxu0 0.0
        %491 = vmatprep.subr.mxu0 0.0
        %492 = vmatpush1.msra.mxu0 0.0
        %493 = vmatprep.subr.mxu0 0.0
        %494 = vmatpush1.msra.mxu0 0.0
        %495 = vmatprep.subr.mxu0 0.0
        %496 = vmatpush1.msra.mxu0 0.0
        %497 = vmatprep.subr.mxu0 0.0
        %498 = vmatpush1.msra.mxu0 0.0
        %499 = vmatprep.mubr.f32.mxu0 0.0
        %500 = vmatmul.mubr.f32.gmra.mrb[0].mxu0 %v324
        %v501 = vpop.f32.mrb[0].mxu0
        %v502 = vadd.f32 0.0, %v501
        %v503 = vpop.f32.mrb[0].mxu0
        %504 = vmatprep.mubr.f32.mxu0 0.0
        %505 = vmatmul.mubr.f32.gmra.mrb[0].mxu0 %v327
        %v506 = vpop.f32.mrb[0].mxu0
        %v507 = vadd.f32 0.0, %v506
        %v508 = vpop.f32.mrb[0].mxu0
        %509 = vmatprep.mubr.f32.mxu0 0.0
        %510 = vmatmul.mubr.f32.gmra.mrb[0].mxu0 %v330
        %v511 = vpop.f32.mrb[0].mxu0
        %v512 = vadd.f32 0.0, %v511
        %v513 = vpop.f32.mrb[0].mxu0
        %514 = vmatprep.mubr.f32.mxu0 0.0
        %515 = vmatmul.mubr.f32.gmra.mrb[0].mxu0 %v333
        %v516 = vpop.f32.mrb[0].mxu0
        %v517 = vadd.f32 0.0, %v516
        %v518 = vpop.f32.mrb[0].mxu0
        %519 = vmatprep.mubr.f32.mxu0 0.0
        %520 = vmatmul.mubr.f32.gmra.mrb[0].mxu0 %v336
        %v521 = vpop.f32.mrb[0].mxu0
        %v522 = vadd.f32 0.0, %v521
        %v523 = vpop.f32.mrb[0].mxu0
        %524 = vmatprep.mubr.f32.mxu0 0.0
        %525 = vmatmul.mubr.f32.gmra.mrb[0].mxu0 %v339
        %v526 = vpop.f32.mrb[0].mxu0
        %v527 = vadd.f32 0.0, %v526
        %v528 = vpop.f32.mrb[0].mxu0
        %529 = vmatprep.mubr.f32.mxu0 0.0
        %530 = vmatmul.mubr.f32.gmra.mrb[0].mxu0 %v342
        %v531 = vpop.f32.mrb[0].mxu0
        %v532 = vadd.f32 0.0, %v531
        %v533 = vpop.f32.mrb[0].mxu0
        %534 = vmatprep.mubr.f32.mxu0 0.0
        %535 = vmatmul.mubr.f32.gmra.mrb[0].mxu0 %v345
        %v536 = vpop.f32.mrb[0].mxu0
        %v537 = vadd.f32 0.0, %v536
        %v538 = vpop.f32.mrb[0].mxu0
        %539 = vmatprep.mubr.f32.mxu0 0.0
        %540 = vmatmul.mubr.f32.gmra.mrb[0].mxu0 %v348
        %v541 = vpop.f32.mrb[0].mxu0
        %v542 = vadd.f32 0.0, %v541
        %v543 = vpop.f32.mrb[0].mxu0
        %544 = vmatprep.mubr.f32.mxu0 0.0
        %545 = vmatmul.mubr.f32.gmra.mrb[0].mxu0 %v351
        %v546 = vpop.f32.mrb[0].mxu0
        %v547 = vadd.f32 0.0, %v546
        %v548 = vpop.f32.mrb[0].mxu0
        %549 = vmatprep.mubr.f32.mxu0 0.0
        %550 = vmatmul.mubr.f32.gmra.mrb[0].mxu0 %v354
        %v551 = vpop.f32.mrb[0].mxu0
        %v552 = vadd.f32 0.0, %v551
        %v553 = vpop.f32.mrb[0].mxu0
        %554 = vmatprep.mubr.f32.mxu0 0.0
        %555 = vmatmul.mubr.f32.gmra.mrb[0].mxu0 %v357
        %v556 = vpop.f32.mrb[0].mxu0
        %v557 = vadd.f32 0.0, %v556
        %v558 = vpop.f32.mrb[0].mxu0
        %559 = vmatprep.mubr.f32.mxu0 0.0
        %560 = vmatmul.mubr.f32.gmra.mrb[0].mxu0 %v360
        %v561 = vpop.f32.mrb[0].mxu0
        %v562 = vadd.f32 0.0, %v561
        %v563 = vpop.f32.mrb[0].mxu0
        %564 = vmatprep.mubr.f32.mxu0 0.0
        %565 = vmatmul.mubr.f32.gmra.mrb[0].mxu0 %v363
        %v566 = vpop.f32.mrb[0].mxu0
        %v567 = vadd.f32 0.0, %v566
        %v568 = vpop.f32.mrb[0].mxu0
        %569 = vmatprep.mubr.f32.mxu0 0.0
        %570 = vmatmul.mubr.f32.gmra.mrb[0].mxu0 %v366
        %v571 = vpop.f32.mrb[0].mxu0
        %v572 = vadd.f32 0.0, %v571
        %v573 = vpop.f32.mrb[0].mxu0
        %574 = vmatprep.mubr.f32.mxu0 0.0
        %575 = vmatmul.mubr.f32.gmra.mrb[0].mxu0 %v369
        %v576 = vpop.f32.mrb[0].mxu0
        %v577 = vadd.f32 0.0, %v576
        %v578 = vpop.f32.mrb[0].mxu0
        %579 = vmatprep.mubr.f32.mxu0 0.0
        %580 = vmatmul.mubr.f32.gmra.mrb[0].mxu0 %v372
        %v581 = vpop.f32.mrb[0].mxu0
        %v582 = vadd.f32 0.0, %v581
        %v583 = vpop.f32.mrb[0].mxu0
        %584 = vmatprep.mubr.f32.mxu0 0.0
        %585 = vmatmul.mubr.f32.gmra.mrb[0].mxu0 %v375
        %v586 = vpop.f32.mrb[0].mxu0
        %v587 = vadd.f32 0.0, %v586
        %v588 = vpop.f32.mrb[0].mxu0
        %589 = vmatprep.mubr.f32.mxu0 0.0
        %590 = vmatmul.mubr.f32.gmra.mrb[0].mxu0 %v378
        %v591 = vpop.f32.mrb[0].mxu0
        %v592 = vadd.f32 0.0, %v591
        %v593 = vpop.f32.mrb[0].mxu0
        %594 = vmatprep.mubr.f32.mxu0 0.0
        %595 = vmatmul.mubr.f32.gmra.mrb[0].mxu0 %v381
        %v596 = vpop.f32.mrb[0].mxu0
        %v597 = vadd.f32 0.0, %v596
        %v598 = vpop.f32.mrb[0].mxu0
        %599 = vmatprep.mubr.f32.mxu0 0.0
        %600 = vmatmul.mubr.f32.gmra.mrb[0].mxu0 %v384
        %v601 = vpop.f32.mrb[0].mxu0
        %v602 = vadd.f32 0.0, %v601
        %v603 = vpop.f32.mrb[0].mxu0
        %604 = vmatprep.mubr.f32.mxu0 0.0
        %605 = vmatmul.mubr.f32.gmra.mrb[0].mxu0 %v387
        %v606 = vpop.f32.mrb[0].mxu0
        %v607 = vadd.f32 0.0, %v606
        %v608 = vpop.f32.mrb[0].mxu0
        %609 = vmatprep.mubr.f32.mxu0 0.0
        %610 = vmatmul.mubr.f32.gmra.mrb[0].mxu0 %v390
        %v611 = vpop.f32.mrb[0].mxu0
        %v612 = vadd.f32 0.0, %v611
        %v613 = vpop.f32.mrb[0].mxu0
        %614 = vmatprep.mubr.f32.mxu0 0.0
        %615 = vmatmul.mubr.f32.gmra.mrb[0].mxu0 %v393
        %v616 = vpop.f32.mrb[0].mxu0
        %v617 = vadd.f32 0.0, %v616
        %v618 = vpop.f32.mrb[0].mxu0
        %619 = vmatprep.mubr.f32.mxu0 0.0
        %620 = vmatmul.mubr.f32.gmra.mrb[0].mxu0 %v396
        %v621 = vpop.f32.mrb[0].mxu0
        %v622 = vadd.f32 0.0, %v621
        %v623 = vpop.f32.mrb[0].mxu0
        %624 = vmatprep.mubr.f32.mxu0 0.0
        %625 = vmatmul.mubr.f32.gmra.mrb[0].mxu0 %v399
        %v626 = vpop.f32.mrb[0].mxu0
        %v627 = vadd.f32 0.0, %v626
        %v628 = vpop.f32.mrb[0].mxu0
        %629 = vmatprep.mubr.f32.mxu0 0.0
        %630 = vmatmul.mubr.f32.gmra.mrb[0].mxu0 %v402
        %v631 = vpop.f32.mrb[0].mxu0
        %v632 = vadd.f32 0.0, %v631
        %v633 = vpop.f32.mrb[0].mxu0
        %634 = vmatprep.mubr.f32.mxu0 0.0
        %635 = vmatmul.mubr.f32.gmra.mrb[0].mxu0 %v405
        %v636 = vpop.f32.mrb[0].mxu0
        %v637 = vadd.f32 0.0, %v636
        %v638 = vpop.f32.mrb[0].mxu0
        %639 = vmatprep.mubr.f32.mxu0 0.0
        %640 = vmatmul.mubr.f32.gmra.mrb[0].mxu0 %v408
        %v641 = vpop.f32.mrb[0].mxu0
        %v642 = vadd.f32 0.0, %v641
        %v643 = vpop.f32.mrb[0].mxu0
        %644 = vmatprep.mubr.f32.mxu0 0.0
        %645 = vmatmul.mubr.f32.gmra.mrb[0].mxu0 %v411
        %v646 = vpop.f32.mrb[0].mxu0
        %v647 = vadd.f32 0.0, %v646
        %v648 = vpop.f32.mrb[0].mxu0
        %649 = vmatprep.mubr.f32.mxu0 0.0
        %650 = vmatmul.mubr.f32.gmra.mrb[0].mxu0 %v414
        %v651 = vpop.f32.mrb[0].mxu0
        %v652 = vadd.f32 0.0, %v651
        %v653 = vpop.f32.mrb[0].mxu0
        %654 = vmatprep.mubr.f32.mxu0 0.0
        %655 = vmatmul.mubr.f32.gmra.mrb[0].mxu0 %v417
        %v656 = vpop.f32.mrb[0].mxu0
        %v657 = vadd.f32 0.0, %v656
        %v658 = vpop.f32.mrb[0].mxu0
        %659 = vmatprep.mubr.f32.mxu0 0.0
        %660 = vmatmul.mubr.f32.gmra.mrb[0].mxu0 %v420
        %v661 = vpop.f32.mrb[0].mxu0
        %v662 = vadd.f32 0.0, %v661
        %v663 = vpop.f32.mrb[0].mxu0
        %664 = vmatprep.mubr.f32.mxu0 0.0
        %665 = vmatmul.mubr.f32.gmra.mrb[0].mxu0 %v423
        %v666 = vpop.f32.mrb[0].mxu0
        %v667 = vadd.f32 0.0, %v666
        %v668 = vpop.f32.mrb[0].mxu0
        %669 = vmatprep.mubr.f32.mxu0 0.0
        %670 = vmatmul.mubr.f32.gmra.mrb[0].mxu0 %v426
        %v671 = vpop.f32.mrb[0].mxu0
        %v672 = vadd.f32 0.0, %v671
        %v673 = vpop.f32.mrb[0].mxu0
        %674 = vmatprep.mubr.f32.mxu0 0.0
        %675 = vmatmul.mubr.f32.gmra.mrb[0].mxu0 %v429
        %v676 = vpop.f32.mrb[0].mxu0
        %v677 = vadd.f32 0.0, %v676
        %v678 = vpop.f32.mrb[0].mxu0
        %679 = vdwg.mxu0
        %680 = vst [vmem:[#allocation2] sm:$0xff] %v502
        %681 = vst [vmem:[#allocation2 + $0x8] sm:$0xff] %v507
        %682 = vst [vmem:[#allocation2 + $0x10] sm:$0xff] %v512
        %683 = vst [vmem:[#allocation2 + $0x18] sm:$0xff] %v517
        %684 = vst [vmem:[#allocation2 + $0x20] sm:$0xff] %v522
        %685 = vst [vmem:[#allocation2 + $0x28] sm:$0xff] %v527
        %686 = vst [vmem:[#allocation2 + $0x30] sm:$0xff] %v532
        %687 = vst [vmem:[#allocation2 + $0x38] sm:$0xff] %v537
        %688 = vst [vmem:[#allocation2 + $0x40] sm:$0xff] %v542
        %689 = vst [vmem:[#allocation2 + $0x48] sm:$0xff] %v547
        %690 = vst [vmem:[#allocation2 + $0x50] sm:$0xff] %v552
        %691 = vst [vmem:[#allocation2 + $0x58] sm:$0xff] %v557
        %692 = vst [vmem:[#allocation2 + $0x60] sm:$0xff] %v562
        %693 = vst [vmem:[#allocation2 + $0x68] sm:$0xff] %v567
        %694 = vst [vmem:[#allocation2 + $0x70] sm:$0xff] %v572
        %695 = vst [vmem:[#allocation2 + $0x78] sm:$0xff] %v577
        %696 = vst [vmem:[#allocation2 + $0x80] sm:$0xff] %v582
        %697 = vst [vmem:[#allocation2 + $0x88] sm:$0xff] %v587
        %698 = vst [vmem:[#allocation2 + $0x90] sm:$0xff] %v592
        %699 = vst [vmem:[#allocation2 + $0x98] sm:$0xff] %v597
        %700 = vst [vmem:[#allocation2 + $0xa0] sm:$0xff] %v602
        %701 = vst [vmem:[#allocation2 + $0xa8] sm:$0xff] %v607
        %702 = vst [vmem:[#allocation2 + $0xb0] sm:$0xff] %v612
        %703 = vst [vmem:[#allocation2 + $0xb8] sm:$0xff] %v617
        %704 = vst [vmem:[#allocation2 + $0xc0] sm:$0xff] %v622
        %705 = vst [vmem:[#allocation2 + $0xc8] sm:$0xff] %v627
        %706 = vst [vmem:[#allocation2 + $0xd0] sm:$0xff] %v632
        %707 = vst [vmem:[#allocation2 + $0xd8] sm:$0xff] %v637
        %708 = vst [vmem:[#allocation2 + $0xe0] sm:$0xff] %v642
        %709 = vst [vmem:[#allocation2 + $0xe8] sm:$0xff] %v647
        %710 = vst [vmem:[#allocation2 + $0xf0] sm:$0xff] %v652
        %711 = vst [vmem:[#allocation2 + $0xf8] sm:$0xff] %v657
        %712 = vst [vmem:[#allocation2 + $0x100] sm:$0xff] %v662
        %713 = vst [vmem:[#allocation2 + $0x108] sm:$0xff] %v667
        %714 = vst [vmem:[#allocation2 + $0x110] sm:$0xff] %v672
        %715 = vst [vmem:[#allocation2 + $0x118] sm:$0xff] %v677
        %v716 = vld [vmem:[%s248] sm:$0xf]
        %v717 = vld [vmem:[%s248 + $0x4] sm:$0xf]
        %v718 = vld [vmem:[%s248 + $0x8] sm:$0xf]
        %v719 = vld [vmem:[%s248 + $0xc] sm:$0xf]
        %v720 = vld [vmem:[%s248 + $0x10] sm:$0xf]
        %v721 = vld [vmem:[%s248 + $0x14] sm:$0xf]
        %v722 = vld [vmem:[%s248 + $0x18] sm:$0xf]
        %v723 = vld [vmem:[%s248 + $0x1c] sm:$0xf]
        %v724 = vld [vmem:[%s248 + $0x20] sm:$0xf]
        %v725 = vld [vmem:[%s248 + $0x24] sm:$0xf]
        %v726 = vld [vmem:[%s248 + $0x28] sm:$0xf]
        %v727 = vld [vmem:[%s248 + $0x2c] sm:$0xf]
        %v728 = vld [vmem:[%s248 + $0x30] sm:$0xf]
        %v729 = vld [vmem:[%s248 + $0x34] sm:$0xf]
        %v730 = vld [vmem:[%s248 + $0x38] sm:$0xf]
        %v731 = vld [vmem:[%s248 + $0x3c] sm:$0xf]
        %v732 = vld [vmem:[%s248 + $0x40] sm:$0xf]
        %v733 = vld [vmem:[%s248 + $0x44] sm:$0xf]
        %v734 = vld [vmem:[%s248 + $0x48] sm:$0xf]
        %v735 = vld [vmem:[%s248 + $0x4c] sm:$0xf]
        %v736 = vld [vmem:[%s248 + $0x50] sm:$0xf]
        %v737 = vld [vmem:[%s248 + $0x54] sm:$0xf]
        %v738 = vld [vmem:[%s248 + $0x58] sm:$0xf]
        %v739 = vld [vmem:[%s248 + $0x5c] sm:$0xf]
        %v740 = vld [vmem:[%s248 + $0x60] sm:$0xf]
        %v741 = vld [vmem:[%s248 + $0x64] sm:$0xf]
        %v742 = vld [vmem:[%s248 + $0x68] sm:$0xf]
        %v743 = vld [vmem:[%s248 + $0x6c] sm:$0xf]
        %v744 = vld [vmem:[%s248 + $0x70] sm:$0xf]
        %v745 = vld [vmem:[%s248 + $0x74] sm:$0xf]
        %v746 = vld [vmem:[%s248 + $0x78] sm:$0xf]
        %v747 = vld [vmem:[%s248 + $0x7c] sm:$0xf]
        %v748 = vld [vmem:[%s248 + $0x80] sm:$0xf]
        %v749 = vld [vmem:[%s248 + $0x84] sm:$0xf]
        %v750 = vld [vmem:[%s248 + $0x88] sm:$0xf]
        %v751 = vld [vmem:[%s248 + $0x8c] sm:$0xf]
        %v752 = vld [vmem:[%s248 + $0x90] sm:$0x1]
        %v753 = vunpack.c.l.bf16 %v716
        %v754 = vunpack.c.l.bf16 %v717
        %v755 = vunpack.c.l.bf16 %v718
        %v756 = vunpack.c.l.bf16 %v719
        %v757 = vunpack.c.l.bf16 %v720
        %v758 = vunpack.c.l.bf16 %v721
        %v759 = vunpack.c.l.bf16 %v722
        %v760 = vunpack.c.l.bf16 %v723
        %v761 = vunpack.c.l.bf16 %v724
        %v762 = vunpack.c.l.bf16 %v725
        %v763 = vunpack.c.l.bf16 %v726
        %v764 = vunpack.c.l.bf16 %v727
        %v765 = vunpack.c.l.bf16 %v728
        %v766 = vunpack.c.l.bf16 %v729
        %v767 = vunpack.c.l.bf16 %v730
        %v768 = vunpack.c.l.bf16 %v731
        %v769 = vunpack.c.l.bf16 %v732
        %v770 = vunpack.c.l.bf16 %v733
        %v771 = vunpack.c.l.bf16 %v734
        %v772 = vunpack.c.l.bf16 %v735
        %v773 = vunpack.c.l.bf16 %v736
        %v774 = vunpack.c.l.bf16 %v737
        %v775 = vunpack.c.l.bf16 %v738
        %v776 = vunpack.c.l.bf16 %v739
        %v777 = vunpack.c.l.bf16 %v740
        %v778 = vunpack.c.l.bf16 %v741
        %v779 = vunpack.c.l.bf16 %v742
        %v780 = vunpack.c.l.bf16 %v743
        %v781 = vunpack.c.l.bf16 %v744
        %v782 = vunpack.c.l.bf16 %v745
        %v783 = vunpack.c.l.bf16 %v746
        %v784 = vunpack.c.l.bf16 %v747
        %v785 = vunpack.c.l.bf16 %v748
        %v786 = vunpack.c.l.bf16 %v749
        %v787 = vunpack.c.l.bf16 %v750
        %v788 = vunpack.c.l.bf16 %v751
        %v789 = vunpack.c.l.bf16 %v752
        %s790 = scalar_lea.vmem %s1, 4
        %v791 = vld [vmem:[%s790] sm:$0xf]
        %vm829 = vcmask 1046528
        %v830 = vrot.slane %v753, 1
        %v831 = vrot.slane %v754, 1
        %v832 = vsel %vm829, %v830, %v831
        %v833 = vrot.slane %v755, 1
        %v834 = vsel %vm829, %v831, %v833
        %v835 = vrot.slane %v756, 1
        %v836 = vsel %vm829, %v833, %v835
        %v837 = vrot.slane %v757, 1
        %v838 = vsel %vm829, %v835, %v837
        %v839 = vrot.slane %v758, 1
        %v840 = vsel %vm829, %v837, %v839
        %v841 = vrot.slane %v759, 1
        %v842 = vsel %vm829, %v839, %v841
        %v843 = vrot.slane %v760, 1
        %v844 = vsel %vm829, %v841, %v843
        %v845 = vrot.slane %v761, 1
        %v846 = vsel %vm829, %v843, %v845
        %v847 = vrot.slane %v762, 1
        %v848 = vsel %vm829, %v845, %v847
        %v849 = vrot.slane %v763, 1
        %v850 = vsel %vm829, %v847, %v849
        %v851 = vrot.slane %v764, 1
        %v852 = vsel %vm829, %v849, %v851
        %v853 = vrot.slane %v765, 1
        %v854 = vsel %vm829, %v851, %v853
        %v855 = vrot.slane %v766, 1
        %v856 = vsel %vm829, %v853, %v855
        %v857 = vrot.slane %v767, 1
        %v858 = vsel %vm829, %v855, %v857
        %v859 = vrot.slane %v768, 1
        %v860 = vsel %vm829, %v857, %v859
        %v861 = vrot.slane %v769, 1
        %v862 = vsel %vm829, %v859, %v861
        %v863 = vrot.slane %v770, 1
        %v864 = vsel %vm829, %v861, %v863
        %v865 = vrot.slane %v771, 1
        %v866 = vsel %vm829, %v863, %v865
        %v867 = vrot.slane %v772, 1
        %v868 = vsel %vm829, %v865, %v867
        %v869 = vrot.slane %v773, 1
        %v870 = vsel %vm829, %v867, %v869
        %v871 = vrot.slane %v774, 1
        %v872 = vsel %vm829, %v869, %v871
        %v873 = vrot.slane %v775, 1
        %v874 = vsel %vm829, %v871, %v873
        %v875 = vrot.slane %v776, 1
        %v876 = vsel %vm829, %v873, %v875
        %v877 = vrot.slane %v777, 1
        %v878 = vsel %vm829, %v875, %v877
        %v879 = vrot.slane %v778, 1
        %v880 = vsel %vm829, %v877, %v879
        %v881 = vrot.slane %v779, 1
        %v882 = vsel %vm829, %v879, %v881
        %v883 = vrot.slane %v780, 1
        %v884 = vsel %vm829, %v881, %v883
        %v885 = vrot.slane %v781, 1
        %v886 = vsel %vm829, %v883, %v885
        %v887 = vrot.slane %v782, 1
        %v888 = vsel %vm829, %v885, %v887
        %v889 = vrot.slane %v783, 1
        %v890 = vsel %vm829, %v887, %v889
        %v891 = vrot.slane %v784, 1
        %v892 = vsel %vm829, %v889, %v891
        %v893 = vrot.slane %v785, 1
        %v894 = vsel %vm829, %v891, %v893
        %v895 = vrot.slane %v786, 1
        %v896 = vsel %vm829, %v893, %v895
        %v897 = vrot.slane %v787, 1
        %v898 = vsel %vm829, %v895, %v897
        %v899 = vrot.slane %v788, 1
        %v900 = vsel %vm829, %v897, %v899
        %v901 = vrot.slane %v789, 1
        %v902 = vsel %vm829, %v899, %v901
        %v903 = vsel %vm322, %v832, 0
        %v905 = vsel %vm322, %v834, 0
        %v907 = vsel %vm322, %v836, 0
        %v909 = vsel %vm322, %v838, 0
        %v911 = vsel %vm322, %v840, 0
        %v913 = vsel %vm322, %v842, 0
        %v915 = vsel %vm322, %v844, 0
        %v917 = vsel %vm322, %v846, 0
        %v919 = vsel %vm322, %v848, 0
        %v921 = vsel %vm322, %v850, 0
        %v923 = vsel %vm322, %v852, 0
        %v925 = vsel %vm322, %v854, 0
        %v927 = vsel %vm322, %v856, 0
        %v929 = vsel %vm322, %v858, 0
        %v931 = vsel %vm322, %v860, 0
        %v933 = vsel %vm322, %v862, 0
        %v935 = vsel %vm322, %v864, 0
        %v937 = vsel %vm322, %v866, 0
        %v939 = vsel %vm322, %v868, 0
        %v941 = vsel %vm322, %v870, 0
        %v943 = vsel %vm322, %v872, 0
        %v945 = vsel %vm322, %v874, 0
        %v947 = vsel %vm322, %v876, 0
        %v949 = vsel %vm322, %v878, 0
        %v951 = vsel %vm322, %v880, 0
        %v953 = vsel %vm322, %v882, 0
        %v955 = vsel %vm322, %v884, 0
        %v957 = vsel %vm322, %v886, 0
        %v959 = vsel %vm322, %v888, 0
        %v961 = vsel %vm322, %v890, 0
        %v963 = vsel %vm322, %v892, 0
        %v965 = vsel %vm322, %v894, 0
        %v967 = vsel %vm322, %v896, 0
        %v969 = vsel %vm322, %v898, 0
        %v971 = vsel %vm322, %v900, 0
        %v973 = vsel %vm322, %v902, 0
        %v976 = vsel %vm431, %v791, 0
        %978 = vmatprep.subr.mxu0 0.0
        %979 = vmatpush1.msra.mxu0 %v976
        %980 = vmatprep.subr.mxu0 0.0
        %981 = vmatpush1.msra.mxu0 0.0
        %982 = vmatprep.subr.mxu0 0.0
        %983 = vmatpush1.msra.mxu0 0.0
        %984 = vmatprep.subr.mxu0 0.0
        %985 = vmatpush1.msra.mxu0 0.0
        %986 = vmatprep.subr.mxu0 0.0
        %987 = vmatpush1.msra.mxu0 0.0
        %988 = vmatprep.subr.mxu0 0.0
        %989 = vmatpush1.msra.mxu0 0.0
        %990 = vmatprep.subr.mxu0 0.0
        %991 = vmatpush1.msra.mxu0 0.0
        %992 = vmatprep.subr.mxu0 0.0
        %993 = vmatpush1.msra.mxu0 0.0
        %994 = vmatprep.subr.mxu0 0.0
        %995 = vmatpush1.msra.mxu0 0.0
        %996 = vmatprep.subr.mxu0 0.0
        %997 = vmatpush1.msra.mxu0 0.0
        %998 = vmatprep.subr.mxu0 0.0
        %999 = vmatpush1.msra.mxu0 0.0
        %1000 = vmatprep.subr.mxu0 0.0
        %1001 = vmatpush1.msra.mxu0 0.0
        %1002 = vmatprep.subr.mxu0 0.0
        %1003 = vmatpush1.msra.mxu0 0.0
        %1004 = vmatprep.subr.mxu0 0.0
        %1005 = vmatpush1.msra.mxu0 0.0
        %1006 = vmatprep.subr.mxu0 0.0
        %1007 = vmatpush1.msra.mxu0 0.0
        %1008 = vmatprep.subr.mxu0 0.0
        %1009 = vmatpush1.msra.mxu0 0.0
        %1010 = vmatprep.subr.mxu0 0.0
        %1011 = vmatpush1.msra.mxu0 0.0
        %1012 = vmatprep.subr.mxu0 0.0
        %1013 = vmatpush1.msra.mxu0 0.0
        %1014 = vmatprep.subr.mxu0 0.0
        %1015 = vmatpush1.msra.mxu0 0.0
        %1016 = vmatprep.subr.mxu0 0.0
        %1017 = vmatpush1.msra.mxu0 0.0
        %1018 = vmatprep.subr.mxu0 0.0
        %1019 = vmatpush1.msra.mxu0 0.0
        %1020 = vmatprep.subr.mxu0 0.0
        %1021 = vmatpush1.msra.mxu0 0.0
        %1022 = vmatprep.subr.mxu0 0.0
        %1023 = vmatpush1.msra.mxu0 0.0
        %1024 = vmatprep.subr.mxu0 0.0
        %1025 = vmatpush1.msra.mxu0 0.0
        %1026 = vmatprep.subr.mxu0 0.0
        %1027 = vmatpush1.msra.mxu0 0.0
        %1028 = vmatprep.subr.mxu0 0.0
        %1029 = vmatpush1.msra.mxu0 0.0
        %1030 = vmatprep.subr.mxu0 0.0
        %1031 = vmatpush1.msra.mxu0 0.0
        %1032 = vmatprep.subr.mxu0 0.0
        %1033 = vmatpush1.msra.mxu0 0.0
        %1034 = vmatprep.subr.mxu0 0.0
        %1035 = vmatpush1.msra.mxu0 0.0
        %1036 = vmatprep.subr.mxu0 0.0
        %1037 = vmatpush1.msra.mxu0 0.0
        %1038 = vmatprep.subr.mxu0 0.0
        %1039 = vmatpush1.msra.mxu0 0.0
        %1040 = vmatprep.subr.mxu0 0.0
        %1041 = vmatpush1.msra.mxu0 0.0
        %1042 = vmatprep.mubr.f32.mxu0 0.0
        %1043 = vmatmul.mubr.f32.gmra.mrb[0].mxu0 %v903
        %v1044 = vpop.f32.mrb[0].mxu0
        %v1045 = vadd.f32 0.0, %v1044
        %v1046 = vpop.f32.mrb[0].mxu0
        %1047 = vmatprep.mubr.f32.mxu0 0.0
        %1048 = vmatmul.mubr.f32.gmra.mrb[0].mxu0 %v905
        %v1049 = vpop.f32.mrb[0].mxu0
        %v1050 = vadd.f32 0.0, %v1049
        %v1051 = vpop.f32.mrb[0].mxu0
        %1052 = vmatprep.mubr.f32.mxu0 0.0
        %1053 = vmatmul.mubr.f32.gmra.mrb[0].mxu0 %v907
        %v1054 = vpop.f32.mrb[0].mxu0
        %v1055 = vadd.f32 0.0, %v1054
        %v1056 = vpop.f32.mrb[0].mxu0
        %1057 = vmatprep.mubr.f32.mxu0 0.0
        %1058 = vmatmul.mubr.f32.gmra.mrb[0].mxu0 %v909
        %v1059 = vpop.f32.mrb[0].mxu0
        %v1060 = vadd.f32 0.0, %v1059
        %v1061 = vpop.f32.mrb[0].mxu0
        %1062 = vmatprep.mubr.f32.mxu0 0.0
        %1063 = vmatmul.mubr.f32.gmra.mrb[0].mxu0 %v911
        %v1064 = vpop.f32.mrb[0].mxu0
        %v1065 = vadd.f32 0.0, %v1064
        %v1066 = vpop.f32.mrb[0].mxu0
        %1067 = vmatprep.mubr.f32.mxu0 0.0
        %1068 = vmatmul.mubr.f32.gmra.mrb[0].mxu0 %v913
        %v1069 = vpop.f32.mrb[0].mxu0
        %v1070 = vadd.f32 0.0, %v1069
        %v1071 = vpop.f32.mrb[0].mxu0
        %1072 = vmatprep.mubr.f32.mxu0 0.0
        %1073 = vmatmul.mubr.f32.gmra.mrb[0].mxu0 %v915
        %v1074 = vpop.f32.mrb[0].mxu0
        %v1075 = vadd.f32 0.0, %v1074
        %v1076 = vpop.f32.mrb[0].mxu0
        %1077 = vmatprep.mubr.f32.mxu0 0.0
        %1078 = vmatmul.mubr.f32.gmra.mrb[0].mxu0 %v917
        %v1079 = vpop.f32.mrb[0].mxu0
        %v1080 = vadd.f32 0.0, %v1079
        %v1081 = vpop.f32.mrb[0].mxu0
        %1082 = vmatprep.mubr.f32.mxu0 0.0
        %1083 = vmatmul.mubr.f32.gmra.mrb[0].mxu0 %v919
        %v1084 = vpop.f32.mrb[0].mxu0
        %v1085 = vadd.f32 0.0, %v1084
        %v1086 = vpop.f32.mrb[0].mxu0
        %1087 = vmatprep.mubr.f32.mxu0 0.0
        %1088 = vmatmul.mubr.f32.gmra.mrb[0].mxu0 %v921
        %v1089 = vpop.f32.mrb[0].mxu0
        %v1090 = vadd.f32 0.0, %v1089
        %v1091 = vpop.f32.mrb[0].mxu0
        %1092 = vmatprep.mubr.f32.mxu0 0.0
        %1093 = vmatmul.mubr.f32.gmra.mrb[0].mxu0 %v923
        %v1094 = vpop.f32.mrb[0].mxu0
        %v1095 = vadd.f32 0.0, %v1094
        %v1096 = vpop.f32.mrb[0].mxu0
        %1097 = vmatprep.mubr.f32.mxu0 0.0
        %1098 = vmatmul.mubr.f32.gmra.mrb[0].mxu0 %v925
        %v1099 = vpop.f32.mrb[0].mxu0
        %v1100 = vadd.f32 0.0, %v1099
        %v1101 = vpop.f32.mrb[0].mxu0
        %1102 = vmatprep.mubr.f32.mxu0 0.0
        %1103 = vmatmul.mubr.f32.gmra.mrb[0].mxu0 %v927
        %v1104 = vpop.f32.mrb[0].mxu0
        %v1105 = vadd.f32 0.0, %v1104
        %v1106 = vpop.f32.mrb[0].mxu0
        %1107 = vmatprep.mubr.f32.mxu0 0.0
        %1108 = vmatmul.mubr.f32.gmra.mrb[0].mxu0 %v929
        %v1109 = vpop.f32.mrb[0].mxu0
        %v1110 = vadd.f32 0.0, %v1109
        %v1111 = vpop.f32.mrb[0].mxu0
        %1112 = vmatprep.mubr.f32.mxu0 0.0
        %1113 = vmatmul.mubr.f32.gmra.mrb[0].mxu0 %v931
        %v1114 = vpop.f32.mrb[0].mxu0
        %v1115 = vadd.f32 0.0, %v1114
        %v1116 = vpop.f32.mrb[0].mxu0
        %1117 = vmatprep.mubr.f32.mxu0 0.0
        %1118 = vmatmul.mubr.f32.gmra.mrb[0].mxu0 %v933
        %v1119 = vpop.f32.mrb[0].mxu0
        %v1120 = vadd.f32 0.0, %v1119
        %v1121 = vpop.f32.mrb[0].mxu0
        %1122 = vmatprep.mubr.f32.mxu0 0.0
        %1123 = vmatmul.mubr.f32.gmra.mrb[0].mxu0 %v935
        %v1124 = vpop.f32.mrb[0].mxu0
        %v1125 = vadd.f32 0.0, %v1124
        %v1126 = vpop.f32.mrb[0].mxu0
        %1127 = vmatprep.mubr.f32.mxu0 0.0
        %1128 = vmatmul.mubr.f32.gmra.mrb[0].mxu0 %v937
        %v1129 = vpop.f32.mrb[0].mxu0
        %v1130 = vadd.f32 0.0, %v1129
        %v1131 = vpop.f32.mrb[0].mxu0
        %1132 = vmatprep.mubr.f32.mxu0 0.0
        %1133 = vmatmul.mubr.f32.gmra.mrb[0].mxu0 %v939
        %v1134 = vpop.f32.mrb[0].mxu0
        %v1135 = vadd.f32 0.0, %v1134
        %v1136 = vpop.f32.mrb[0].mxu0
        %1137 = vmatprep.mubr.f32.mxu0 0.0
        %1138 = vmatmul.mubr.f32.gmra.mrb[0].mxu0 %v941
        %v1139 = vpop.f32.mrb[0].mxu0
        %v1140 = vadd.f32 0.0, %v1139
        %v1141 = vpop.f32.mrb[0].mxu0
        %1142 = vmatprep.mubr.f32.mxu0 0.0
        %1143 = vmatmul.mubr.f32.gmra.mrb[0].mxu0 %v943
        %v1144 = vpop.f32.mrb[0].mxu0
        %v1145 = vadd.f32 0.0, %v1144
        %v1146 = vpop.f32.mrb[0].mxu0
        %1147 = vmatprep.mubr.f32.mxu0 0.0
        %1148 = vmatmul.mubr.f32.gmra.mrb[0].mxu0 %v945
        %v1149 = vpop.f32.mrb[0].mxu0
        %v1150 = vadd.f32 0.0, %v1149
        %v1151 = vpop.f32.mrb[0].mxu0
        %1152 = vmatprep.mubr.f32.mxu0 0.0
        %1153 = vmatmul.mubr.f32.gmra.mrb[0].mxu0 %v947
        %v1154 = vpop.f32.mrb[0].mxu0
        %v1155 = vadd.f32 0.0, %v1154
        %v1156 = vpop.f32.mrb[0].mxu0
        %1157 = vmatprep.mubr.f32.mxu0 0.0
        %1158 = vmatmul.mubr.f32.gmra.mrb[0].mxu0 %v949
        %v1159 = vpop.f32.mrb[0].mxu0
        %v1160 = vadd.f32 0.0, %v1159
        %v1161 = vpop.f32.mrb[0].mxu0
        %1162 = vmatprep.mubr.f32.mxu0 0.0
        %1163 = vmatmul.mubr.f32.gmra.mrb[0].mxu0 %v951
        %v1164 = vpop.f32.mrb[0].mxu0
        %v1165 = vadd.f32 0.0, %v1164
        %v1166 = vpop.f32.mrb[0].mxu0
        %1167 = vmatprep.mubr.f32.mxu0 0.0
        %1168 = vmatmul.mubr.f32.gmra.mrb[0].mxu0 %v953
        %v1169 = vpop.f32.mrb[0].mxu0
        %v1170 = vadd.f32 0.0, %v1169
        %v1171 = vpop.f32.mrb[0].mxu0
        %1172 = vmatprep.mubr.f32.mxu0 0.0
        %1173 = vmatmul.mubr.f32.gmra.mrb[0].mxu0 %v955
        %v1174 = vpop.f32.mrb[0].mxu0
        %v1175 = vadd.f32 0.0, %v1174
        %v1176 = vpop.f32.mrb[0].mxu0
        %1177 = vmatprep.mubr.f32.mxu0 0.0
        %1178 = vmatmul.mubr.f32.gmra.mrb[0].mxu0 %v957
        %v1179 = vpop.f32.mrb[0].mxu0
        %v1180 = vadd.f32 0.0, %v1179
        %v1181 = vpop.f32.mrb[0].mxu0
        %1182 = vmatprep.mubr.f32.mxu0 0.0
        %1183 = vmatmul.mubr.f32.gmra.mrb[0].mxu0 %v959
        %v1184 = vpop.f32.mrb[0].mxu0
        %v1185 = vadd.f32 0.0, %v1184
        %v1186 = vpop.f32.mrb[0].mxu0
        %1187 = vmatprep.mubr.f32.mxu0 0.0
        %1188 = vmatmul.mubr.f32.gmra.mrb[0].mxu0 %v961
        %v1189 = vpop.f32.mrb[0].mxu0
        %v1190 = vadd.f32 0.0, %v1189
        %v1191 = vpop.f32.mrb[0].mxu0
        %1192 = vmatprep.mubr.f32.mxu0 0.0
        %1193 = vmatmul.mubr.f32.gmra.mrb[0].mxu0 %v963
        %v1194 = vpop.f32.mrb[0].mxu0
        %v1195 = vadd.f32 0.0, %v1194
        %v1196 = vpop.f32.mrb[0].mxu0
        %1197 = vmatprep.mubr.f32.mxu0 0.0
        %1198 = vmatmul.mubr.f32.gmra.mrb[0].mxu0 %v965
        %v1199 = vpop.f32.mrb[0].mxu0
        %v1200 = vadd.f32 0.0, %v1199
        %v1201 = vpop.f32.mrb[0].mxu0
        %1202 = vmatprep.mubr.f32.mxu0 0.0
        %1203 = vmatmul.mubr.f32.gmra.mrb[0].mxu0 %v967
        %v1204 = vpop.f32.mrb[0].mxu0
        %v1205 = vadd.f32 0.0, %v1204
        %v1206 = vpop.f32.mrb[0].mxu0
        %1207 = vmatprep.mubr.f32.mxu0 0.0
        %1208 = vmatmul.mubr.f32.gmra.mrb[0].mxu0 %v969
        %v1209 = vpop.f32.mrb[0].mxu0
        %v1210 = vadd.f32 0.0, %v1209
        %v1211 = vpop.f32.mrb[0].mxu0
        %1212 = vmatprep.mubr.f32.mxu0 0.0
        %1213 = vmatmul.mubr.f32.gmra.mrb[0].mxu0 %v971
        %v1214 = vpop.f32.mrb[0].mxu0
        %v1215 = vadd.f32 0.0, %v1214
        %v1216 = vpop.f32.mrb[0].mxu0
        %1217 = vmatprep.mubr.f32.mxu0 0.0
        %1218 = vmatmul.mubr.f32.gmra.mrb[0].mxu0 %v973
        %v1219 = vpop.f32.mrb[0].mxu0
        %v1220 = vadd.f32 0.0, %v1219
        %v1221 = vpop.f32.mrb[0].mxu0
        %1222 = vdwg.mxu0
        %v1223 = vld [vmem:[#allocation2] sm:$0xff]
        %v1224 = vld [vmem:[#allocation2 + $0x8] sm:$0xff]
        %v1225 = vld [vmem:[#allocation2 + $0x10] sm:$0xff]
        %v1226 = vld [vmem:[#allocation2 + $0x18] sm:$0xff]
        %v1227 = vld [vmem:[#allocation2 + $0x20] sm:$0xff]
        %v1228 = vld [vmem:[#allocation2 + $0x28] sm:$0xff]
        %v1229 = vld [vmem:[#allocation2 + $0x30] sm:$0xff]
        %v1230 = vld [vmem:[#allocation2 + $0x38] sm:$0xff]
        %v1231 = vld [vmem:[#allocation2 + $0x40] sm:$0xff]
        %v1232 = vld [vmem:[#allocation2 + $0x48] sm:$0xff]
        %v1233 = vld [vmem:[#allocation2 + $0x50] sm:$0xff]
        %v1234 = vld [vmem:[#allocation2 + $0x58] sm:$0xff]
        %v1235 = vld [vmem:[#allocation2 + $0x60] sm:$0xff]
        %v1236 = vld [vmem:[#allocation2 + $0x68] sm:$0xff]
        %v1237 = vld [vmem:[#allocation2 + $0x70] sm:$0xff]
        %v1238 = vld [vmem:[#allocation2 + $0x78] sm:$0xff]
        %v1239 = vld [vmem:[#allocation2 + $0x80] sm:$0xff]
        %v1240 = vld [vmem:[#allocation2 + $0x88] sm:$0xff]
        %v1241 = vld [vmem:[#allocation2 + $0x90] sm:$0xff]
        %v1242 = vld [vmem:[#allocation2 + $0x98] sm:$0xff]
        %v1243 = vld [vmem:[#allocation2 + $0xa0] sm:$0xff]
        %v1244 = vld [vmem:[#allocation2 + $0xa8] sm:$0xff]
        %v1245 = vld [vmem:[#allocation2 + $0xb0] sm:$0xff]
        %v1246 = vld [vmem:[#allocation2 + $0xb8] sm:$0xff]
        %v1247 = vld [vmem:[#allocation2 + $0xc0] sm:$0xff]
        %v1248 = vld [vmem:[#allocation2 + $0xc8] sm:$0xff]
        %v1249 = vld [vmem:[#allocation2 + $0xd0] sm:$0xff]
        %v1250 = vld [vmem:[#allocation2 + $0xd8] sm:$0xff]
        %v1251 = vld [vmem:[#allocation2 + $0xe0] sm:$0xff]
        %v1252 = vld [vmem:[#allocation2 + $0xe8] sm:$0xff]
        %v1253 = vld [vmem:[#allocation2 + $0xf0] sm:$0xff]
        %v1254 = vld [vmem:[#allocation2 + $0xf8] sm:$0xff]
        %v1255 = vld [vmem:[#allocation2 + $0x100] sm:$0xff]
        %v1256 = vld [vmem:[#allocation2 + $0x108] sm:$0xff]
        %v1257 = vld [vmem:[#allocation2 + $0x110] sm:$0xff]
        %v1258 = vld [vmem:[#allocation2 + $0x118] sm:$0xff]
        %v1259 = vadd.f32 %v1223, %v1045
        %v1260 = vadd.f32 %v1224, %v1050
        %v1261 = vadd.f32 %v1225, %v1055
        %v1262 = vadd.f32 %v1226, %v1060
        %v1263 = vadd.f32 %v1227, %v1065
        %v1264 = vadd.f32 %v1228, %v1070
        %v1265 = vadd.f32 %v1229, %v1075
        %v1266 = vadd.f32 %v1230, %v1080
        %v1267 = vadd.f32 %v1231, %v1085
        %v1268 = vadd.f32 %v1232, %v1090
        %v1269 = vadd.f32 %v1233, %v1095
        %v1270 = vadd.f32 %v1234, %v1100
        %v1271 = vadd.f32 %v1235, %v1105
        %v1272 = vadd.f32 %v1236, %v1110
        %v1273 = vadd.f32 %v1237, %v1115
        %v1274 = vadd.f32 %v1238, %v1120
        %v1275 = vadd.f32 %v1239, %v1125
        %v1276 = vadd.f32 %v1240, %v1130
        %v1277 = vadd.f32 %v1241, %v1135
        %v1278 = vadd.f32 %v1242, %v1140
        %v1279 = vadd.f32 %v1243, %v1145
        %v1280 = vadd.f32 %v1244, %v1150
        %v1281 = vadd.f32 %v1245, %v1155
        %v1282 = vadd.f32 %v1246, %v1160
        %v1283 = vadd.f32 %v1247, %v1165
        %v1284 = vadd.f32 %v1248, %v1170
        %v1285 = vadd.f32 %v1249, %v1175
        %v1286 = vadd.f32 %v1250, %v1180
        %v1287 = vadd.f32 %v1251, %v1185
        %v1288 = vadd.f32 %v1252, %v1190
        %v1289 = vadd.f32 %v1253, %v1195
        %v1290 = vadd.f32 %v1254, %v1200
        %v1291 = vadd.f32 %v1255, %v1205
        %v1292 = vadd.f32 %v1256, %v1210
        %v1293 = vadd.f32 %v1257, %v1215
        %v1294 = vadd.f32 %v1258, %v1220
        %1295 = vst [vmem:[#allocation2] sm:$0xff] %v1259
        %1296 = vst [vmem:[#allocation2 + $0x8] sm:$0xff] %v1260
        %1297 = vst [vmem:[#allocation2 + $0x10] sm:$0xff] %v1261
        %1298 = vst [vmem:[#allocation2 + $0x18] sm:$0xff] %v1262
        %1299 = vst [vmem:[#allocation2 + $0x20] sm:$0xff] %v1263
        %1300 = vst [vmem:[#allocation2 + $0x28] sm:$0xff] %v1264
        %1301 = vst [vmem:[#allocation2 + $0x30] sm:$0xff] %v1265
        %1302 = vst [vmem:[#allocation2 + $0x38] sm:$0xff] %v1266
        %1303 = vst [vmem:[#allocation2 + $0x40] sm:$0xff] %v1267
        %1304 = vst [vmem:[#allocation2 + $0x48] sm:$0xff] %v1268
        %1305 = vst [vmem:[#allocation2 + $0x50] sm:$0xff] %v1269
        %1306 = vst [vmem:[#allocation2 + $0x58] sm:$0xff] %v1270
        %1307 = vst [vmem:[#allocation2 + $0x60] sm:$0xff] %v1271
        %1308 = vst [vmem:[#allocation2 + $0x68] sm:$0xff] %v1272
        %1309 = vst [vmem:[#allocation2 + $0x70] sm:$0xff] %v1273
        %1310 = vst [vmem:[#allocation2 + $0x78] sm:$0xff] %v1274
        %1311 = vst [vmem:[#allocation2 + $0x80] sm:$0xff] %v1275
        %1312 = vst [vmem:[#allocation2 + $0x88] sm:$0xff] %v1276
        %1313 = vst [vmem:[#allocation2 + $0x90] sm:$0xff] %v1277
        %1314 = vst [vmem:[#allocation2 + $0x98] sm:$0xff] %v1278
        %1315 = vst [vmem:[#allocation2 + $0xa0] sm:$0xff] %v1279
        %1316 = vst [vmem:[#allocation2 + $0xa8] sm:$0xff] %v1280
        %1317 = vst [vmem:[#allocation2 + $0xb0] sm:$0xff] %v1281
        %1318 = vst [vmem:[#allocation2 + $0xb8] sm:$0xff] %v1282
        %1319 = vst [vmem:[#allocation2 + $0xc0] sm:$0xff] %v1283
        %1320 = vst [vmem:[#allocation2 + $0xc8] sm:$0xff] %v1284
        %1321 = vst [vmem:[#allocation2 + $0xd0] sm:$0xff] %v1285
        %1322 = vst [vmem:[#allocation2 + $0xd8] sm:$0xff] %v1286
        %1323 = vst [vmem:[#allocation2 + $0xe0] sm:$0xff] %v1287
        %1324 = vst [vmem:[#allocation2 + $0xe8] sm:$0xff] %v1288
        %1325 = vst [vmem:[#allocation2 + $0xf0] sm:$0xff] %v1289
        %1326 = vst [vmem:[#allocation2 + $0xf8] sm:$0xff] %v1290
        %1327 = vst [vmem:[#allocation2 + $0x100] sm:$0xff] %v1291
        %1328 = vst [vmem:[#allocation2 + $0x108] sm:$0xff] %v1292
        %1329 = vst [vmem:[#allocation2 + $0x110] sm:$0xff] %v1293
        %1330 = vst [vmem:[#allocation2 + $0x118] sm:$0xff] %v1294
        %v1331 = vld [vmem:[%s248] sm:$0xe]
        %v1332 = vld [vmem:[%s248 + $0x4] sm:$0xf]
        %v1333 = vld [vmem:[%s248 + $0x8] sm:$0xf]
        %v1334 = vld [vmem:[%s248 + $0xc] sm:$0xf]
        %v1335 = vld [vmem:[%s248 + $0x10] sm:$0xf]
        %v1336 = vld [vmem:[%s248 + $0x14] sm:$0xf]
        %v1337 = vld [vmem:[%s248 + $0x18] sm:$0xf]
        %v1338 = vld [vmem:[%s248 + $0x1c] sm:$0xf]
        %v1339 = vld [vmem:[%s248 + $0x20] sm:$0xf]
        %v1340 = vld [vmem:[%s248 + $0x24] sm:$0xf]
        %v1341 = vld [vmem:[%s248 + $0x28] sm:$0xf]
        %v1342 = vld [vmem:[%s248 + $0x2c] sm:$0xf]
        %v1343 = vld [vmem:[%s248 + $0x30] sm:$0xf]
        %v1344 = vld [vmem:[%s248 + $0x34] sm:$0xf]
        %v1345 = vld [vmem:[%s248 + $0x38] sm:$0xf]
        %v1346 = vld [vmem:[%s248 + $0x3c] sm:$0xf]
        %v1347 = vld [vmem:[%s248 + $0x40] sm:$0xf]
        %v1348 = vld [vmem:[%s248 + $0x44] sm:$0xf]
        %v1349 = vld [vmem:[%s248 + $0x48] sm:$0xf]
        %v1350 = vld [vmem:[%s248 + $0x4c] sm:$0xf]
        %v1351 = vld [vmem:[%s248 + $0x50] sm:$0xf]
        %v1352 = vld [vmem:[%s248 + $0x54] sm:$0xf]
        %v1353 = vld [vmem:[%s248 + $0x58] sm:$0xf]
        %v1354 = vld [vmem:[%s248 + $0x5c] sm:$0xf]
        %v1355 = vld [vmem:[%s248 + $0x60] sm:$0xf]
        %v1356 = vld [vmem:[%s248 + $0x64] sm:$0xf]
        %v1357 = vld [vmem:[%s248 + $0x68] sm:$0xf]
        %v1358 = vld [vmem:[%s248 + $0x6c] sm:$0xf]
        %v1359 = vld [vmem:[%s248 + $0x70] sm:$0xf]
        %v1360 = vld [vmem:[%s248 + $0x74] sm:$0xf]
        %v1361 = vld [vmem:[%s248 + $0x78] sm:$0xf]
        %v1362 = vld [vmem:[%s248 + $0x7c] sm:$0xf]
        %v1363 = vld [vmem:[%s248 + $0x80] sm:$0xf]
        %v1364 = vld [vmem:[%s248 + $0x84] sm:$0xf]
        %v1365 = vld [vmem:[%s248 + $0x88] sm:$0xf]
        %v1366 = vld [vmem:[%s248 + $0x8c] sm:$0xf]
        %v1367 = vld [vmem:[%s248 + $0x90] sm:$0x1]
        %v1368 = vunpack.c.l.bf16 %v1331
        %v1369 = vunpack.c.l.bf16 %v1332
        %v1370 = vunpack.c.l.bf16 %v1333
        %v1371 = vunpack.c.l.bf16 %v1334
        %v1372 = vunpack.c.l.bf16 %v1335
        %v1373 = vunpack.c.l.bf16 %v1336
        %v1374 = vunpack.c.l.bf16 %v1337
        %v1375 = vunpack.c.l.bf16 %v1338
        %v1376 = vunpack.c.l.bf16 %v1339
        %v1377 = vunpack.c.l.bf16 %v1340
        %v1378 = vunpack.c.l.bf16 %v1341
        %v1379 = vunpack.c.l.bf16 %v1342
        %v1380 = vunpack.c.l.bf16 %v1343
        %v1381 = vunpack.c.l.bf16 %v1344
        %v1382 = vunpack.c.l.bf16 %v1345
        %v1383 = vunpack.c.l.bf16 %v1346
        %v1384 = vunpack.c.l.bf16 %v1347
        %v1385 = vunpack.c.l.bf16 %v1348
        %v1386 = vunpack.c.l.bf16 %v1349
        %v1387 = vunpack.c.l.bf16 %v1350
        %v1388 = vunpack.c.l.bf16 %v1351
        %v1389 = vunpack.c.l.bf16 %v1352
        %v1390 = vunpack.c.l.bf16 %v1353
        %v1391 = vunpack.c.l.bf16 %v1354
        %v1392 = vunpack.c.l.bf16 %v1355
        %v1393 = vunpack.c.l.bf16 %v1356
        %v1394 = vunpack.c.l.bf16 %v1357
        %v1395 = vunpack.c.l.bf16 %v1358
        %v1396 = vunpack.c.l.bf16 %v1359
        %v1397 = vunpack.c.l.bf16 %v1360
        %v1398 = vunpack.c.l.bf16 %v1361
        %v1399 = vunpack.c.l.bf16 %v1362
        %v1400 = vunpack.c.l.bf16 %v1363
        %v1401 = vunpack.c.l.bf16 %v1364
        %v1402 = vunpack.c.l.bf16 %v1365
        %v1403 = vunpack.c.l.bf16 %v1366
        %v1404 = vunpack.c.l.bf16 %v1367
        %s1405 = scalar_lea.vmem %s1, 8
        %v1406 = vld [vmem:[%s1405] sm:$0xf]
        %vm1444 = vcmask 1045504
        %v1445 = vrot.slane %v1368, 2
        %v1446 = vrot.slane %v1369, 2
        %v1447 = vsel %vm1444, %v1445, %v1446
        %v1448 = vrot.slane %v1370, 2
        %v1449 = vsel %vm1444, %v1446, %v1448
        %v1450 = vrot.slane %v1371, 2
        %v1451 = vsel %vm1444, %v1448, %v1450
        %v1452 = vrot.slane %v1372, 2
        %v1453 = vsel %vm1444, %v1450, %v1452
        %v1454 = vrot.slane %v1373, 2
        %v1455 = vsel %vm1444, %v1452, %v1454
        %v1456 = vrot.slane %v1374, 2
        %v1457 = vsel %vm1444, %v1454, %v1456
        %v1458 = vrot.slane %v1375, 2
        %v1459 = vsel %vm1444, %v1456, %v1458
        %v1460 = vrot.slane %v1376, 2
        %v1461 = vsel %vm1444, %v1458, %v1460
        %v1462 = vrot.slane %v1377, 2
        %v1463 = vsel %vm1444, %v1460, %v1462
        %v1464 = vrot.slane %v1378, 2
        %v1465 = vsel %vm1444, %v1462, %v1464
        %v1466 = vrot.slane %v1379, 2
        %v1467 = vsel %vm1444, %v1464, %v1466
        %v1468 = vrot.slane %v1380, 2
        %v1469 = vsel %vm1444, %v1466, %v1468
        %v1470 = vrot.slane %v1381, 2
        %v1471 = vsel %vm1444, %v1468, %v1470
        %v1472 = vrot.slane %v1382, 2
        %v1473 = vsel %vm1444, %v1470, %v1472
        %v1474 = vrot.slane %v1383, 2
        %v1475 = vsel %vm1444, %v1472, %v1474
        %v1476 = vrot.slane %v1384, 2
        %v1477 = vsel %vm1444, %v1474, %v1476
        %v1478 = vrot.slane %v1385, 2
        %v1479 = vsel %vm1444, %v1476, %v1478
        %v1480 = vrot.slane %v1386, 2
        %v1481 = vsel %vm1444, %v1478, %v1480
        %v1482 = vrot.slane %v1387, 2
        %v1483 = vsel %vm1444, %v1480, %v1482
        %v1484 = vrot.slane %v1388, 2
        %v1485 = vsel %vm1444, %v1482, %v1484
        %v1486 = vrot.slane %v1389, 2
        %v1487 = vsel %vm1444, %v1484, %v1486
        %v1488 = vrot.slane %v1390, 2
        %v1489 = vsel %vm1444, %v1486, %v1488
        %v1490 = vrot.slane %v1391, 2
        %v1491 = vsel %vm1444, %v1488, %v1490
        %v1492 = vrot.slane %v1392, 2
        %v1493 = vsel %vm1444, %v1490, %v1492
        %v1494 = vrot.slane %v1393, 2
        %v1495 = vsel %vm1444, %v1492, %v1494
        %v1496 = vrot.slane %v1394, 2
        %v1497 = vsel %vm1444, %v1494, %v1496
        %v1498 = vrot.slane %v1395, 2
        %v1499 = vsel %vm1444, %v1496, %v1498
        %v1500 = vrot.slane %v1396, 2
        %v1501 = vsel %vm1444, %v1498, %v1500
        %v1502 = vrot.slane %v1397, 2
        %v1503 = vsel %vm1444, %v1500, %v1502
        %v1504 = vrot.slane %v1398, 2
        %v1505 = vsel %vm1444, %v1502, %v1504
        %v1506 = vrot.slane %v1399, 2
        %v1507 = vsel %vm1444, %v1504, %v1506
        %v1508 = vrot.slane %v1400, 2
        %v1509 = vsel %vm1444, %v1506, %v1508
        %v1510 = vrot.slane %v1401, 2
        %v1511 = vsel %vm1444, %v1508, %v1510
        %v1512 = vrot.slane %v1402, 2
        %v1513 = vsel %vm1444, %v1510, %v1512
        %v1514 = vrot.slane %v1403, 2
        %v1515 = vsel %vm1444, %v1512, %v1514
        %v1516 = vrot.slane %v1404, 2
        %v1517 = vsel %vm1444, %v1514, %v1516
        %v1518 = vsel %vm322, %v1447, 0
        %v1520 = vsel %vm322, %v1449, 0
        %v1522 = vsel %vm322, %v1451, 0
        %v1524 = vsel %vm322, %v1453, 0
        %v1526 = vsel %vm322, %v1455, 0
        %v1528 = vsel %vm322, %v1457, 0
        %v1530 = vsel %vm322, %v1459, 0
        %v1532 = vsel %vm322, %v1461, 0
        %v1534 = vsel %vm322, %v1463, 0
        %v1536 = vsel %vm322, %v1465, 0
        %v1538 = vsel %vm322, %v1467, 0
        %v1540 = vsel %vm322, %v1469, 0
        %v1542 = vsel %vm322, %v1471, 0
        %v1544 = vsel %vm322, %v1473, 0
        %v1546 = vsel %vm322, %v1475, 0
        %v1548 = vsel %vm322, %v1477, 0
        %v1550 = vsel %vm322, %v1479, 0
        %v1552 = vsel %vm322, %v1481, 0
        %v1554 = vsel %vm322, %v1483, 0
        %v1556 = vsel %vm322, %v1485, 0
        %v1558 = vsel %vm322, %v1487, 0
        %v1560 = vsel %vm322, %v1489, 0
        %v1562 = vsel %vm322, %v1491, 0
        %v1564 = vsel %vm322, %v1493, 0
        %v1566 = vsel %vm322, %v1495, 0
        %v1568 = vsel %vm322, %v1497, 0
        %v1570 = vsel %vm322, %v1499, 0
        %v1572 = vsel %vm322, %v1501, 0
        %v1574 = vsel %vm322, %v1503, 0
        %v1576 = vsel %vm322, %v1505, 0
        %v1578 = vsel %vm322, %v1507, 0
        %v1580 = vsel %vm322, %v1509, 0
        %v1582 = vsel %vm322, %v1511, 0
        %v1584 = vsel %vm322, %v1513, 0
        %v1586 = vsel %vm322, %v1515, 0
        %v1588 = vsel %vm322, %v1517, 0
        %v1591 = vsel %vm431, %v1406, 0
        %1593 = vmatprep.subr.mxu0 0.0
        %1594 = vmatpush1.msra.mxu0 %v1591
        %1595 = vmatprep.subr.mxu0 0.0
        %1596 = vmatpush1.msra.mxu0 0.0
        %1597 = vmatprep.subr.mxu0 0.0
        %1598 = vmatpush1.msra.mxu0 0.0
        %1599 = vmatprep.subr.mxu0 0.0
        %1600 = vmatpush1.msra.mxu0 0.0
        %1601 = vmatprep.subr.mxu0 0.0
        %1602 = vmatpush1.msra.mxu0 0.0
        %1603 = vmatprep.subr.mxu0 0.0
        %1604 = vmatpush1.msra.mxu0 0.0
        %1605 = vmatprep.subr.mxu0 0.0
        %1606 = vmatpush1.msra.mxu0 0.0
        %1607 = vmatprep.subr.mxu0 0.0
        %1608 = vmatpush1.msra.mxu0 0.0
        %1609 = vmatprep.subr.mxu0 0.0
        %1610 = vmatpush1.msra.mxu0 0.0
        %1611 = vmatprep.subr.mxu0 0.0
        %1612 = vmatpush1.msra.mxu0 0.0
        %1613 = vmatprep.subr.mxu0 0.0
        %1614 = vmatpush1.msra.mxu0 0.0
        %1615 = vmatprep.subr.mxu0 0.0
        %1616 = vmatpush1.msra.mxu0 0.0
        %1617 = vmatprep.subr.mxu0 0.0
        %1618 = vmatpush1.msra.mxu0 0.0
        %1619 = vmatprep.subr.mxu0 0.0
        %1620 = vmatpush1.msra.mxu0 0.0
        %1621 = vmatprep.subr.mxu0 0.0
        %1622 = vmatpush1.msra.mxu0 0.0
        %1623 = vmatprep.subr.mxu0 0.0
        %1624 = vmatpush1.msra.mxu0 0.0
        %1625 = vmatprep.subr.mxu0 0.0
        %1626 = vmatpush1.msra.mxu0 0.0
        %1627 = vmatprep.subr.mxu0 0.0
        %1628 = vmatpush1.msra.mxu0 0.0
        %1629 = vmatprep.subr.mxu0 0.0
        %1630 = vmatpush1.msra.mxu0 0.0
        %1631 = vmatprep.subr.mxu0 0.0
        %1632 = vmatpush1.msra.mxu0 0.0
        %1633 = vmatprep.subr.mxu0 0.0
        %1634 = vmatpush1.msra.mxu0 0.0
        %1635 = vmatprep.subr.mxu0 0.0
        %1636 = vmatpush1.msra.mxu0 0.0
        %1637 = vmatprep.subr.mxu0 0.0
        %1638 = vmatpush1.msra.mxu0 0.0
        %1639 = vmatprep.subr.mxu0 0.0
        %1640 = vmatpush1.msra.mxu0 0.0
        %1641 = vmatprep.subr.mxu0 0.0
        %1642 = vmatpush1.msra.mxu0 0.0
        %1643 = vmatprep.subr.mxu0 0.0
        %1644 = vmatpush1.msra.mxu0 0.0
        %1645 = vmatprep.subr.mxu0 0.0
        %1646 = vmatpush1.msra.mxu0 0.0
        %1647 = vmatprep.subr.mxu0 0.0
        %1648 = vmatpush1.msra.mxu0 0.0
        %1649 = vmatprep.subr.mxu0 0.0
        %1650 = vmatpush1.msra.mxu0 0.0
        %1651 = vmatprep.subr.mxu0 0.0
        %1652 = vmatpush1.msra.mxu0 0.0
        %1653 = vmatprep.subr.mxu0 0.0
        %1654 = vmatpush1.msra.mxu0 0.0
        %1655 = vmatprep.subr.mxu0 0.0
        %1656 = vmatpush1.msra.mxu0 0.0
        %1657 = vmatprep.mubr.f32.mxu0 0.0
        %1658 = vmatmul.mubr.f32.gmra.mrb[0].mxu0 %v1518
        %v1659 = vpop.f32.mrb[0].mxu0
        %v1660 = vadd.f32 0.0, %v1659
        %v1661 = vpop.f32.mrb[0].mxu0
        %1662 = vmatprep.mubr.f32.mxu0 0.0
        %1663 = vmatmul.mubr.f32.gmra.mrb[0].mxu0 %v1520
        %v1664 = vpop.f32.mrb[0].mxu0
        %v1665 = vadd.f32 0.0, %v1664
        %v1666 = vpop.f32.mrb[0].mxu0
        %1667 = vmatprep.mubr.f32.mxu0 0.0
        %1668 = vmatmul.mubr.f32.gmra.mrb[0].mxu0 %v1522
        %v1669 = vpop.f32.mrb[0].mxu0
        %v1670 = vadd.f32 0.0, %v1669
        %v1671 = vpop.f32.mrb[0].mxu0
        %1672 = vmatprep.mubr.f32.mxu0 0.0
        %1673 = vmatmul.mubr.f32.gmra.mrb[0].mxu0 %v1524
        %v1674 = vpop.f32.mrb[0].mxu0
        %v1675 = vadd.f32 0.0, %v1674
        %v1676 = vpop.f32.mrb[0].mxu0
        %1677 = vmatprep.mubr.f32.mxu0 0.0
        %1678 = vmatmul.mubr.f32.gmra.mrb[0].mxu0 %v1526
        %v1679 = vpop.f32.mrb[0].mxu0
        %v1680 = vadd.f32 0.0, %v1679
        %v1681 = vpop.f32.mrb[0].mxu0
        %1682 = vmatprep.mubr.f32.mxu0 0.0
        %1683 = vmatmul.mubr.f32.gmra.mrb[0].mxu0 %v1528
        %v1684 = vpop.f32.mrb[0].mxu0
        %v1685 = vadd.f32 0.0, %v1684
        %v1686 = vpop.f32.mrb[0].mxu0
        %1687 = vmatprep.mubr.f32.mxu0 0.0
        %1688 = vmatmul.mubr.f32.gmra.mrb[0].mxu0 %v1530
        %v1689 = vpop.f32.mrb[0].mxu0
        %v1690 = vadd.f32 0.0, %v1689
        %v1691 = vpop.f32.mrb[0].mxu0
        %1692 = vmatprep.mubr.f32.mxu0 0.0
        %1693 = vmatmul.mubr.f32.gmra.mrb[0].mxu0 %v1532
        %v1694 = vpop.f32.mrb[0].mxu0
        %v1695 = vadd.f32 0.0, %v1694
        %v1696 = vpop.f32.mrb[0].mxu0
        %1697 = vmatprep.mubr.f32.mxu0 0.0
        %1698 = vmatmul.mubr.f32.gmra.mrb[0].mxu0 %v1534
        %v1699 = vpop.f32.mrb[0].mxu0
        %v1700 = vadd.f32 0.0, %v1699
        %v1701 = vpop.f32.mrb[0].mxu0
        %1702 = vmatprep.mubr.f32.mxu0 0.0
        %1703 = vmatmul.mubr.f32.gmra.mrb[0].mxu0 %v1536
        %v1704 = vpop.f32.mrb[0].mxu0
        %v1705 = vadd.f32 0.0, %v1704
        %v1706 = vpop.f32.mrb[0].mxu0
        %1707 = vmatprep.mubr.f32.mxu0 0.0
        %1708 = vmatmul.mubr.f32.gmra.mrb[0].mxu0 %v1538
        %v1709 = vpop.f32.mrb[0].mxu0
        %v1710 = vadd.f32 0.0, %v1709
        %v1711 = vpop.f32.mrb[0].mxu0
        %1712 = vmatprep.mubr.f32.mxu0 0.0
        %1713 = vmatmul.mubr.f32.gmra.mrb[0].mxu0 %v1540
        %v1714 = vpop.f32.mrb[0].mxu0
        %v1715 = vadd.f32 0.0, %v1714
        %v1716 = vpop.f32.mrb[0].mxu0
        %1717 = vmatprep.mubr.f32.mxu0 0.0
        %1718 = vmatmul.mubr.f32.gmra.mrb[0].mxu0 %v1542
        %v1719 = vpop.f32.mrb[0].mxu0
        %v1720 = vadd.f32 0.0, %v1719
        %v1721 = vpop.f32.mrb[0].mxu0
        %1722 = vmatprep.mubr.f32.mxu0 0.0
        %1723 = vmatmul.mubr.f32.gmra.mrb[0].mxu0 %v1544
        %v1724 = vpop.f32.mrb[0].mxu0
        %v1725 = vadd.f32 0.0, %v1724
        %v1726 = vpop.f32.mrb[0].mxu0
        %1727 = vmatprep.mubr.f32.mxu0 0.0
        %1728 = vmatmul.mubr.f32.gmra.mrb[0].mxu0 %v1546
        %v1729 = vpop.f32.mrb[0].mxu0
        %v1730 = vadd.f32 0.0, %v1729
        %v1731 = vpop.f32.mrb[0].mxu0
        %1732 = vmatprep.mubr.f32.mxu0 0.0
        %1733 = vmatmul.mubr.f32.gmra.mrb[0].mxu0 %v1548
        %v1734 = vpop.f32.mrb[0].mxu0
        %v1735 = vadd.f32 0.0, %v1734
        %v1736 = vpop.f32.mrb[0].mxu0
        %1737 = vmatprep.mubr.f32.mxu0 0.0
        %1738 = vmatmul.mubr.f32.gmra.mrb[0].mxu0 %v1550
        %v1739 = vpop.f32.mrb[0].mxu0
        %v1740 = vadd.f32 0.0, %v1739
        %v1741 = vpop.f32.mrb[0].mxu0
        %1742 = vmatprep.mubr.f32.mxu0 0.0
        %1743 = vmatmul.mubr.f32.gmra.mrb[0].mxu0 %v1552
        %v1744 = vpop.f32.mrb[0].mxu0
        %v1745 = vadd.f32 0.0, %v1744
        %v1746 = vpop.f32.mrb[0].mxu0
        %1747 = vmatprep.mubr.f32.mxu0 0.0
        %1748 = vmatmul.mubr.f32.gmra.mrb[0].mxu0 %v1554
        %v1749 = vpop.f32.mrb[0].mxu0
        %v1750 = vadd.f32 0.0, %v1749
        %v1751 = vpop.f32.mrb[0].mxu0
        %1752 = vmatprep.mubr.f32.mxu0 0.0
        %1753 = vmatmul.mubr.f32.gmra.mrb[0].mxu0 %v1556
        %v1754 = vpop.f32.mrb[0].mxu0
        %v1755 = vadd.f32 0.0, %v1754
        %v1756 = vpop.f32.mrb[0].mxu0
        %1757 = vmatprep.mubr.f32.mxu0 0.0
        %1758 = vmatmul.mubr.f32.gmra.mrb[0].mxu0 %v1558
        %v1759 = vpop.f32.mrb[0].mxu0
        %v1760 = vadd.f32 0.0, %v1759
        %v1761 = vpop.f32.mrb[0].mxu0
        %1762 = vmatprep.mubr.f32.mxu0 0.0
        %1763 = vmatmul.mubr.f32.gmra.mrb[0].mxu0 %v1560
        %v1764 = vpop.f32.mrb[0].mxu0
        %v1765 = vadd.f32 0.0, %v1764
        %v1766 = vpop.f32.mrb[0].mxu0
        %1767 = vmatprep.mubr.f32.mxu0 0.0
        %1768 = vmatmul.mubr.f32.gmra.mrb[0].mxu0 %v1562
        %v1769 = vpop.f32.mrb[0].mxu0
        %v1770 = vadd.f32 0.0, %v1769
        %v1771 = vpop.f32.mrb[0].mxu0
        %1772 = vmatprep.mubr.f32.mxu0 0.0
        %1773 = vmatmul.mubr.f32.gmra.mrb[0].mxu0 %v1564
        %v1774 = vpop.f32.mrb[0].mxu0
        %v1775 = vadd.f32 0.0, %v1774
        %v1776 = vpop.f32.mrb[0].mxu0
        %1777 = vmatprep.mubr.f32.mxu0 0.0
        %1778 = vmatmul.mubr.f32.gmra.mrb[0].mxu0 %v1566
        %v1779 = vpop.f32.mrb[0].mxu0
        %v1780 = vadd.f32 0.0, %v1779
        %v1781 = vpop.f32.mrb[0].mxu0
        %1782 = vmatprep.mubr.f32.mxu0 0.0
        %1783 = vmatmul.mubr.f32.gmra.mrb[0].mxu0 %v1568
        %v1784 = vpop.f32.mrb[0].mxu0
        %v1785 = vadd.f32 0.0, %v1784
        %v1786 = vpop.f32.mrb[0].mxu0
        %1787 = vmatprep.mubr.f32.mxu0 0.0
        %1788 = vmatmul.mubr.f32.gmra.mrb[0].mxu0 %v1570
        %v1789 = vpop.f32.mrb[0].mxu0
        %v1790 = vadd.f32 0.0, %v1789
        %v1791 = vpop.f32.mrb[0].mxu0
        %1792 = vmatprep.mubr.f32.mxu0 0.0
        %1793 = vmatmul.mubr.f32.gmra.mrb[0].mxu0 %v1572
        %v1794 = vpop.f32.mrb[0].mxu0
        %v1795 = vadd.f32 0.0, %v1794
        %v1796 = vpop.f32.mrb[0].mxu0
        %1797 = vmatprep.mubr.f32.mxu0 0.0
        %1798 = vmatmul.mubr.f32.gmra.mrb[0].mxu0 %v1574
        %v1799 = vpop.f32.mrb[0].mxu0
        %v1800 = vadd.f32 0.0, %v1799
        %v1801 = vpop.f32.mrb[0].mxu0
        %1802 = vmatprep.mubr.f32.mxu0 0.0
        %1803 = vmatmul.mubr.f32.gmra.mrb[0].mxu0 %v1576
        %v1804 = vpop.f32.mrb[0].mxu0
        %v1805 = vadd.f32 0.0, %v1804
        %v1806 = vpop.f32.mrb[0].mxu0
        %1807 = vmatprep.mubr.f32.mxu0 0.0
        %1808 = vmatmul.mubr.f32.gmra.mrb[0].mxu0 %v1578
        %v1809 = vpop.f32.mrb[0].mxu0
        %v1810 = vadd.f32 0.0, %v1809
        %v1811 = vpop.f32.mrb[0].mxu0
        %1812 = vmatprep.mubr.f32.mxu0 0.0
        %1813 = vmatmul.mubr.f32.gmra.mrb[0].mxu0 %v1580
        %v1814 = vpop.f32.mrb[0].mxu0
        %v1815 = vadd.f32 0.0, %v1814
        %v1816 = vpop.f32.mrb[0].mxu0
        %1817 = vmatprep.mubr.f32.mxu0 0.0
        %1818 = vmatmul.mubr.f32.gmra.mrb[0].mxu0 %v1582
        %v1819 = vpop.f32.mrb[0].mxu0
        %v1820 = vadd.f32 0.0, %v1819
        %v1821 = vpop.f32.mrb[0].mxu0
        %1822 = vmatprep.mubr.f32.mxu0 0.0
        %1823 = vmatmul.mubr.f32.gmra.mrb[0].mxu0 %v1584
        %v1824 = vpop.f32.mrb[0].mxu0
        %v1825 = vadd.f32 0.0, %v1824
        %v1826 = vpop.f32.mrb[0].mxu0
        %1827 = vmatprep.mubr.f32.mxu0 0.0
        %1828 = vmatmul.mubr.f32.gmra.mrb[0].mxu0 %v1586
        %v1829 = vpop.f32.mrb[0].mxu0
        %v1830 = vadd.f32 0.0, %v1829
        %v1831 = vpop.f32.mrb[0].mxu0
        %1832 = vmatprep.mubr.f32.mxu0 0.0
        %1833 = vmatmul.mubr.f32.gmra.mrb[0].mxu0 %v1588
        %v1834 = vpop.f32.mrb[0].mxu0
        %v1835 = vadd.f32 0.0, %v1834
        %v1836 = vpop.f32.mrb[0].mxu0
        %1837 = vdwg.mxu0
        %v1838 = vld [vmem:[#allocation2] sm:$0xff]
        %v1839 = vld [vmem:[#allocation2 + $0x8] sm:$0xff]
        %v1840 = vld [vmem:[#allocation2 + $0x10] sm:$0xff]
        %v1841 = vld [vmem:[#allocation2 + $0x18] sm:$0xff]
        %v1842 = vld [vmem:[#allocation2 + $0x20] sm:$0xff]
        %v1843 = vld [vmem:[#allocation2 + $0x28] sm:$0xff]
        %v1844 = vld [vmem:[#allocation2 + $0x30] sm:$0xff]
        %v1845 = vld [vmem:[#allocation2 + $0x38] sm:$0xff]
        %v1846 = vld [vmem:[#allocation2 + $0x40] sm:$0xff]
        %v1847 = vld [vmem:[#allocation2 + $0x48] sm:$0xff]
        %v1848 = vld [vmem:[#allocation2 + $0x50] sm:$0xff]
        %v1849 = vld [vmem:[#allocation2 + $0x58] sm:$0xff]
        %v1850 = vld [vmem:[#allocation2 + $0x60] sm:$0xff]
        %v1851 = vld [vmem:[#allocation2 + $0x68] sm:$0xff]
        %v1852 = vld [vmem:[#allocation2 + $0x70] sm:$0xff]
        %v1853 = vld [vmem:[#allocation2 + $0x78] sm:$0xff]
        %v1854 = vld [vmem:[#allocation2 + $0x80] sm:$0xff]
        %v1855 = vld [vmem:[#allocation2 + $0x88] sm:$0xff]
        %v1856 = vld [vmem:[#allocation2 + $0x90] sm:$0xff]
        %v1857 = vld [vmem:[#allocation2 + $0x98] sm:$0xff]
        %v1858 = vld [vmem:[#allocation2 + $0xa0] sm:$0xff]
        %v1859 = vld [vmem:[#allocation2 + $0xa8] sm:$0xff]
        %v1860 = vld [vmem:[#allocation2 + $0xb0] sm:$0xff]
        %v1861 = vld [vmem:[#allocation2 + $0xb8] sm:$0xff]
        %v1862 = vld [vmem:[#allocation2 + $0xc0] sm:$0xff]
        %v1863 = vld [vmem:[#allocation2 + $0xc8] sm:$0xff]
        %v1864 = vld [vmem:[#allocation2 + $0xd0] sm:$0xff]
        %v1865 = vld [vmem:[#allocation2 + $0xd8] sm:$0xff]
        %v1866 = vld [vmem:[#allocation2 + $0xe0] sm:$0xff]
        %v1867 = vld [vmem:[#allocation2 + $0xe8] sm:$0xff]
        %v1868 = vld [vmem:[#allocation2 + $0xf0] sm:$0xff]
        %v1869 = vld [vmem:[#allocation2 + $0xf8] sm:$0xff]
        %v1870 = vld [vmem:[#allocation2 + $0x100] sm:$0xff]
        %v1871 = vld [vmem:[#allocation2 + $0x108] sm:$0xff]
        %v1872 = vld [vmem:[#allocation2 + $0x110] sm:$0xff]
        %v1873 = vld [vmem:[#allocation2 + $0x118] sm:$0xff]
        %v1874 = vadd.f32 %v1838, %v1660
        %v1875 = vadd.f32 %v1839, %v1665
        %v1876 = vadd.f32 %v1840, %v1670
        %v1877 = vadd.f32 %v1841, %v1675
        %v1878 = vadd.f32 %v1842, %v1680
        %v1879 = vadd.f32 %v1843, %v1685
        %v1880 = vadd.f32 %v1844, %v1690
        %v1881 = vadd.f32 %v1845, %v1695
        %v1882 = vadd.f32 %v1846, %v1700
        %v1883 = vadd.f32 %v1847, %v1705
        %v1884 = vadd.f32 %v1848, %v1710
        %v1885 = vadd.f32 %v1849, %v1715
        %v1886 = vadd.f32 %v1850, %v1720
        %v1887 = vadd.f32 %v1851, %v1725
        %v1888 = vadd.f32 %v1852, %v1730
        %v1889 = vadd.f32 %v1853, %v1735
        %v1890 = vadd.f32 %v1854, %v1740
        %v1891 = vadd.f32 %v1855, %v1745
        %v1892 = vadd.f32 %v1856, %v1750
        %v1893 = vadd.f32 %v1857, %v1755
        %v1894 = vadd.f32 %v1858, %v1760
        %v1895 = vadd.f32 %v1859, %v1765
        %v1896 = vadd.f32 %v1860, %v1770
        %v1897 = vadd.f32 %v1861, %v1775
        %v1898 = vadd.f32 %v1862, %v1780
        %v1899 = vadd.f32 %v1863, %v1785
        %v1900 = vadd.f32 %v1864, %v1790
        %v1901 = vadd.f32 %v1865, %v1795
        %v1902 = vadd.f32 %v1866, %v1800
        %v1903 = vadd.f32 %v1867, %v1805
        %v1904 = vadd.f32 %v1868, %v1810
        %v1905 = vadd.f32 %v1869, %v1815
        %v1906 = vadd.f32 %v1870, %v1820
        %v1907 = vadd.f32 %v1871, %v1825
        %v1908 = vadd.f32 %v1872, %v1830
        %v1909 = vadd.f32 %v1873, %v1835
        %1910 = vst [vmem:[#allocation2] sm:$0xff] %v1874
        %1911 = vst [vmem:[#allocation2 + $0x8] sm:$0xff] %v1875
        %1912 = vst [vmem:[#allocation2 + $0x10] sm:$0xff] %v1876
        %1913 = vst [vmem:[#allocation2 + $0x18] sm:$0xff] %v1877
        %1914 = vst [vmem:[#allocation2 + $0x20] sm:$0xff] %v1878
        %1915 = vst [vmem:[#allocation2 + $0x28] sm:$0xff] %v1879
        %1916 = vst [vmem:[#allocation2 + $0x30] sm:$0xff] %v1880
        %1917 = vst [vmem:[#allocation2 + $0x38] sm:$0xff] %v1881
        %1918 = vst [vmem:[#allocation2 + $0x40] sm:$0xff] %v1882
        %1919 = vst [vmem:[#allocation2 + $0x48] sm:$0xff] %v1883
        %1920 = vst [vmem:[#allocation2 + $0x50] sm:$0xff] %v1884
        %1921 = vst [vmem:[#allocation2 + $0x58] sm:$0xff] %v1885
        %1922 = vst [vmem:[#allocation2 + $0x60] sm:$0xff] %v1886
        %1923 = vst [vmem:[#allocation2 + $0x68] sm:$0xff] %v1887
        %1924 = vst [vmem:[#allocation2 + $0x70] sm:$0xff] %v1888
        %1925 = vst [vmem:[#allocation2 + $0x78] sm:$0xff] %v1889
        %1926 = vst [vmem:[#allocation2 + $0x80] sm:$0xff] %v1890
        %1927 = vst [vmem:[#allocation2 + $0x88] sm:$0xff] %v1891
        %1928 = vst [vmem:[#allocation2 + $0x90] sm:$0xff] %v1892
        %1929 = vst [vmem:[#allocation2 + $0x98] sm:$0xff] %v1893
        %1930 = vst [vmem:[#allocation2 + $0xa0] sm:$0xff] %v1894
        %1931 = vst [vmem:[#allocation2 + $0xa8] sm:$0xff] %v1895
        %1932 = vst [vmem:[#allocation2 + $0xb0] sm:$0xff] %v1896
        %1933 = vst [vmem:[#allocation2 + $0xb8] sm:$0xff] %v1897
        %1934 = vst [vmem:[#allocation2 + $0xc0] sm:$0xff] %v1898
        %1935 = vst [vmem:[#allocation2 + $0xc8] sm:$0xff] %v1899
        %1936 = vst [vmem:[#allocation2 + $0xd0] sm:$0xff] %v1900
        %1937 = vst [vmem:[#allocation2 + $0xd8] sm:$0xff] %v1901
        %1938 = vst [vmem:[#allocation2 + $0xe0] sm:$0xff] %v1902
        %1939 = vst [vmem:[#allocation2 + $0xe8] sm:$0xff] %v1903
        %1940 = vst [vmem:[#allocation2 + $0xf0] sm:$0xff] %v1904
        %1941 = vst [vmem:[#allocation2 + $0xf8] sm:$0xff] %v1905
        %1942 = vst [vmem:[#allocation2 + $0x100] sm:$0xff] %v1906
        %1943 = vst [vmem:[#allocation2 + $0x108] sm:$0xff] %v1907
        %1944 = vst [vmem:[#allocation2 + $0x110] sm:$0xff] %v1908
        %1945 = vst [vmem:[#allocation2 + $0x118] sm:$0xff] %v1909
        %v1946 = vld [vmem:[%s248 + $0x8] sm:$0xe]
        %v1947 = vld [vmem:[%s248 + $0xc] sm:$0xf]
        %v1948 = vld [vmem:[%s248 + $0x10] sm:$0xf]
        %v1949 = vld [vmem:[%s248 + $0x14] sm:$0xf]
        %v1950 = vld [vmem:[%s248 + $0x18] sm:$0xf]
        %v1951 = vld [vmem:[%s248 + $0x1c] sm:$0xf]
        %v1952 = vld [vmem:[%s248 + $0x20] sm:$0xf]
        %v1953 = vld [vmem:[%s248 + $0x24] sm:$0xf]
        %v1954 = vld [vmem:[%s248 + $0x28] sm:$0xf]
        %v1955 = vld [vmem:[%s248 + $0x2c] sm:$0xf]
        %v1956 = vld [vmem:[%s248 + $0x30] sm:$0xf]
        %v1957 = vld [vmem:[%s248 + $0x34] sm:$0xf]
        %v1958 = vld [vmem:[%s248 + $0x38] sm:$0xf]
        %v1959 = vld [vmem:[%s248 + $0x3c] sm:$0xf]
        %v1960 = vld [vmem:[%s248 + $0x40] sm:$0xf]
        %v1961 = vld [vmem:[%s248 + $0x44] sm:$0xf]
        %v1962 = vld [vmem:[%s248 + $0x48] sm:$0xf]
        %v1963 = vld [vmem:[%s248 + $0x4c] sm:$0xf]
        %v1964 = vld [vmem:[%s248 + $0x50] sm:$0xf]
        %v1965 = vld [vmem:[%s248 + $0x54] sm:$0xf]
        %v1966 = vld [vmem:[%s248 + $0x58] sm:$0xf]
        %v1967 = vld [vmem:[%s248 + $0x5c] sm:$0xf]
        %v1968 = vld [vmem:[%s248 + $0x60] sm:$0xf]
        %v1969 = vld [vmem:[%s248 + $0x64] sm:$0xf]
        %v1970 = vld [vmem:[%s248 + $0x68] sm:$0xf]
        %v1971 = vld [vmem:[%s248 + $0x6c] sm:$0xf]
        %v1972 = vld [vmem:[%s248 + $0x70] sm:$0xf]
        %v1973 = vld [vmem:[%s248 + $0x74] sm:$0xf]
        %v1974 = vld [vmem:[%s248 + $0x78] sm:$0xf]
        %v1975 = vld [vmem:[%s248 + $0x7c] sm:$0xf]
        %v1976 = vld [vmem:[%s248 + $0x80] sm:$0xf]
        %v1977 = vld [vmem:[%s248 + $0x84] sm:$0xf]
        %v1978 = vld [vmem:[%s248 + $0x88] sm:$0xf]
        %v1979 = vld [vmem:[%s248 + $0x8c] sm:$0xf]
        %v1980 = vld [vmem:[%s248 + $0x90] sm:$0xf]
        %v1981 = vld [vmem:[%s248 + $0x94] sm:$0xf]
        %v1982 = vld [vmem:[%s248 + $0x98] sm:$0x1]
        %v1983 = vunpack.c.l.bf16 %v1946
        %v1984 = vunpack.c.l.bf16 %v1947
        %v1985 = vunpack.c.l.bf16 %v1948
        %v1986 = vunpack.c.l.bf16 %v1949
        %v1987 = vunpack.c.l.bf16 %v1950
        %v1988 = vunpack.c.l.bf16 %v1951
        %v1989 = vunpack.c.l.bf16 %v1952
        %v1990 = vunpack.c.l.bf16 %v1953
        %v1991 = vunpack.c.l.bf16 %v1954
        %v1992 = vunpack.c.l.bf16 %v1955
        %v1993 = vunpack.c.l.bf16 %v1956
        %v1994 = vunpack.c.l.bf16 %v1957
        %v1995 = vunpack.c.l.bf16 %v1958
        %v1996 = vunpack.c.l.bf16 %v1959
        %v1997 = vunpack.c.l.bf16 %v1960
        %v1998 = vunpack.c.l.bf16 %v1961
        %v1999 = vunpack.c.l.bf16 %v1962
        %v2000 = vunpack.c.l.bf16 %v1963
        %v2001 = vunpack.c.l.bf16 %v1964
        %v2002 = vunpack.c.l.bf16 %v1965
        %v2003 = vunpack.c.l.bf16 %v1966
        %v2004 = vunpack.c.l.bf16 %v1967
        %v2005 = vunpack.c.l.bf16 %v1968
        %v2006 = vunpack.c.l.bf16 %v1969
        %v2007 = vunpack.c.l.bf16 %v1970
        %v2008 = vunpack.c.l.bf16 %v1971
        %v2009 = vunpack.c.l.bf16 %v1972
        %v2010 = vunpack.c.l.bf16 %v1973
        %v2011 = vunpack.c.l.bf16 %v1974
        %v2012 = vunpack.c.l.bf16 %v1975
        %v2013 = vunpack.c.l.bf16 %v1976
        %v2014 = vunpack.c.l.bf16 %v1977
        %v2015 = vunpack.c.l.bf16 %v1978
        %v2016 = vunpack.c.l.bf16 %v1979
        %v2017 = vunpack.c.l.bf16 %v1980
        %v2018 = vunpack.c.l.bf16 %v1981
        %v2019 = vunpack.c.l.bf16 %v1982
        %s2020 = scalar_lea.vmem %s1, 12
        %v2021 = vld [vmem:[%s2020] sm:$0xf]
        %v2059 = vrot.slane %v1983, 2
        %v2060 = vrot.slane %v1984, 2
        %v2061 = vsel %vm1444, %v2059, %v2060
        %v2062 = vrot.slane %v1985, 2
        %v2063 = vsel %vm1444, %v2060, %v2062
        %v2064 = vrot.slane %v1986, 2
        %v2065 = vsel %vm1444, %v2062, %v2064
        %v2066 = vrot.slane %v1987, 2
        %v2067 = vsel %vm1444, %v2064, %v2066
        %v2068 = vrot.slane %v1988, 2
        %v2069 = vsel %vm1444, %v2066, %v2068
        %v2070 = vrot.slane %v1989, 2
        %v2071 = vsel %vm1444, %v2068, %v2070
        %v2072 = vrot.slane %v1990, 2
        %v2073 = vsel %vm1444, %v2070, %v2072
        %v2074 = vrot.slane %v1991, 2
        %v2075 = vsel %vm1444, %v2072, %v2074
        %v2076 = vrot.slane %v1992, 2
        %v2077 = vsel %vm1444, %v2074, %v2076
        %v2078 = vrot.slane %v1993, 2
        %v2079 = vsel %vm1444, %v2076, %v2078
        %v2080 = vrot.slane %v1994, 2
        %v2081 = vsel %vm1444, %v2078, %v2080
        %v2082 = vrot.slane %v1995, 2
        %v2083 = vsel %vm1444, %v2080, %v2082
        %v2084 = vrot.slane %v1996, 2
        %v2085 = vsel %vm1444, %v2082, %v2084
        %v2086 = vrot.slane %v1997, 2
        %v2087 = vsel %vm1444, %v2084, %v2086
        %v2088 = vrot.slane %v1998, 2
        %v2089 = vsel %vm1444, %v2086, %v2088
        %v2090 = vrot.slane %v1999, 2
        %v2091 = vsel %vm1444, %v2088, %v2090
        %v2092 = vrot.slane %v2000, 2
        %v2093 = vsel %vm1444, %v2090, %v2092
        %v2094 = vrot.slane %v2001, 2
        %v2095 = vsel %vm1444, %v2092, %v2094
        %v2096 = vrot.slane %v2002, 2
        %v2097 = vsel %vm1444, %v2094, %v2096
        %v2098 = vrot.slane %v2003, 2
        %v2099 = vsel %vm1444, %v2096, %v2098
        %v2100 = vrot.slane %v2004, 2
        %v2101 = vsel %vm1444, %v2098, %v2100
        %v2102 = vrot.slane %v2005, 2
        %v2103 = vsel %vm1444, %v2100, %v2102
        %v2104 = vrot.slane %v2006, 2
        %v2105 = vsel %vm1444, %v2102, %v2104
        %v2106 = vrot.slane %v2007, 2
        %v2107 = vsel %vm1444, %v2104, %v2106
        %v2108 = vrot.slane %v2008, 2
        %v2109 = vsel %vm1444, %v2106, %v2108
        %v2110 = vrot.slane %v2009, 2
        %v2111 = vsel %vm1444, %v2108, %v2110
        %v2112 = vrot.slane %v2010, 2
        %v2113 = vsel %vm1444, %v2110, %v2112
        %v2114 = vrot.slane %v2011, 2
        %v2115 = vsel %vm1444, %v2112, %v2114
        %v2116 = vrot.slane %v2012, 2
        %v2117 = vsel %vm1444, %v2114, %v2116
        %v2118 = vrot.slane %v2013, 2
        %v2119 = vsel %vm1444, %v2116, %v2118
        %v2120 = vrot.slane %v2014, 2
        %v2121 = vsel %vm1444, %v2118, %v2120
        %v2122 = vrot.slane %v2015, 2
        %v2123 = vsel %vm1444, %v2120, %v2122
        %v2124 = vrot.slane %v2016, 2
        %v2125 = vsel %vm1444, %v2122, %v2124
        %v2126 = vrot.slane %v2017, 2
        %v2127 = vsel %vm1444, %v2124, %v2126
        %v2128 = vrot.slane %v2018, 2
        %v2129 = vsel %vm1444, %v2126, %v2128
        %v2130 = vrot.slane %v2019, 2
        %v2131 = vsel %vm1444, %v2128, %v2130
        %v2132 = vsel %vm322, %v2061, 0
        %v2134 = vsel %vm322, %v2063, 0
        %v2136 = vsel %vm322, %v2065, 0
        %v2138 = vsel %vm322, %v2067, 0
        %v2140 = vsel %vm322, %v2069, 0
        %v2142 = vsel %vm322, %v2071, 0
        %v2144 = vsel %vm322, %v2073, 0
        %v2146 = vsel %vm322, %v2075, 0
        %v2148 = vsel %vm322, %v2077, 0
        %v2150 = vsel %vm322, %v2079, 0
        %v2152 = vsel %vm322, %v2081, 0
        %v2154 = vsel %vm322, %v2083, 0
        %v2156 = vsel %vm322, %v2085, 0
        %v2158 = vsel %vm322, %v2087, 0
        %v2160 = vsel %vm322, %v2089, 0
        %v2162 = vsel %vm322, %v2091, 0
        %v2164 = vsel %vm322, %v2093, 0
        %v2166 = vsel %vm322, %v2095, 0
        %v2168 = vsel %vm322, %v2097, 0
        %v2170 = vsel %vm322, %v2099, 0
        %v2172 = vsel %vm322, %v2101, 0
        %v2174 = vsel %vm322, %v2103, 0
        %v2176 = vsel %vm322, %v2105, 0
        %v2178 = vsel %vm322, %v2107, 0
        %v2180 = vsel %vm322, %v2109, 0
        %v2182 = vsel %vm322, %v2111, 0
        %v2184 = vsel %vm322, %v2113, 0
        %v2186 = vsel %vm322, %v2115, 0
        %v2188 = vsel %vm322, %v2117, 0
        %v2190 = vsel %vm322, %v2119, 0
        %v2192 = vsel %vm322, %v2121, 0
        %v2194 = vsel %vm322, %v2123, 0
        %v2196 = vsel %vm322, %v2125, 0
        %v2198 = vsel %vm322, %v2127, 0
        %v2200 = vsel %vm322, %v2129, 0
        %v2202 = vsel %vm322, %v2131, 0
        %v2205 = vsel %vm431, %v2021, 0
        %2207 = vmatprep.subr.mxu0 0.0
        %2208 = vmatpush1.msra.mxu0 %v2205
        %2209 = vmatprep.subr.mxu0 0.0
        %2210 = vmatpush1.msra.mxu0 0.0
        %2211 = vmatprep.subr.mxu0 0.0
        %2212 = vmatpush1.msra.mxu0 0.0
        %2213 = vmatprep.subr.mxu0 0.0
        %2214 = vmatpush1.msra.mxu0 0.0
        %2215 = vmatprep.subr.mxu0 0.0
        %2216 = vmatpush1.msra.mxu0 0.0
        %2217 = vmatprep.subr.mxu0 0.0
        %2218 = vmatpush1.msra.mxu0 0.0
        %2219 = vmatprep.subr.mxu0 0.0
        %2220 = vmatpush1.msra.mxu0 0.0
        %2221 = vmatprep.subr.mxu0 0.0
        %2222 = vmatpush1.msra.mxu0 0.0
        %2223 = vmatprep.subr.mxu0 0.0
        %2224 = vmatpush1.msra.mxu0 0.0
        %2225 = vmatprep.subr.mxu0 0.0
        %2226 = vmatpush1.msra.mxu0 0.0
        %2227 = vmatprep.subr.mxu0 0.0
        %2228 = vmatpush1.msra.mxu0 0.0
        %2229 = vmatprep.subr.mxu0 0.0
        %2230 = vmatpush1.msra.mxu0 0.0
        %2231 = vmatprep.subr.mxu0 0.0
        %2232 = vmatpush1.msra.mxu0 0.0
        %2233 = vmatprep.subr.mxu0 0.0
        %2234 = vmatpush1.msra.mxu0 0.0
        %2235 = vmatprep.subr.mxu0 0.0
        %2236 = vmatpush1.msra.mxu0 0.0
        %2237 = vmatprep.subr.mxu0 0.0
        %2238 = vmatpush1.msra.mxu0 0.0
        %2239 = vmatprep.subr.mxu0 0.0
        %2240 = vmatpush1.msra.mxu0 0.0
        %2241 = vmatprep.subr.mxu0 0.0
        %2242 = vmatpush1.msra.mxu0 0.0
        %2243 = vmatprep.subr.mxu0 0.0
        %2244 = vmatpush1.msra.mxu0 0.0
        %2245 = vmatprep.subr.mxu0 0.0
        %2246 = vmatpush1.msra.mxu0 0.0
        %2247 = vmatprep.subr.mxu0 0.0
        %2248 = vmatpush1.msra.mxu0 0.0
        %2249 = vmatprep.subr.mxu0 0.0
        %2250 = vmatpush1.msra.mxu0 0.0
        %2251 = vmatprep.subr.mxu0 0.0
        %2252 = vmatpush1.msra.mxu0 0.0
        %2253 = vmatprep.subr.mxu0 0.0
        %2254 = vmatpush1.msra.mxu0 0.0
        %2255 = vmatprep.subr.mxu0 0.0
        %2256 = vmatpush1.msra.mxu0 0.0
        %2257 = vmatprep.subr.mxu0 0.0
        %2258 = vmatpush1.msra.mxu0 0.0
        %2259 = vmatprep.subr.mxu0 0.0
        %2260 = vmatpush1.msra.mxu0 0.0
        %2261 = vmatprep.subr.mxu0 0.0
        %2262 = vmatpush1.msra.mxu0 0.0
        %2263 = vmatprep.subr.mxu0 0.0
        %2264 = vmatpush1.msra.mxu0 0.0
        %2265 = vmatprep.subr.mxu0 0.0
        %2266 = vmatpush1.msra.mxu0 0.0
        %2267 = vmatprep.subr.mxu0 0.0
        %2268 = vmatpush1.msra.mxu0 0.0
        %2269 = vmatprep.subr.mxu0 0.0
        %2270 = vmatpush1.msra.mxu0 0.0
        %2271 = vmatprep.mubr.f32.mxu0 0.0
        %2272 = vmatmul.mubr.f32.gmra.mrb[0].mxu0 %v2132
        %v2273 = vpop.f32.mrb[0].mxu0
        %v2274 = vadd.f32 0.0, %v2273
        %v2275 = vpop.f32.mrb[0].mxu0
        %2276 = vmatprep.mubr.f32.mxu0 0.0
        %2277 = vmatmul.mubr.f32.gmra.mrb[0].mxu0 %v2134
        %v2278 = vpop.f32.mrb[0].mxu0
        %v2279 = vadd.f32 0.0, %v2278
        %v2280 = vpop.f32.mrb[0].mxu0
        %2281 = vmatprep.mubr.f32.mxu0 0.0
        %2282 = vmatmul.mubr.f32.gmra.mrb[0].mxu0 %v2136
        %v2283 = vpop.f32.mrb[0].mxu0
        %v2284 = vadd.f32 0.0, %v2283
        %v2285 = vpop.f32.mrb[0].mxu0
        %2286 = vmatprep.mubr.f32.mxu0 0.0
        %2287 = vmatmul.mubr.f32.gmra.mrb[0].mxu0 %v2138
        %v2288 = vpop.f32.mrb[0].mxu0
        %v2289 = vadd.f32 0.0, %v2288
        %v2290 = vpop.f32.mrb[0].mxu0
        %2291 = vmatprep.mubr.f32.mxu0 0.0
        %2292 = vmatmul.mubr.f32.gmra.mrb[0].mxu0 %v2140
        %v2293 = vpop.f32.mrb[0].mxu0
        %v2294 = vadd.f32 0.0, %v2293
        %v2295 = vpop.f32.mrb[0].mxu0
        %2296 = vmatprep.mubr.f32.mxu0 0.0
        %2297 = vmatmul.mubr.f32.gmra.mrb[0].mxu0 %v2142
        %v2298 = vpop.f32.mrb[0].mxu0
        %v2299 = vadd.f32 0.0, %v2298
        %v2300 = vpop.f32.mrb[0].mxu0
        %2301 = vmatprep.mubr.f32.mxu0 0.0
        %2302 = vmatmul.mubr.f32.gmra.mrb[0].mxu0 %v2144
        %v2303 = vpop.f32.mrb[0].mxu0
        %v2304 = vadd.f32 0.0, %v2303
        %v2305 = vpop.f32.mrb[0].mxu0
        %2306 = vmatprep.mubr.f32.mxu0 0.0
        %2307 = vmatmul.mubr.f32.gmra.mrb[0].mxu0 %v2146
        %v2308 = vpop.f32.mrb[0].mxu0
        %v2309 = vadd.f32 0.0, %v2308
        %v2310 = vpop.f32.mrb[0].mxu0
        %2311 = vmatprep.mubr.f32.mxu0 0.0
        %2312 = vmatmul.mubr.f32.gmra.mrb[0].mxu0 %v2148
        %v2313 = vpop.f32.mrb[0].mxu0
        %v2314 = vadd.f32 0.0, %v2313
        %v2315 = vpop.f32.mrb[0].mxu0
        %2316 = vmatprep.mubr.f32.mxu0 0.0
        %2317 = vmatmul.mubr.f32.gmra.mrb[0].mxu0 %v2150
        %v2318 = vpop.f32.mrb[0].mxu0
        %v2319 = vadd.f32 0.0, %v2318
        %v2320 = vpop.f32.mrb[0].mxu0
        %2321 = vmatprep.mubr.f32.mxu0 0.0
        %2322 = vmatmul.mubr.f32.gmra.mrb[0].mxu0 %v2152
        %v2323 = vpop.f32.mrb[0].mxu0
        %v2324 = vadd.f32 0.0, %v2323
        %v2325 = vpop.f32.mrb[0].mxu0
        %2326 = vmatprep.mubr.f32.mxu0 0.0
        %2327 = vmatmul.mubr.f32.gmra.mrb[0].mxu0 %v2154
        %v2328 = vpop.f32.mrb[0].mxu0
        %v2329 = vadd.f32 0.0, %v2328
        %v2330 = vpop.f32.mrb[0].mxu0
        %2331 = vmatprep.mubr.f32.mxu0 0.0
        %2332 = vmatmul.mubr.f32.gmra.mrb[0].mxu0 %v2156
        %v2333 = vpop.f32.mrb[0].mxu0
        %v2334 = vadd.f32 0.0, %v2333
        %v2335 = vpop.f32.mrb[0].mxu0
        %2336 = vmatprep.mubr.f32.mxu0 0.0
        %2337 = vmatmul.mubr.f32.gmra.mrb[0].mxu0 %v2158
        %v2338 = vpop.f32.mrb[0].mxu0
        %v2339 = vadd.f32 0.0, %v2338
        %v2340 = vpop.f32.mrb[0].mxu0
        %2341 = vmatprep.mubr.f32.mxu0 0.0
        %2342 = vmatmul.mubr.f32.gmra.mrb[0].mxu0 %v2160
        %v2343 = vpop.f32.mrb[0].mxu0
        %v2344 = vadd.f32 0.0, %v2343
        %v2345 = vpop.f32.mrb[0].mxu0
        %2346 = vmatprep.mubr.f32.mxu0 0.0
        %2347 = vmatmul.mubr.f32.gmra.mrb[0].mxu0 %v2162
        %v2348 = vpop.f32.mrb[0].mxu0
        %v2349 = vadd.f32 0.0, %v2348
        %v2350 = vpop.f32.mrb[0].mxu0
        %2351 = vmatprep.mubr.f32.mxu0 0.0
        %2352 = vmatmul.mubr.f32.gmra.mrb[0].mxu0 %v2164
        %v2353 = vpop.f32.mrb[0].mxu0
        %v2354 = vadd.f32 0.0, %v2353
        %v2355 = vpop.f32.mrb[0].mxu0
        %2356 = vmatprep.mubr.f32.mxu0 0.0
        %2357 = vmatmul.mubr.f32.gmra.mrb[0].mxu0 %v2166
        %v2358 = vpop.f32.mrb[0].mxu0
        %v2359 = vadd.f32 0.0, %v2358
        %v2360 = vpop.f32.mrb[0].mxu0
        %2361 = vmatprep.mubr.f32.mxu0 0.0
        %2362 = vmatmul.mubr.f32.gmra.mrb[0].mxu0 %v2168
        %v2363 = vpop.f32.mrb[0].mxu0
        %v2364 = vadd.f32 0.0, %v2363
        %v2365 = vpop.f32.mrb[0].mxu0
        %2366 = vmatprep.mubr.f32.mxu0 0.0
        %2367 = vmatmul.mubr.f32.gmra.mrb[0].mxu0 %v2170
        %v2368 = vpop.f32.mrb[0].mxu0
        %v2369 = vadd.f32 0.0, %v2368
        %v2370 = vpop.f32.mrb[0].mxu0
        %2371 = vmatprep.mubr.f32.mxu0 0.0
        %2372 = vmatmul.mubr.f32.gmra.mrb[0].mxu0 %v2172
        %v2373 = vpop.f32.mrb[0].mxu0
        %v2374 = vadd.f32 0.0, %v2373
        %v2375 = vpop.f32.mrb[0].mxu0
        %2376 = vmatprep.mubr.f32.mxu0 0.0
        %2377 = vmatmul.mubr.f32.gmra.mrb[0].mxu0 %v2174
        %v2378 = vpop.f32.mrb[0].mxu0
        %v2379 = vadd.f32 0.0, %v2378
        %v2380 = vpop.f32.mrb[0].mxu0
        %2381 = vmatprep.mubr.f32.mxu0 0.0
        %2382 = vmatmul.mubr.f32.gmra.mrb[0].mxu0 %v2176
        %v2383 = vpop.f32.mrb[0].mxu0
        %v2384 = vadd.f32 0.0, %v2383
        %v2385 = vpop.f32.mrb[0].mxu0
        %2386 = vmatprep.mubr.f32.mxu0 0.0
        %2387 = vmatmul.mubr.f32.gmra.mrb[0].mxu0 %v2178
        %v2388 = vpop.f32.mrb[0].mxu0
        %v2389 = vadd.f32 0.0, %v2388
        %v2390 = vpop.f32.mrb[0].mxu0
        %2391 = vmatprep.mubr.f32.mxu0 0.0
        %2392 = vmatmul.mubr.f32.gmra.mrb[0].mxu0 %v2180
        %v2393 = vpop.f32.mrb[0].mxu0
        %v2394 = vadd.f32 0.0, %v2393
        %v2395 = vpop.f32.mrb[0].mxu0
        %2396 = vmatprep.mubr.f32.mxu0 0.0
        %2397 = vmatmul.mubr.f32.gmra.mrb[0].mxu0 %v2182
        %v2398 = vpop.f32.mrb[0].mxu0
        %v2399 = vadd.f32 0.0, %v2398
        %v2400 = vpop.f32.mrb[0].mxu0
        %2401 = vmatprep.mubr.f32.mxu0 0.0
        %2402 = vmatmul.mubr.f32.gmra.mrb[0].mxu0 %v2184
        %v2403 = vpop.f32.mrb[0].mxu0
        %v2404 = vadd.f32 0.0, %v2403
        %v2405 = vpop.f32.mrb[0].mxu0
        %2406 = vmatprep.mubr.f32.mxu0 0.0
        %2407 = vmatmul.mubr.f32.gmra.mrb[0].mxu0 %v2186
        %v2408 = vpop.f32.mrb[0].mxu0
        %v2409 = vadd.f32 0.0, %v2408
        %v2410 = vpop.f32.mrb[0].mxu0
        %2411 = vmatprep.mubr.f32.mxu0 0.0
        %2412 = vmatmul.mubr.f32.gmra.mrb[0].mxu0 %v2188
        %v2413 = vpop.f32.mrb[0].mxu0
        %v2414 = vadd.f32 0.0, %v2413
        %v2415 = vpop.f32.mrb[0].mxu0
        %2416 = vmatprep.mubr.f32.mxu0 0.0
        %2417 = vmatmul.mubr.f32.gmra.mrb[0].mxu0 %v2190
        %v2418 = vpop.f32.mrb[0].mxu0
        %v2419 = vadd.f32 0.0, %v2418
        %v2420 = vpop.f32.mrb[0].mxu0
        %2421 = vmatprep.mubr.f32.mxu0 0.0
        %2422 = vmatmul.mubr.f32.gmra.mrb[0].mxu0 %v2192
        %v2423 = vpop.f32.mrb[0].mxu0
        %v2424 = vadd.f32 0.0, %v2423
        %v2425 = vpop.f32.mrb[0].mxu0
        %2426 = vmatprep.mubr.f32.mxu0 0.0
        %2427 = vmatmul.mubr.f32.gmra.mrb[0].mxu0 %v2194
        %v2428 = vpop.f32.mrb[0].mxu0
        %v2429 = vadd.f32 0.0, %v2428
        %v2430 = vpop.f32.mrb[0].mxu0
        %2431 = vmatprep.mubr.f32.mxu0 0.0
        %2432 = vmatmul.mubr.f32.gmra.mrb[0].mxu0 %v2196
        %v2433 = vpop.f32.mrb[0].mxu0
        %v2434 = vadd.f32 0.0, %v2433
        %v2435 = vpop.f32.mrb[0].mxu0
        %2436 = vmatprep.mubr.f32.mxu0 0.0
        %2437 = vmatmul.mubr.f32.gmra.mrb[0].mxu0 %v2198
        %v2438 = vpop.f32.mrb[0].mxu0
        %v2439 = vadd.f32 0.0, %v2438
        %v2440 = vpop.f32.mrb[0].mxu0
        %2441 = vmatprep.mubr.f32.mxu0 0.0
        %2442 = vmatmul.mubr.f32.gmra.mrb[0].mxu0 %v2200
        %v2443 = vpop.f32.mrb[0].mxu0
        %v2444 = vadd.f32 0.0, %v2443
        %v2445 = vpop.f32.mrb[0].mxu0
        %2446 = vmatprep.mubr.f32.mxu0 0.0
        %2447 = vmatmul.mubr.f32.gmra.mrb[0].mxu0 %v2202
        %v2448 = vpop.f32.mrb[0].mxu0
        %v2449 = vadd.f32 0.0, %v2448
        %v2450 = vpop.f32.mrb[0].mxu0
        %2451 = vdwg.mxu0
        %v2452 = vld [vmem:[#allocation2] sm:$0xff]
        %v2453 = vld [vmem:[#allocation2 + $0x8] sm:$0xff]
        %v2454 = vld [vmem:[#allocation2 + $0x10] sm:$0xff]
        %v2455 = vld [vmem:[#allocation2 + $0x18] sm:$0xff]
        %v2456 = vld [vmem:[#allocation2 + $0x20] sm:$0xff]
        %v2457 = vld [vmem:[#allocation2 + $0x28] sm:$0xff]
        %v2458 = vld [vmem:[#allocation2 + $0x30] sm:$0xff]
        %v2459 = vld [vmem:[#allocation2 + $0x38] sm:$0xff]
        %v2460 = vld [vmem:[#allocation2 + $0x40] sm:$0xff]
        %v2461 = vld [vmem:[#allocation2 + $0x48] sm:$0xff]
        %v2462 = vld [vmem:[#allocation2 + $0x50] sm:$0xff]
        %v2463 = vld [vmem:[#allocation2 + $0x58] sm:$0xff]
        %v2464 = vld [vmem:[#allocation2 + $0x60] sm:$0xff]
        %v2465 = vld [vmem:[#allocation2 + $0x68] sm:$0xff]
        %v2466 = vld [vmem:[#allocation2 + $0x70] sm:$0xff]
        %v2467 = vld [vmem:[#allocation2 + $0x78] sm:$0xff]
        %v2468 = vld [vmem:[#allocation2 + $0x80] sm:$0xff]
        %v2469 = vld [vmem:[#allocation2 + $0x88] sm:$0xff]
        %v2470 = vld [vmem:[#allocation2 + $0x90] sm:$0xff]
        %v2471 = vld [vmem:[#allocation2 + $0x98] sm:$0xff]
        %v2472 = vld [vmem:[#allocation2 + $0xa0] sm:$0xff]
        %v2473 = vld [vmem:[#allocation2 + $0xa8] sm:$0xff]
        %v2474 = vld [vmem:[#allocation2 + $0xb0] sm:$0xff]
        %v2475 = vld [vmem:[#allocation2 + $0xb8] sm:$0xff]
        %v2476 = vld [vmem:[#allocation2 + $0xc0] sm:$0xff]
        %v2477 = vld [vmem:[#allocation2 + $0xc8] sm:$0xff]
        %v2478 = vld [vmem:[#allocation2 + $0xd0] sm:$0xff]
        %v2479 = vld [vmem:[#allocation2 + $0xd8] sm:$0xff]
        %v2480 = vld [vmem:[#allocation2 + $0xe0] sm:$0xff]
        %v2481 = vld [vmem:[#allocation2 + $0xe8] sm:$0xff]
        %v2482 = vld [vmem:[#allocation2 + $0xf0] sm:$0xff]
        %v2483 = vld [vmem:[#allocation2 + $0xf8] sm:$0xff]
        %v2484 = vld [vmem:[#allocation2 + $0x100] sm:$0xff]
        %v2485 = vld [vmem:[#allocation2 + $0x108] sm:$0xff]
        %v2486 = vld [vmem:[#allocation2 + $0x110] sm:$0xff]
        %v2487 = vld [vmem:[#allocation2 + $0x118] sm:$0xff]
        %v2488 = vadd.f32 %v2452, %v2274
        %v2489 = vadd.f32 %v2453, %v2279
        %v2490 = vadd.f32 %v2454, %v2284
        %v2491 = vadd.f32 %v2455, %v2289
        %v2492 = vadd.f32 %v2456, %v2294
        %v2493 = vadd.f32 %v2457, %v2299
        %v2494 = vadd.f32 %v2458, %v2304
        %v2495 = vadd.f32 %v2459, %v2309
        %v2496 = vadd.f32 %v2460, %v2314
        %v2497 = vadd.f32 %v2461, %v2319
        %v2498 = vadd.f32 %v2462, %v2324
        %v2499 = vadd.f32 %v2463, %v2329
        %v2500 = vadd.f32 %v2464, %v2334
        %v2501 = vadd.f32 %v2465, %v2339
        %v2502 = vadd.f32 %v2466, %v2344
        %v2503 = vadd.f32 %v2467, %v2349
        %v2504 = vadd.f32 %v2468, %v2354
        %v2505 = vadd.f32 %v2469, %v2359
        %v2506 = vadd.f32 %v2470, %v2364
        %v2507 = vadd.f32 %v2471, %v2369
        %v2508 = vadd.f32 %v2472, %v2374
        %v2509 = vadd.f32 %v2473, %v2379
        %v2510 = vadd.f32 %v2474, %v2384
        %v2511 = vadd.f32 %v2475, %v2389
        %v2512 = vadd.f32 %v2476, %v2394
        %v2513 = vadd.f32 %v2477, %v2399
        %v2514 = vadd.f32 %v2478, %v2404
        %v2515 = vadd.f32 %v2479, %v2409
        %v2516 = vadd.f32 %v2480, %v2414
        %v2517 = vadd.f32 %v2481, %v2419
        %v2518 = vadd.f32 %v2482, %v2424
        %v2519 = vadd.f32 %v2483, %v2429
        %v2520 = vadd.f32 %v2484, %v2434
        %v2521 = vadd.f32 %v2485, %v2439
        %v2522 = vadd.f32 %v2486, %v2444
        %v2523 = vadd.f32 %v2487, %v2449
        %2524 = vst [vmem:[#allocation2] sm:$0xff] %v2488
        %2525 = vst [vmem:[#allocation2 + $0x8] sm:$0xff] %v2489
        %2526 = vst [vmem:[#allocation2 + $0x10] sm:$0xff] %v2490
        %2527 = vst [vmem:[#allocation2 + $0x18] sm:$0xff] %v2491
        %2528 = vst [vmem:[#allocation2 + $0x20] sm:$0xff] %v2492
        %2529 = vst [vmem:[#allocation2 + $0x28] sm:$0xff] %v2493
        %2530 = vst [vmem:[#allocation2 + $0x30] sm:$0xff] %v2494
        %2531 = vst [vmem:[#allocation2 + $0x38] sm:$0xff] %v2495
        %2532 = vst [vmem:[#allocation2 + $0x40] sm:$0xff] %v2496
        %2533 = vst [vmem:[#allocation2 + $0x48] sm:$0xff] %v2497
        %2534 = vst [vmem:[#allocation2 + $0x50] sm:$0xff] %v2498
        %2535 = vst [vmem:[#allocation2 + $0x58] sm:$0xff] %v2499
        %2536 = vst [vmem:[#allocation2 + $0x60] sm:$0xff] %v2500
        %2537 = vst [vmem:[#allocation2 + $0x68] sm:$0xff] %v2501
        %2538 = vst [vmem:[#allocation2 + $0x70] sm:$0xff] %v2502
        %2539 = vst [vmem:[#allocation2 + $0x78] sm:$0xff] %v2503
        %2540 = vst [vmem:[#allocation2 + $0x80] sm:$0xff] %v2504
        %2541 = vst [vmem:[#allocation2 + $0x88] sm:$0xff] %v2505
        %2542 = vst [vmem:[#allocation2 + $0x90] sm:$0xff] %v2506
        %2543 = vst [vmem:[#allocation2 + $0x98] sm:$0xff] %v2507
        %2544 = vst [vmem:[#allocation2 + $0xa0] sm:$0xff] %v2508
        %2545 = vst [vmem:[#allocation2 + $0xa8] sm:$0xff] %v2509
        %2546 = vst [vmem:[#allocation2 + $0xb0] sm:$0xff] %v2510
        %2547 = vst [vmem:[#allocation2 + $0xb8] sm:$0xff] %v2511
        %2548 = vst [vmem:[#allocation2 + $0xc0] sm:$0xff] %v2512
        %2549 = vst [vmem:[#allocation2 + $0xc8] sm:$0xff] %v2513
        %2550 = vst [vmem:[#allocation2 + $0xd0] sm:$0xff] %v2514
        %2551 = vst [vmem:[#allocation2 + $0xd8] sm:$0xff] %v2515
        %2552 = vst [vmem:[#allocation2 + $0xe0] sm:$0xff] %v2516
        %2553 = vst [vmem:[#allocation2 + $0xe8] sm:$0xff] %v2517
        %2554 = vst [vmem:[#allocation2 + $0xf0] sm:$0xff] %v2518
        %2555 = vst [vmem:[#allocation2 + $0xf8] sm:$0xff] %v2519
        %2556 = vst [vmem:[#allocation2 + $0x100] sm:$0xff] %v2520
        %2557 = vst [vmem:[#allocation2 + $0x108] sm:$0xff] %v2521
        %2558 = vst [vmem:[#allocation2 + $0x110] sm:$0xff] %v2522
        %2559 = vst [vmem:[#allocation2 + $0x118] sm:$0xff] %v2523
        %v2560 = vld [vmem:[%s248 + $0x8] sm:$0xe]
        %v2561 = vld [vmem:[%s248 + $0xc] sm:$0xf]
        %v2562 = vld [vmem:[%s248 + $0x10] sm:$0xf]
        %v2563 = vld [vmem:[%s248 + $0x14] sm:$0xf]
        %v2564 = vld [vmem:[%s248 + $0x18] sm:$0xf]
        %v2565 = vld [vmem:[%s248 + $0x1c] sm:$0xf]
        %v2566 = vld [vmem:[%s248 + $0x20] sm:$0xf]
        %v2567 = vld [vmem:[%s248 + $0x24] sm:$0xf]
        %v2568 = vld [vmem:[%s248 + $0x28] sm:$0xf]
        %v2569 = vld [vmem:[%s248 + $0x2c] sm:$0xf]
        %v2570 = vld [vmem:[%s248 + $0x30] sm:$0xf]
        %v2571 = vld [vmem:[%s248 + $0x34] sm:$0xf]
        %v2572 = vld [vmem:[%s248 + $0x38] sm:$0xf]
        %v2573 = vld [vmem:[%s248 + $0x3c] sm:$0xf]
        %v2574 = vld [vmem:[%s248 + $0x40] sm:$0xf]
        %v2575 = vld [vmem:[%s248 + $0x44] sm:$0xf]
        %v2576 = vld [vmem:[%s248 + $0x48] sm:$0xf]
        %v2577 = vld [vmem:[%s248 + $0x4c] sm:$0xf]
        %v2578 = vld [vmem:[%s248 + $0x50] sm:$0xf]
        %v2579 = vld [vmem:[%s248 + $0x54] sm:$0xf]
        %v2580 = vld [vmem:[%s248 + $0x58] sm:$0xf]
        %v2581 = vld [vmem:[%s248 + $0x5c] sm:$0xf]
        %v2582 = vld [vmem:[%s248 + $0x60] sm:$0xf]
        %v2583 = vld [vmem:[%s248 + $0x64] sm:$0xf]
        %v2584 = vld [vmem:[%s248 + $0x68] sm:$0xf]
        %v2585 = vld [vmem:[%s248 + $0x6c] sm:$0xf]
        %v2586 = vld [vmem:[%s248 + $0x70] sm:$0xf]
        %v2587 = vld [vmem:[%s248 + $0x74] sm:$0xf]
        %v2588 = vld [vmem:[%s248 + $0x78] sm:$0xf]
        %v2589 = vld [vmem:[%s248 + $0x7c] sm:$0xf]
        %v2590 = vld [vmem:[%s248 + $0x80] sm:$0xf]
        %v2591 = vld [vmem:[%s248 + $0x84] sm:$0xf]
        %v2592 = vld [vmem:[%s248 + $0x88] sm:$0xf]
        %v2593 = vld [vmem:[%s248 + $0x8c] sm:$0xf]
        %v2594 = vld [vmem:[%s248 + $0x90] sm:$0xf]
        %v2595 = vld [vmem:[%s248 + $0x94] sm:$0xf]
        %v2596 = vld [vmem:[%s248 + $0x98] sm:$0x3]
        %v2597 = vunpack.c.l.bf16 %v2560
        %v2598 = vunpack.c.l.bf16 %v2561
        %v2599 = vunpack.c.l.bf16 %v2562
        %v2600 = vunpack.c.l.bf16 %v2563
        %v2601 = vunpack.c.l.bf16 %v2564
        %v2602 = vunpack.c.l.bf16 %v2565
        %v2603 = vunpack.c.l.bf16 %v2566
        %v2604 = vunpack.c.l.bf16 %v2567
        %v2605 = vunpack.c.l.bf16 %v2568
        %v2606 = vunpack.c.l.bf16 %v2569
        %v2607 = vunpack.c.l.bf16 %v2570
        %v2608 = vunpack.c.l.bf16 %v2571
        %v2609 = vunpack.c.l.bf16 %v2572
        %v2610 = vunpack.c.l.bf16 %v2573
        %v2611 = vunpack.c.l.bf16 %v2574
        %v2612 = vunpack.c.l.bf16 %v2575
        %v2613 = vunpack.c.l.bf16 %v2576
        %v2614 = vunpack.c.l.bf16 %v2577
        %v2615 = vunpack.c.l.bf16 %v2578
        %v2616 = vunpack.c.l.bf16 %v2579
        %v2617 = vunpack.c.l.bf16 %v2580
        %v2618 = vunpack.c.l.bf16 %v2581
        %v2619 = vunpack.c.l.bf16 %v2582
        %v2620 = vunpack.c.l.bf16 %v2583
        %v2621 = vunpack.c.l.bf16 %v2584
        %v2622 = vunpack.c.l.bf16 %v2585
        %v2623 = vunpack.c.l.bf16 %v2586
        %v2624 = vunpack.c.l.bf16 %v2587
        %v2625 = vunpack.c.l.bf16 %v2588
        %v2626 = vunpack.c.l.bf16 %v2589
        %v2627 = vunpack.c.l.bf16 %v2590
        %v2628 = vunpack.c.l.bf16 %v2591
        %v2629 = vunpack.c.l.bf16 %v2592
        %v2630 = vunpack.c.l.bf16 %v2593
        %v2631 = vunpack.c.l.bf16 %v2594
        %v2632 = vunpack.c.l.bf16 %v2595
        %v2633 = vunpack.c.l.bf16 %v2596
        %s2634 = scalar_lea.vmem %s1, 16
        %v2635 = vld [vmem:[%s2634] sm:$0xf]
        %vm2673 = vcmask 1044480
        %v2674 = vrot.slane %v2597, 3
        %v2675 = vrot.slane %v2598, 3
        %v2676 = vsel %vm2673, %v2674, %v2675
        %v2677 = vrot.slane %v2599, 3
        %v2678 = vsel %vm2673, %v2675, %v2677
        %v2679 = vrot.slane %v2600, 3
        %v2680 = vsel %vm2673, %v2677, %v2679
        %v2681 = vrot.slane %v2601, 3
        %v2682 = vsel %vm2673, %v2679, %v2681
        %v2683 = vrot.slane %v2602, 3
        %v2684 = vsel %vm2673, %v2681, %v2683
        %v2685 = vrot.slane %v2603, 3
        %v2686 = vsel %vm2673, %v2683, %v2685
        %v2687 = vrot.slane %v2604, 3
        %v2688 = vsel %vm2673, %v2685, %v2687
        %v2689 = vrot.slane %v2605, 3
        %v2690 = vsel %vm2673, %v2687, %v2689
        %v2691 = vrot.slane %v2606, 3
        %v2692 = vsel %vm2673, %v2689, %v2691
        %v2693 = vrot.slane %v2607, 3
        %v2694 = vsel %vm2673, %v2691, %v2693
        %v2695 = vrot.slane %v2608, 3
        %v2696 = vsel %vm2673, %v2693, %v2695
        %v2697 = vrot.slane %v2609, 3
        %v2698 = vsel %vm2673, %v2695, %v2697
        %v2699 = vrot.slane %v2610, 3
        %v2700 = vsel %vm2673, %v2697, %v2699
        %v2701 = vrot.slane %v2611, 3
        %v2702 = vsel %vm2673, %v2699, %v2701
        %v2703 = vrot.slane %v2612, 3
        %v2704 = vsel %vm2673, %v2701, %v2703
        %v2705 = vrot.slane %v2613, 3
        %v2706 = vsel %vm2673, %v2703, %v2705
        %v2707 = vrot.slane %v2614, 3
        %v2708 = vsel %vm2673, %v2705, %v2707
        %v2709 = vrot.slane %v2615, 3
        %v2710 = vsel %vm2673, %v2707, %v2709
        %v2711 = vrot.slane %v2616, 3
        %v2712 = vsel %vm2673, %v2709, %v2711
        %v2713 = vrot.slane %v2617, 3
        %v2714 = vsel %vm2673, %v2711, %v2713
        %v2715 = vrot.slane %v2618, 3
        %v2716 = vsel %vm2673, %v2713, %v2715
        %v2717 = vrot.slane %v2619, 3
        %v2718 = vsel %vm2673, %v2715, %v2717
        %v2719 = vrot.slane %v2620, 3
        %v2720 = vsel %vm2673, %v2717, %v2719
        %v2721 = vrot.slane %v2621, 3
        %v2722 = vsel %vm2673, %v2719, %v2721
        %v2723 = vrot.slane %v2622, 3
        %v2724 = vsel %vm2673, %v2721, %v2723
        %v2725 = vrot.slane %v2623, 3
        %v2726 = vsel %vm2673, %v2723, %v2725
        %v2727 = vrot.slane %v2624, 3
        %v2728 = vsel %vm2673, %v2725, %v2727
        %v2729 = vrot.slane %v2625, 3
        %v2730 = vsel %vm2673, %v2727, %v2729
        %v2731 = vrot.slane %v2626, 3
        %v2732 = vsel %vm2673, %v2729, %v2731
        %v2733 = vrot.slane %v2627, 3
        %v2734 = vsel %vm2673, %v2731, %v2733
        %v2735 = vrot.slane %v2628, 3
        %v2736 = vsel %vm2673, %v2733, %v2735
        %v2737 = vrot.slane %v2629, 3
        %v2738 = vsel %vm2673, %v2735, %v2737
        %v2739 = vrot.slane %v2630, 3
        %v2740 = vsel %vm2673, %v2737, %v2739
        %v2741 = vrot.slane %v2631, 3
        %v2742 = vsel %vm2673, %v2739, %v2741
        %v2743 = vrot.slane %v2632, 3
        %v2744 = vsel %vm2673, %v2741, %v2743
        %v2745 = vrot.slane %v2633, 3
        %v2746 = vsel %vm2673, %v2743, %v2745
        %v2747 = vsel %vm322, %v2676, 0
        %v2749 = vsel %vm322, %v2678, 0
        %v2751 = vsel %vm322, %v2680, 0
        %v2753 = vsel %vm322, %v2682, 0
        %v2755 = vsel %vm322, %v2684, 0
        %v2757 = vsel %vm322, %v2686, 0
        %v2759 = vsel %vm322, %v2688, 0
        %v2761 = vsel %vm322, %v2690, 0
        %v2763 = vsel %vm322, %v2692, 0
        %v2765 = vsel %vm322, %v2694, 0
        %v2767 = vsel %vm322, %v2696, 0
        %v2769 = vsel %vm322, %v2698, 0
        %v2771 = vsel %vm322, %v2700, 0
        %v2773 = vsel %vm322, %v2702, 0
        %v2775 = vsel %vm322, %v2704, 0
        %v2777 = vsel %vm322, %v2706, 0
        %v2779 = vsel %vm322, %v2708, 0
        %v2781 = vsel %vm322, %v2710, 0
        %v2783 = vsel %vm322, %v2712, 0
        %v2785 = vsel %vm322, %v2714, 0
        %v2787 = vsel %vm322, %v2716, 0
        %v2789 = vsel %vm322, %v2718, 0
        %v2791 = vsel %vm322, %v2720, 0
        %v2793 = vsel %vm322, %v2722, 0
        %v2795 = vsel %vm322, %v2724, 0
        %v2797 = vsel %vm322, %v2726, 0
        %v2799 = vsel %vm322, %v2728, 0
        %v2801 = vsel %vm322, %v2730, 0
        %v2803 = vsel %vm322, %v2732, 0
        %v2805 = vsel %vm322, %v2734, 0
        %v2807 = vsel %vm322, %v2736, 0
        %v2809 = vsel %vm322, %v2738, 0
        %v2811 = vsel %vm322, %v2740, 0
        %v2813 = vsel %vm322, %v2742, 0
        %v2815 = vsel %vm322, %v2744, 0
        %v2817 = vsel %vm322, %v2746, 0
        %v2820 = vsel %vm431, %v2635, 0
        %2822 = vmatprep.subr.mxu0 0.0
        %2823 = vmatpush1.msra.mxu0 %v2820
        %2824 = vmatprep.subr.mxu0 0.0
        %2825 = vmatpush1.msra.mxu0 0.0
        %2826 = vmatprep.subr.mxu0 0.0
        %2827 = vmatpush1.msra.mxu0 0.0
        %2828 = vmatprep.subr.mxu0 0.0
        %2829 = vmatpush1.msra.mxu0 0.0
        %2830 = vmatprep.subr.mxu0 0.0
        %2831 = vmatpush1.msra.mxu0 0.0
        %2832 = vmatprep.subr.mxu0 0.0
        %2833 = vmatpush1.msra.mxu0 0.0
        %2834 = vmatprep.subr.mxu0 0.0
        %2835 = vmatpush1.msra.mxu0 0.0
        %2836 = vmatprep.subr.mxu0 0.0
        %2837 = vmatpush1.msra.mxu0 0.0
        %2838 = vmatprep.subr.mxu0 0.0
        %2839 = vmatpush1.msra.mxu0 0.0
        %2840 = vmatprep.subr.mxu0 0.0
        %2841 = vmatpush1.msra.mxu0 0.0
        %2842 = vmatprep.subr.mxu0 0.0
        %2843 = vmatpush1.msra.mxu0 0.0
        %2844 = vmatprep.subr.mxu0 0.0
        %2845 = vmatpush1.msra.mxu0 0.0
        %2846 = vmatprep.subr.mxu0 0.0
        %2847 = vmatpush1.msra.mxu0 0.0
        %2848 = vmatprep.subr.mxu0 0.0
        %2849 = vmatpush1.msra.mxu0 0.0
        %2850 = vmatprep.subr.mxu0 0.0
        %2851 = vmatpush1.msra.mxu0 0.0
        %2852 = vmatprep.subr.mxu0 0.0
        %2853 = vmatpush1.msra.mxu0 0.0
        %2854 = vmatprep.subr.mxu0 0.0
        %2855 = vmatpush1.msra.mxu0 0.0
        %2856 = vmatprep.subr.mxu0 0.0
        %2857 = vmatpush1.msra.mxu0 0.0
        %2858 = vmatprep.subr.mxu0 0.0
        %2859 = vmatpush1.msra.mxu0 0.0
        %2860 = vmatprep.subr.mxu0 0.0
        %2861 = vmatpush1.msra.mxu0 0.0
        %2862 = vmatprep.subr.mxu0 0.0
        %2863 = vmatpush1.msra.mxu0 0.0
        %2864 = vmatprep.subr.mxu0 0.0
        %2865 = vmatpush1.msra.mxu0 0.0
        %2866 = vmatprep.subr.mxu0 0.0
        %2867 = vmatpush1.msra.mxu0 0.0
        %2868 = vmatprep.subr.mxu0 0.0
        %2869 = vmatpush1.msra.mxu0 0.0
        %2870 = vmatprep.subr.mxu0 0.0
        %2871 = vmatpush1.msra.mxu0 0.0
        %2872 = vmatprep.subr.mxu0 0.0
        %2873 = vmatpush1.msra.mxu0 0.0
        %2874 = vmatprep.subr.mxu0 0.0
        %2875 = vmatpush1.msra.mxu0 0.0
        %2876 = vmatprep.subr.mxu0 0.0
        %2877 = vmatpush1.msra.mxu0 0.0
        %2878 = vmatprep.subr.mxu0 0.0
        %2879 = vmatpush1.msra.mxu0 0.0
        %2880 = vmatprep.subr.mxu0 0.0
        %2881 = vmatpush1.msra.mxu0 0.0
        %2882 = vmatprep.subr.mxu0 0.0
        %2883 = vmatpush1.msra.mxu0 0.0
        %2884 = vmatprep.subr.mxu0 0.0
        %2885 = vmatpush1.msra.mxu0 0.0
        %2886 = vmatprep.mubr.f32.mxu0 0.0
        %2887 = vmatmul.mubr.f32.gmra.mrb[0].mxu0 %v2747
        %v2888 = vpop.f32.mrb[0].mxu0
        %v2889 = vadd.f32 0.0, %v2888
        %v2890 = vpop.f32.mrb[0].mxu0
        %2891 = vmatprep.mubr.f32.mxu0 0.0
        %2892 = vmatmul.mubr.f32.gmra.mrb[0].mxu0 %v2749
        %v2893 = vpop.f32.mrb[0].mxu0
        %v2894 = vadd.f32 0.0, %v2893
        %v2895 = vpop.f32.mrb[0].mxu0
        %2896 = vmatprep.mubr.f32.mxu0 0.0
        %2897 = vmatmul.mubr.f32.gmra.mrb[0].mxu0 %v2751
        %v2898 = vpop.f32.mrb[0].mxu0
        %v2899 = vadd.f32 0.0, %v2898
        %v2900 = vpop.f32.mrb[0].mxu0
        %2901 = vmatprep.mubr.f32.mxu0 0.0
        %2902 = vmatmul.mubr.f32.gmra.mrb[0].mxu0 %v2753
        %v2903 = vpop.f32.mrb[0].mxu0
        %v2904 = vadd.f32 0.0, %v2903
        %v2905 = vpop.f32.mrb[0].mxu0
        %2906 = vmatprep.mubr.f32.mxu0 0.0
        %2907 = vmatmul.mubr.f32.gmra.mrb[0].mxu0 %v2755
        %v2908 = vpop.f32.mrb[0].mxu0
        %v2909 = vadd.f32 0.0, %v2908
        %v2910 = vpop.f32.mrb[0].mxu0
        %2911 = vmatprep.mubr.f32.mxu0 0.0
        %2912 = vmatmul.mubr.f32.gmra.mrb[0].mxu0 %v2757
        %v2913 = vpop.f32.mrb[0].mxu0
        %v2914 = vadd.f32 0.0, %v2913
        %v2915 = vpop.f32.mrb[0].mxu0
        %2916 = vmatprep.mubr.f32.mxu0 0.0
        %2917 = vmatmul.mubr.f32.gmra.mrb[0].mxu0 %v2759
        %v2918 = vpop.f32.mrb[0].mxu0
        %v2919 = vadd.f32 0.0, %v2918
        %v2920 = vpop.f32.mrb[0].mxu0
        %2921 = vmatprep.mubr.f32.mxu0 0.0
        %2922 = vmatmul.mubr.f32.gmra.mrb[0].mxu0 %v2761
        %v2923 = vpop.f32.mrb[0].mxu0
        %v2924 = vadd.f32 0.0, %v2923
        %v2925 = vpop.f32.mrb[0].mxu0
        %2926 = vmatprep.mubr.f32.mxu0 0.0
        %2927 = vmatmul.mubr.f32.gmra.mrb[0].mxu0 %v2763
        %v2928 = vpop.f32.mrb[0].mxu0
        %v2929 = vadd.f32 0.0, %v2928
        %v2930 = vpop.f32.mrb[0].mxu0
        %2931 = vmatprep.mubr.f32.mxu0 0.0
        %2932 = vmatmul.mubr.f32.gmra.mrb[0].mxu0 %v2765
        %v2933 = vpop.f32.mrb[0].mxu0
        %v2934 = vadd.f32 0.0, %v2933
        %v2935 = vpop.f32.mrb[0].mxu0
        %2936 = vmatprep.mubr.f32.mxu0 0.0
        %2937 = vmatmul.mubr.f32.gmra.mrb[0].mxu0 %v2767
        %v2938 = vpop.f32.mrb[0].mxu0
        %v2939 = vadd.f32 0.0, %v2938
        %v2940 = vpop.f32.mrb[0].mxu0
        %2941 = vmatprep.mubr.f32.mxu0 0.0
        %2942 = vmatmul.mubr.f32.gmra.mrb[0].mxu0 %v2769
        %v2943 = vpop.f32.mrb[0].mxu0
        %v2944 = vadd.f32 0.0, %v2943
        %v2945 = vpop.f32.mrb[0].mxu0
        %2946 = vmatprep.mubr.f32.mxu0 0.0
        %2947 = vmatmul.mubr.f32.gmra.mrb[0].mxu0 %v2771
        %v2948 = vpop.f32.mrb[0].mxu0
        %v2949 = vadd.f32 0.0, %v2948
        %v2950 = vpop.f32.mrb[0].mxu0
        %2951 = vmatprep.mubr.f32.mxu0 0.0
        %2952 = vmatmul.mubr.f32.gmra.mrb[0].mxu0 %v2773
        %v2953 = vpop.f32.mrb[0].mxu0
        %v2954 = vadd.f32 0.0, %v2953
        %v2955 = vpop.f32.mrb[0].mxu0
        %2956 = vmatprep.mubr.f32.mxu0 0.0
        %2957 = vmatmul.mubr.f32.gmra.mrb[0].mxu0 %v2775
        %v2958 = vpop.f32.mrb[0].mxu0
        %v2959 = vadd.f32 0.0, %v2958
        %v2960 = vpop.f32.mrb[0].mxu0
        %2961 = vmatprep.mubr.f32.mxu0 0.0
        %2962 = vmatmul.mubr.f32.gmra.mrb[0].mxu0 %v2777
        %v2963 = vpop.f32.mrb[0].mxu0
        %v2964 = vadd.f32 0.0, %v2963
        %v2965 = vpop.f32.mrb[0].mxu0
        %2966 = vmatprep.mubr.f32.mxu0 0.0
        %2967 = vmatmul.mubr.f32.gmra.mrb[0].mxu0 %v2779
        %v2968 = vpop.f32.mrb[0].mxu0
        %v2969 = vadd.f32 0.0, %v2968
        %v2970 = vpop.f32.mrb[0].mxu0
        %2971 = vmatprep.mubr.f32.mxu0 0.0
        %2972 = vmatmul.mubr.f32.gmra.mrb[0].mxu0 %v2781
        %v2973 = vpop.f32.mrb[0].mxu0
        %v2974 = vadd.f32 0.0, %v2973
        %v2975 = vpop.f32.mrb[0].mxu0
        %2976 = vmatprep.mubr.f32.mxu0 0.0
        %2977 = vmatmul.mubr.f32.gmra.mrb[0].mxu0 %v2783
        %v2978 = vpop.f32.mrb[0].mxu0
        %v2979 = vadd.f32 0.0, %v2978
        %v2980 = vpop.f32.mrb[0].mxu0
        %2981 = vmatprep.mubr.f32.mxu0 0.0
        %2982 = vmatmul.mubr.f32.gmra.mrb[0].mxu0 %v2785
        %v2983 = vpop.f32.mrb[0].mxu0
        %v2984 = vadd.f32 0.0, %v2983
        %v2985 = vpop.f32.mrb[0].mxu0
        %2986 = vmatprep.mubr.f32.mxu0 0.0
        %2987 = vmatmul.mubr.f32.gmra.mrb[0].mxu0 %v2787
        %v2988 = vpop.f32.mrb[0].mxu0
        %v2989 = vadd.f32 0.0, %v2988
        %v2990 = vpop.f32.mrb[0].mxu0
        %2991 = vmatprep.mubr.f32.mxu0 0.0
        %2992 = vmatmul.mubr.f32.gmra.mrb[0].mxu0 %v2789
        %v2993 = vpop.f32.mrb[0].mxu0
        %v2994 = vadd.f32 0.0, %v2993
        %v2995 = vpop.f32.mrb[0].mxu0
        %2996 = vmatprep.mubr.f32.mxu0 0.0
        %2997 = vmatmul.mubr.f32.gmra.mrb[0].mxu0 %v2791
        %v2998 = vpop.f32.mrb[0].mxu0
        %v2999 = vadd.f32 0.0, %v2998
        %v3000 = vpop.f32.mrb[0].mxu0
        %3001 = vmatprep.mubr.f32.mxu0 0.0
        %3002 = vmatmul.mubr.f32.gmra.mrb[0].mxu0 %v2793
        %v3003 = vpop.f32.mrb[0].mxu0
        %v3004 = vadd.f32 0.0, %v3003
        %v3005 = vpop.f32.mrb[0].mxu0
        %3006 = vmatprep.mubr.f32.mxu0 0.0
        %3007 = vmatmul.mubr.f32.gmra.mrb[0].mxu0 %v2795
        %v3008 = vpop.f32.mrb[0].mxu0
        %v3009 = vadd.f32 0.0, %v3008
        %v3010 = vpop.f32.mrb[0].mxu0
        %3011 = vmatprep.mubr.f32.mxu0 0.0
        %3012 = vmatmul.mubr.f32.gmra.mrb[0].mxu0 %v2797
        %v3013 = vpop.f32.mrb[0].mxu0
        %v3014 = vadd.f32 0.0, %v3013
        %v3015 = vpop.f32.mrb[0].mxu0
        %3016 = vmatprep.mubr.f32.mxu0 0.0
        %3017 = vmatmul.mubr.f32.gmra.mrb[0].mxu0 %v2799
        %v3018 = vpop.f32.mrb[0].mxu0
        %v3019 = vadd.f32 0.0, %v3018
        %v3020 = vpop.f32.mrb[0].mxu0
        %3021 = vmatprep.mubr.f32.mxu0 0.0
        %3022 = vmatmul.mubr.f32.gmra.mrb[0].mxu0 %v2801
        %v3023 = vpop.f32.mrb[0].mxu0
        %v3024 = vadd.f32 0.0, %v3023
        %v3025 = vpop.f32.mrb[0].mxu0
        %3026 = vmatprep.mubr.f32.mxu0 0.0
        %3027 = vmatmul.mubr.f32.gmra.mrb[0].mxu0 %v2803
        %v3028 = vpop.f32.mrb[0].mxu0
        %v3029 = vadd.f32 0.0, %v3028
        %v3030 = vpop.f32.mrb[0].mxu0
        %3031 = vmatprep.mubr.f32.mxu0 0.0
        %3032 = vmatmul.mubr.f32.gmra.mrb[0].mxu0 %v2805
        %v3033 = vpop.f32.mrb[0].mxu0
        %v3034 = vadd.f32 0.0, %v3033
        %v3035 = vpop.f32.mrb[0].mxu0
        %3036 = vmatprep.mubr.f32.mxu0 0.0
        %3037 = vmatmul.mubr.f32.gmra.mrb[0].mxu0 %v2807
        %v3038 = vpop.f32.mrb[0].mxu0
        %v3039 = vadd.f32 0.0, %v3038
        %v3040 = vpop.f32.mrb[0].mxu0
        %3041 = vmatprep.mubr.f32.mxu0 0.0
        %3042 = vmatmul.mubr.f32.gmra.mrb[0].mxu0 %v2809
        %v3043 = vpop.f32.mrb[0].mxu0
        %v3044 = vadd.f32 0.0, %v3043
        %v3045 = vpop.f32.mrb[0].mxu0
        %3046 = vmatprep.mubr.f32.mxu0 0.0
        %3047 = vmatmul.mubr.f32.gmra.mrb[0].mxu0 %v2811
        %v3048 = vpop.f32.mrb[0].mxu0
        %v3049 = vadd.f32 0.0, %v3048
        %v3050 = vpop.f32.mrb[0].mxu0
        %3051 = vmatprep.mubr.f32.mxu0 0.0
        %3052 = vmatmul.mubr.f32.gmra.mrb[0].mxu0 %v2813
        %v3053 = vpop.f32.mrb[0].mxu0
        %v3054 = vadd.f32 0.0, %v3053
        %v3055 = vpop.f32.mrb[0].mxu0
        %3056 = vmatprep.mubr.f32.mxu0 0.0
        %3057 = vmatmul.mubr.f32.gmra.mrb[0].mxu0 %v2815
        %v3058 = vpop.f32.mrb[0].mxu0
        %v3059 = vadd.f32 0.0, %v3058
        %v3060 = vpop.f32.mrb[0].mxu0
        %3061 = vmatprep.mubr.f32.mxu0 0.0
        %3062 = vmatmul.mubr.f32.gmra.mrb[0].mxu0 %v2817
        %v3063 = vpop.f32.mrb[0].mxu0
        %v3064 = vadd.f32 0.0, %v3063
        %v3065 = vpop.f32.mrb[0].mxu0
        %3066 = vdwg.mxu0
        %v3067 = vld [vmem:[#allocation2] sm:$0xff]
        %v3068 = vld [vmem:[#allocation2 + $0x8] sm:$0xff]
        %v3069 = vld [vmem:[#allocation2 + $0x10] sm:$0xff]
        %v3070 = vld [vmem:[#allocation2 + $0x18] sm:$0xff]
        %v3071 = vld [vmem:[#allocation2 + $0x20] sm:$0xff]
        %v3072 = vld [vmem:[#allocation2 + $0x28] sm:$0xff]
        %v3073 = vld [vmem:[#allocation2 + $0x30] sm:$0xff]
        %v3074 = vld [vmem:[#allocation2 + $0x38] sm:$0xff]
        %v3075 = vld [vmem:[#allocation2 + $0x40] sm:$0xff]
        %v3076 = vld [vmem:[#allocation2 + $0x48] sm:$0xff]
        %v3077 = vld [vmem:[#allocation2 + $0x50] sm:$0xff]
        %v3078 = vld [vmem:[#allocation2 + $0x58] sm:$0xff]
        %v3079 = vld [vmem:[#allocation2 + $0x60] sm:$0xff]
        %v3080 = vld [vmem:[#allocation2 + $0x68] sm:$0xff]
        %v3081 = vld [vmem:[#allocation2 + $0x70] sm:$0xff]
        %v3082 = vld [vmem:[#allocation2 + $0x78] sm:$0xff]
        %v3083 = vld [vmem:[#allocation2 + $0x80] sm:$0xff]
        %v3084 = vld [vmem:[#allocation2 + $0x88] sm:$0xff]
        %v3085 = vld [vmem:[#allocation2 + $0x90] sm:$0xff]
        %v3086 = vld [vmem:[#allocation2 + $0x98] sm:$0xff]
        %v3087 = vld [vmem:[#allocation2 + $0xa0] sm:$0xff]
        %v3088 = vld [vmem:[#allocation2 + $0xa8] sm:$0xff]
        %v3089 = vld [vmem:[#allocation2 + $0xb0] sm:$0xff]
        %v3090 = vld [vmem:[#allocation2 + $0xb8] sm:$0xff]
        %v3091 = vld [vmem:[#allocation2 + $0xc0] sm:$0xff]
        %v3092 = vld [vmem:[#allocation2 + $0xc8] sm:$0xff]
        %v3093 = vld [vmem:[#allocation2 + $0xd0] sm:$0xff]
        %v3094 = vld [vmem:[#allocation2 + $0xd8] sm:$0xff]
        %v3095 = vld [vmem:[#allocation2 + $0xe0] sm:$0xff]
        %v3096 = vld [vmem:[#allocation2 + $0xe8] sm:$0xff]
        %v3097 = vld [vmem:[#allocation2 + $0xf0] sm:$0xff]
        %v3098 = vld [vmem:[#allocation2 + $0xf8] sm:$0xff]
        %v3099 = vld [vmem:[#allocation2 + $0x100] sm:$0xff]
        %v3100 = vld [vmem:[#allocation2 + $0x108] sm:$0xff]
        %v3101 = vld [vmem:[#allocation2 + $0x110] sm:$0xff]
        %v3102 = vld [vmem:[#allocation2 + $0x118] sm:$0xff]
        %v3103 = vadd.f32 %v3067, %v2889
        %v3104 = vadd.f32 %v3068, %v2894
        %v3105 = vadd.f32 %v3069, %v2899
        %v3106 = vadd.f32 %v3070, %v2904
        %v3107 = vadd.f32 %v3071, %v2909
        %v3108 = vadd.f32 %v3072, %v2914
        %v3109 = vadd.f32 %v3073, %v2919
        %v3110 = vadd.f32 %v3074, %v2924
        %v3111 = vadd.f32 %v3075, %v2929
        %v3112 = vadd.f32 %v3076, %v2934
        %v3113 = vadd.f32 %v3077, %v2939
        %v3114 = vadd.f32 %v3078, %v2944
        %v3115 = vadd.f32 %v3079, %v2949
        %v3116 = vadd.f32 %v3080, %v2954
        %v3117 = vadd.f32 %v3081, %v2959
        %v3118 = vadd.f32 %v3082, %v2964
        %v3119 = vadd.f32 %v3083, %v2969
        %v3120 = vadd.f32 %v3084, %v2974
        %v3121 = vadd.f32 %v3085, %v2979
        %v3122 = vadd.f32 %v3086, %v2984
        %v3123 = vadd.f32 %v3087, %v2989
        %v3124 = vadd.f32 %v3088, %v2994
        %v3125 = vadd.f32 %v3089, %v2999
        %v3126 = vadd.f32 %v3090, %v3004
        %v3127 = vadd.f32 %v3091, %v3009
        %v3128 = vadd.f32 %v3092, %v3014
        %v3129 = vadd.f32 %v3093, %v3019
        %v3130 = vadd.f32 %v3094, %v3024
        %v3131 = vadd.f32 %v3095, %v3029
        %v3132 = vadd.f32 %v3096, %v3034
        %v3133 = vadd.f32 %v3097, %v3039
        %v3134 = vadd.f32 %v3098, %v3044
        %v3135 = vadd.f32 %v3099, %v3049
        %v3136 = vadd.f32 %v3100, %v3054
        %v3137 = vadd.f32 %v3101, %v3059
        %v3138 = vadd.f32 %v3102, %v3064
        %3139 = vst [vmem:[#allocation2] sm:$0xff] %v3103
        %3140 = vst [vmem:[#allocation2 + $0x8] sm:$0xff] %v3104
        %3141 = vst [vmem:[#allocation2 + $0x10] sm:$0xff] %v3105
        %3142 = vst [vmem:[#allocation2 + $0x18] sm:$0xff] %v3106
        %3143 = vst [vmem:[#allocation2 + $0x20] sm:$0xff] %v3107
        %3144 = vst [vmem:[#allocation2 + $0x28] sm:$0xff] %v3108
        %3145 = vst [vmem:[#allocation2 + $0x30] sm:$0xff] %v3109
        %3146 = vst [vmem:[#allocation2 + $0x38] sm:$0xff] %v3110
        %3147 = vst [vmem:[#allocation2 + $0x40] sm:$0xff] %v3111
        %3148 = vst [vmem:[#allocation2 + $0x48] sm:$0xff] %v3112
        %3149 = vst [vmem:[#allocation2 + $0x50] sm:$0xff] %v3113
        %3150 = vst [vmem:[#allocation2 + $0x58] sm:$0xff] %v3114
        %3151 = vst [vmem:[#allocation2 + $0x60] sm:$0xff] %v3115
        %3152 = vst [vmem:[#allocation2 + $0x68] sm:$0xff] %v3116
        %3153 = vst [vmem:[#allocation2 + $0x70] sm:$0xff] %v3117
        %3154 = vst [vmem:[#allocation2 + $0x78] sm:$0xff] %v3118
        %3155 = vst [vmem:[#allocation2 + $0x80] sm:$0xff] %v3119
        %3156 = vst [vmem:[#allocation2 + $0x88] sm:$0xff] %v3120
        %3157 = vst [vmem:[#allocation2 + $0x90] sm:$0xff] %v3121
        %3158 = vst [vmem:[#allocation2 + $0x98] sm:$0xff] %v3122
        %3159 = vst [vmem:[#allocation2 + $0xa0] sm:$0xff] %v3123
        %3160 = vst [vmem:[#allocation2 + $0xa8] sm:$0xff] %v3124
        %3161 = vst [vmem:[#allocation2 + $0xb0] sm:$0xff] %v3125
        %3162 = vst [vmem:[#allocation2 + $0xb8] sm:$0xff] %v3126
        %3163 = vst [vmem:[#allocation2 + $0xc0] sm:$0xff] %v3127
        %3164 = vst [vmem:[#allocation2 + $0xc8] sm:$0xff] %v3128
        %3165 = vst [vmem:[#allocation2 + $0xd0] sm:$0xff] %v3129
        %3166 = vst [vmem:[#allocation2 + $0xd8] sm:$0xff] %v3130
        %3167 = vst [vmem:[#allocation2 + $0xe0] sm:$0xff] %v3131
        %3168 = vst [vmem:[#allocation2 + $0xe8] sm:$0xff] %v3132
        %3169 = vst [vmem:[#allocation2 + $0xf0] sm:$0xff] %v3133
        %3170 = vst [vmem:[#allocation2 + $0xf8] sm:$0xff] %v3134
        %3171 = vst [vmem:[#allocation2 + $0x100] sm:$0xff] %v3135
        %3172 = vst [vmem:[#allocation2 + $0x108] sm:$0xff] %v3136
        %3173 = vst [vmem:[#allocation2 + $0x110] sm:$0xff] %v3137
        %3174 = vst [vmem:[#allocation2 + $0x118] sm:$0xff] %v3138
        %v3175 = vld [vmem:[%s248 + $0x8] sm:$0xc]
        %v3176 = vld [vmem:[%s248 + $0xc] sm:$0xf]
        %v3177 = vld [vmem:[%s248 + $0x10] sm:$0xf]
        %v3178 = vld [vmem:[%s248 + $0x14] sm:$0xf]
        %v3179 = vld [vmem:[%s248 + $0x18] sm:$0xf]
        %v3180 = vld [vmem:[%s248 + $0x1c] sm:$0xf]
        %v3181 = vld [vmem:[%s248 + $0x20] sm:$0xf]
        %v3182 = vld [vmem:[%s248 + $0x24] sm:$0xf]
        %v3183 = vld [vmem:[%s248 + $0x28] sm:$0xf]
        %v3184 = vld [vmem:[%s248 + $0x2c] sm:$0xf]
        %v3185 = vld [vmem:[%s248 + $0x30] sm:$0xf]
        %v3186 = vld [vmem:[%s248 + $0x34] sm:$0xf]
        %v3187 = vld [vmem:[%s248 + $0x38] sm:$0xf]
        %v3188 = vld [vmem:[%s248 + $0x3c] sm:$0xf]
        %v3189 = vld [vmem:[%s248 + $0x40] sm:$0xf]
        %v3190 = vld [vmem:[%s248 + $0x44] sm:$0xf]
        %v3191 = vld [vmem:[%s248 + $0x48] sm:$0xf]
        %v3192 = vld [vmem:[%s248 + $0x4c] sm:$0xf]
        %v3193 = vld [vmem:[%s248 + $0x50] sm:$0xf]
        %v3194 = vld [vmem:[%s248 + $0x54] sm:$0xf]
        %v3195 = vld [vmem:[%s248 + $0x58] sm:$0xf]
        %v3196 = vld [vmem:[%s248 + $0x5c] sm:$0xf]
        %v3197 = vld [vmem:[%s248 + $0x60] sm:$0xf]
        %v3198 = vld [vmem:[%s248 + $0x64] sm:$0xf]
        %v3199 = vld [vmem:[%s248 + $0x68] sm:$0xf]
        %v3200 = vld [vmem:[%s248 + $0x6c] sm:$0xf]
        %v3201 = vld [vmem:[%s248 + $0x70] sm:$0xf]
        %v3202 = vld [vmem:[%s248 + $0x74] sm:$0xf]
        %v3203 = vld [vmem:[%s248 + $0x78] sm:$0xf]
        %v3204 = vld [vmem:[%s248 + $0x7c] sm:$0xf]
        %v3205 = vld [vmem:[%s248 + $0x80] sm:$0xf]
        %v3206 = vld [vmem:[%s248 + $0x84] sm:$0xf]
        %v3207 = vld [vmem:[%s248 + $0x88] sm:$0xf]
        %v3208 = vld [vmem:[%s248 + $0x8c] sm:$0xf]
        %v3209 = vld [vmem:[%s248 + $0x90] sm:$0xf]
        %v3210 = vld [vmem:[%s248 + $0x94] sm:$0xf]
        %v3211 = vld [vmem:[%s248 + $0x98] sm:$0x3]
        %v3212 = vunpack.c.l.bf16 %v3175
        %v3213 = vunpack.c.l.bf16 %v3176
        %v3214 = vunpack.c.l.bf16 %v3177
        %v3215 = vunpack.c.l.bf16 %v3178
        %v3216 = vunpack.c.l.bf16 %v3179
        %v3217 = vunpack.c.l.bf16 %v3180
        %v3218 = vunpack.c.l.bf16 %v3181
        %v3219 = vunpack.c.l.bf16 %v3182
        %v3220 = vunpack.c.l.bf16 %v3183
        %v3221 = vunpack.c.l.bf16 %v3184
        %v3222 = vunpack.c.l.bf16 %v3185
        %v3223 = vunpack.c.l.bf16 %v3186
        %v3224 = vunpack.c.l.bf16 %v3187
        %v3225 = vunpack.c.l.bf16 %v3188
        %v3226 = vunpack.c.l.bf16 %v3189
        %v3227 = vunpack.c.l.bf16 %v3190
        %v3228 = vunpack.c.l.bf16 %v3191
        %v3229 = vunpack.c.l.bf16 %v3192
        %v3230 = vunpack.c.l.bf16 %v3193
        %v3231 = vunpack.c.l.bf16 %v3194
        %v3232 = vunpack.c.l.bf16 %v3195
        %v3233 = vunpack.c.l.bf16 %v3196
        %v3234 = vunpack.c.l.bf16 %v3197
        %v3235 = vunpack.c.l.bf16 %v3198
        %v3236 = vunpack.c.l.bf16 %v3199
        %v3237 = vunpack.c.l.bf16 %v3200
        %v3238 = vunpack.c.l.bf16 %v3201
        %v3239 = vunpack.c.l.bf16 %v3202
        %v3240 = vunpack.c.l.bf16 %v3203
        %v3241 = vunpack.c.l.bf16 %v3204
        %v3242 = vunpack.c.l.bf16 %v3205
        %v3243 = vunpack.c.l.bf16 %v3206
        %v3244 = vunpack.c.l.bf16 %v3207
        %v3245 = vunpack.c.l.bf16 %v3208
        %v3246 = vunpack.c.l.bf16 %v3209
        %v3247 = vunpack.c.l.bf16 %v3210
        %v3248 = vunpack.c.l.bf16 %v3211
        %s3249 = scalar_lea.vmem %s1, 20
        %v3250 = vld [vmem:[%s3249] sm:$0xf]
        %v3288 = vrot.slane %v3212, 4
        %v3289 = vrot.slane %v3213, 4
        %v3290 = vsel %vm431, %v3288, %v3289
        %v3291 = vrot.slane %v3214, 4
        %v3292 = vsel %vm431, %v3289, %v3291
        %v3293 = vrot.slane %v3215, 4
        %v3294 = vsel %vm431, %v3291, %v3293
        %v3295 = vrot.slane %v3216, 4
        %v3296 = vsel %vm431, %v3293, %v3295
        %v3297 = vrot.slane %v3217, 4
        %v3298 = vsel %vm431, %v3295, %v3297
        %v3299 = vrot.slane %v3218, 4
        %v3300 = vsel %vm431, %v3297, %v3299
        %v3301 = vrot.slane %v3219, 4
        %v3302 = vsel %vm431, %v3299, %v3301
        %v3303 = vrot.slane %v3220, 4
        %v3304 = vsel %vm431, %v3301, %v3303
        %v3305 = vrot.slane %v3221, 4
        %v3306 = vsel %vm431, %v3303, %v3305
        %v3307 = vrot.slane %v3222, 4
        %v3308 = vsel %vm431, %v3305, %v3307
        %v3309 = vrot.slane %v3223, 4
        %v3310 = vsel %vm431, %v3307, %v3309
        %v3311 = vrot.slane %v3224, 4
        %v3312 = vsel %vm431, %v3309, %v3311
        %v3313 = vrot.slane %v3225, 4
        %v3314 = vsel %vm431, %v3311, %v3313
        %v3315 = vrot.slane %v3226, 4
        %v3316 = vsel %vm431, %v3313, %v3315
        %v3317 = vrot.slane %v3227, 4
        %v3318 = vsel %vm431, %v3315, %v3317
        %v3319 = vrot.slane %v3228, 4
        %v3320 = vsel %vm431, %v3317, %v3319
        %v3321 = vrot.slane %v3229, 4
        %v3322 = vsel %vm431, %v3319, %v3321
        %v3323 = vrot.slane %v3230, 4
        %v3324 = vsel %vm431, %v3321, %v3323
        %v3325 = vrot.slane %v3231, 4
        %v3326 = vsel %vm431, %v3323, %v3325
        %v3327 = vrot.slane %v3232, 4
        %v3328 = vsel %vm431, %v3325, %v3327
        %v3329 = vrot.slane %v3233, 4
        %v3330 = vsel %vm431, %v3327, %v3329
        %v3331 = vrot.slane %v3234, 4
        %v3332 = vsel %vm431, %v3329, %v3331
        %v3333 = vrot.slane %v3235, 4
        %v3334 = vsel %vm431, %v3331, %v3333
        %v3335 = vrot.slane %v3236, 4
        %v3336 = vsel %vm431, %v3333, %v3335
        %v3337 = vrot.slane %v3237, 4
        %v3338 = vsel %vm431, %v3335, %v3337
        %v3339 = vrot.slane %v3238, 4
        %v3340 = vsel %vm431, %v3337, %v3339
        %v3341 = vrot.slane %v3239, 4
        %v3342 = vsel %vm431, %v3339, %v3341
        %v3343 = vrot.slane %v3240, 4
        %v3344 = vsel %vm431, %v3341, %v3343
        %v3345 = vrot.slane %v3241, 4
        %v3346 = vsel %vm431, %v3343, %v3345
        %v3347 = vrot.slane %v3242, 4
        %v3348 = vsel %vm431, %v3345, %v3347
        %v3349 = vrot.slane %v3243, 4
        %v3350 = vsel %vm431, %v3347, %v3349
        %v3351 = vrot.slane %v3244, 4
        %v3352 = vsel %vm431, %v3349, %v3351
        %v3353 = vrot.slane %v3245, 4
        %v3354 = vsel %vm431, %v3351, %v3353
        %v3355 = vrot.slane %v3246, 4
        %v3356 = vsel %vm431, %v3353, %v3355
        %v3357 = vrot.slane %v3247, 4
        %v3358 = vsel %vm431, %v3355, %v3357
        %v3359 = vrot.slane %v3248, 4
        %v3360 = vsel %vm431, %v3357, %v3359
        %v3361 = vsel %vm322, %v3290, 0
        %v3363 = vsel %vm322, %v3292, 0
        %v3365 = vsel %vm322, %v3294, 0
        %v3367 = vsel %vm322, %v3296, 0
        %v3369 = vsel %vm322, %v3298, 0
        %v3371 = vsel %vm322, %v3300, 0
        %v3373 = vsel %vm322, %v3302, 0
        %v3375 = vsel %vm322, %v3304, 0
        %v3377 = vsel %vm322, %v3306, 0
        %v3379 = vsel %vm322, %v3308, 0
        %v3381 = vsel %vm322, %v3310, 0
        %v3383 = vsel %vm322, %v3312, 0
        %v3385 = vsel %vm322, %v3314, 0
        %v3387 = vsel %vm322, %v3316, 0
        %v3389 = vsel %vm322, %v3318, 0
        %v3391 = vsel %vm322, %v3320, 0
        %v3393 = vsel %vm322, %v3322, 0
        %v3395 = vsel %vm322, %v3324, 0
        %v3397 = vsel %vm322, %v3326, 0
        %v3399 = vsel %vm322, %v3328, 0
        %v3401 = vsel %vm322, %v3330, 0
        %v3403 = vsel %vm322, %v3332, 0
        %v3405 = vsel %vm322, %v3334, 0
        %v3407 = vsel %vm322, %v3336, 0
        %v3409 = vsel %vm322, %v3338, 0
        %v3411 = vsel %vm322, %v3340, 0
        %v3413 = vsel %vm322, %v3342, 0
        %v3415 = vsel %vm322, %v3344, 0
        %v3417 = vsel %vm322, %v3346, 0
        %v3419 = vsel %vm322, %v3348, 0
        %v3421 = vsel %vm322, %v3350, 0
        %v3423 = vsel %vm322, %v3352, 0
        %v3425 = vsel %vm322, %v3354, 0
        %v3427 = vsel %vm322, %v3356, 0
        %v3429 = vsel %vm322, %v3358, 0
        %v3431 = vsel %vm322, %v3360, 0
        %v3434 = vsel %vm431, %v3250, 0
        %3436 = vmatprep.subr.mxu0 0.0
        %3437 = vmatpush1.msra.mxu0 %v3434
        %3438 = vmatprep.subr.mxu0 0.0
        %3439 = vmatpush1.msra.mxu0 0.0
        %3440 = vmatprep.subr.mxu0 0.0
        %3441 = vmatpush1.msra.mxu0 0.0
        %3442 = vmatprep.subr.mxu0 0.0
        %3443 = vmatpush1.msra.mxu0 0.0
        %3444 = vmatprep.subr.mxu0 0.0
        %3445 = vmatpush1.msra.mxu0 0.0
        %3446 = vmatprep.subr.mxu0 0.0
        %3447 = vmatpush1.msra.mxu0 0.0
        %3448 = vmatprep.subr.mxu0 0.0
        %3449 = vmatpush1.msra.mxu0 0.0
        %3450 = vmatprep.subr.mxu0 0.0
        %3451 = vmatpush1.msra.mxu0 0.0
        %3452 = vmatprep.subr.mxu0 0.0
        %3453 = vmatpush1.msra.mxu0 0.0
        %3454 = vmatprep.subr.mxu0 0.0
        %3455 = vmatpush1.msra.mxu0 0.0
        %3456 = vmatprep.subr.mxu0 0.0
        %3457 = vmatpush1.msra.mxu0 0.0
        %3458 = vmatprep.subr.mxu0 0.0
        %3459 = vmatpush1.msra.mxu0 0.0
        %3460 = vmatprep.subr.mxu0 0.0
        %3461 = vmatpush1.msra.mxu0 0.0
        %3462 = vmatprep.subr.mxu0 0.0
        %3463 = vmatpush1.msra.mxu0 0.0
        %3464 = vmatprep.subr.mxu0 0.0
        %3465 = vmatpush1.msra.mxu0 0.0
        %3466 = vmatprep.subr.mxu0 0.0
        %3467 = vmatpush1.msra.mxu0 0.0
        %3468 = vmatprep.subr.mxu0 0.0
        %3469 = vmatpush1.msra.mxu0 0.0
        %3470 = vmatprep.subr.mxu0 0.0
        %3471 = vmatpush1.msra.mxu0 0.0
        %3472 = vmatprep.subr.mxu0 0.0
        %3473 = vmatpush1.msra.mxu0 0.0
        %3474 = vmatprep.subr.mxu0 0.0
        %3475 = vmatpush1.msra.mxu0 0.0
        %3476 = vmatprep.subr.mxu0 0.0
        %3477 = vmatpush1.msra.mxu0 0.0
        %3478 = vmatprep.subr.mxu0 0.0
        %3479 = vmatpush1.msra.mxu0 0.0
        %3480 = vmatprep.subr.mxu0 0.0
        %3481 = vmatpush1.msra.mxu0 0.0
        %3482 = vmatprep.subr.mxu0 0.0
        %3483 = vmatpush1.msra.mxu0 0.0
        %3484 = vmatprep.subr.mxu0 0.0
        %3485 = vmatpush1.msra.mxu0 0.0
        %3486 = vmatprep.subr.mxu0 0.0
        %3487 = vmatpush1.msra.mxu0 0.0
        %3488 = vmatprep.subr.mxu0 0.0
        %3489 = vmatpush1.msra.mxu0 0.0
        %3490 = vmatprep.subr.mxu0 0.0
        %3491 = vmatpush1.msra.mxu0 0.0
        %3492 = vmatprep.subr.mxu0 0.0
        %3493 = vmatpush1.msra.mxu0 0.0
        %3494 = vmatprep.subr.mxu0 0.0
        %3495 = vmatpush1.msra.mxu0 0.0
        %3496 = vmatprep.subr.mxu0 0.0
        %3497 = vmatpush1.msra.mxu0 0.0
        %3498 = vmatprep.subr.mxu0 0.0
        %3499 = vmatpush1.msra.mxu0 0.0
        %3500 = vmatprep.mubr.f32.mxu0 0.0
        %3501 = vmatmul.mubr.f32.gmra.mrb[0].mxu0 %v3361
        %v3502 = vpop.f32.mrb[0].mxu0
        %v3503 = vadd.f32 0.0, %v3502
        %v3504 = vpop.f32.mrb[0].mxu0
        %3505 = vmatprep.mubr.f32.mxu0 0.0
        %3506 = vmatmul.mubr.f32.gmra.mrb[0].mxu0 %v3363
        %v3507 = vpop.f32.mrb[0].mxu0
        %v3508 = vadd.f32 0.0, %v3507
        %v3509 = vpop.f32.mrb[0].mxu0
        %3510 = vmatprep.mubr.f32.mxu0 0.0
        %3511 = vmatmul.mubr.f32.gmra.mrb[0].mxu0 %v3365
        %v3512 = vpop.f32.mrb[0].mxu0
        %v3513 = vadd.f32 0.0, %v3512
        %v3514 = vpop.f32.mrb[0].mxu0
        %3515 = vmatprep.mubr.f32.mxu0 0.0
        %3516 = vmatmul.mubr.f32.gmra.mrb[0].mxu0 %v3367
        %v3517 = vpop.f32.mrb[0].mxu0
        %v3518 = vadd.f32 0.0, %v3517
        %v3519 = vpop.f32.mrb[0].mxu0
        %3520 = vmatprep.mubr.f32.mxu0 0.0
        %3521 = vmatmul.mubr.f32.gmra.mrb[0].mxu0 %v3369
        %v3522 = vpop.f32.mrb[0].mxu0
        %v3523 = vadd.f32 0.0, %v3522
        %v3524 = vpop.f32.mrb[0].mxu0
        %3525 = vmatprep.mubr.f32.mxu0 0.0
        %3526 = vmatmul.mubr.f32.gmra.mrb[0].mxu0 %v3371
        %v3527 = vpop.f32.mrb[0].mxu0
        %v3528 = vadd.f32 0.0, %v3527
        %v3529 = vpop.f32.mrb[0].mxu0
        %3530 = vmatprep.mubr.f32.mxu0 0.0
        %3531 = vmatmul.mubr.f32.gmra.mrb[0].mxu0 %v3373
        %v3532 = vpop.f32.mrb[0].mxu0
        %v3533 = vadd.f32 0.0, %v3532
        %v3534 = vpop.f32.mrb[0].mxu0
        %3535 = vmatprep.mubr.f32.mxu0 0.0
        %3536 = vmatmul.mubr.f32.gmra.mrb[0].mxu0 %v3375
        %v3537 = vpop.f32.mrb[0].mxu0
        %v3538 = vadd.f32 0.0, %v3537
        %v3539 = vpop.f32.mrb[0].mxu0
        %3540 = vmatprep.mubr.f32.mxu0 0.0
        %3541 = vmatmul.mubr.f32.gmra.mrb[0].mxu0 %v3377
        %v3542 = vpop.f32.mrb[0].mxu0
        %v3543 = vadd.f32 0.0, %v3542
        %v3544 = vpop.f32.mrb[0].mxu0
        %3545 = vmatprep.mubr.f32.mxu0 0.0
        %3546 = vmatmul.mubr.f32.gmra.mrb[0].mxu0 %v3379
        %v3547 = vpop.f32.mrb[0].mxu0
        %v3548 = vadd.f32 0.0, %v3547
        %v3549 = vpop.f32.mrb[0].mxu0
        %3550 = vmatprep.mubr.f32.mxu0 0.0
        %3551 = vmatmul.mubr.f32.gmra.mrb[0].mxu0 %v3381
        %v3552 = vpop.f32.mrb[0].mxu0
        %v3553 = vadd.f32 0.0, %v3552
        %v3554 = vpop.f32.mrb[0].mxu0
        %3555 = vmatprep.mubr.f32.mxu0 0.0
        %3556 = vmatmul.mubr.f32.gmra.mrb[0].mxu0 %v3383
        %v3557 = vpop.f32.mrb[0].mxu0
        %v3558 = vadd.f32 0.0, %v3557
        %v3559 = vpop.f32.mrb[0].mxu0
        %3560 = vmatprep.mubr.f32.mxu0 0.0
        %3561 = vmatmul.mubr.f32.gmra.mrb[0].mxu0 %v3385
        %v3562 = vpop.f32.mrb[0].mxu0
        %v3563 = vadd.f32 0.0, %v3562
        %v3564 = vpop.f32.mrb[0].mxu0
        %3565 = vmatprep.mubr.f32.mxu0 0.0
        %3566 = vmatmul.mubr.f32.gmra.mrb[0].mxu0 %v3387
        %v3567 = vpop.f32.mrb[0].mxu0
        %v3568 = vadd.f32 0.0, %v3567
        %v3569 = vpop.f32.mrb[0].mxu0
        %3570 = vmatprep.mubr.f32.mxu0 0.0
        %3571 = vmatmul.mubr.f32.gmra.mrb[0].mxu0 %v3389
        %v3572 = vpop.f32.mrb[0].mxu0
        %v3573 = vadd.f32 0.0, %v3572
        %v3574 = vpop.f32.mrb[0].mxu0
        %3575 = vmatprep.mubr.f32.mxu0 0.0
        %3576 = vmatmul.mubr.f32.gmra.mrb[0].mxu0 %v3391
        %v3577 = vpop.f32.mrb[0].mxu0
        %v3578 = vadd.f32 0.0, %v3577
        %v3579 = vpop.f32.mrb[0].mxu0
        %3580 = vmatprep.mubr.f32.mxu0 0.0
        %3581 = vmatmul.mubr.f32.gmra.mrb[0].mxu0 %v3393
        %v3582 = vpop.f32.mrb[0].mxu0
        %v3583 = vadd.f32 0.0, %v3582
        %v3584 = vpop.f32.mrb[0].mxu0
        %3585 = vmatprep.mubr.f32.mxu0 0.0
        %3586 = vmatmul.mubr.f32.gmra.mrb[0].mxu0 %v3395
        %v3587 = vpop.f32.mrb[0].mxu0
        %v3588 = vadd.f32 0.0, %v3587
        %v3589 = vpop.f32.mrb[0].mxu0
        %3590 = vmatprep.mubr.f32.mxu0 0.0
        %3591 = vmatmul.mubr.f32.gmra.mrb[0].mxu0 %v3397
        %v3592 = vpop.f32.mrb[0].mxu0
        %v3593 = vadd.f32 0.0, %v3592
        %v3594 = vpop.f32.mrb[0].mxu0
        %3595 = vmatprep.mubr.f32.mxu0 0.0
        %3596 = vmatmul.mubr.f32.gmra.mrb[0].mxu0 %v3399
        %v3597 = vpop.f32.mrb[0].mxu0
        %v3598 = vadd.f32 0.0, %v3597
        %v3599 = vpop.f32.mrb[0].mxu0
        %3600 = vmatprep.mubr.f32.mxu0 0.0
        %3601 = vmatmul.mubr.f32.gmra.mrb[0].mxu0 %v3401
        %v3602 = vpop.f32.mrb[0].mxu0
        %v3603 = vadd.f32 0.0, %v3602
        %v3604 = vpop.f32.mrb[0].mxu0
        %3605 = vmatprep.mubr.f32.mxu0 0.0
        %3606 = vmatmul.mubr.f32.gmra.mrb[0].mxu0 %v3403
        %v3607 = vpop.f32.mrb[0].mxu0
        %v3608 = vadd.f32 0.0, %v3607
        %v3609 = vpop.f32.mrb[0].mxu0
        %3610 = vmatprep.mubr.f32.mxu0 0.0
        %3611 = vmatmul.mubr.f32.gmra.mrb[0].mxu0 %v3405
        %v3612 = vpop.f32.mrb[0].mxu0
        %v3613 = vadd.f32 0.0, %v3612
        %v3614 = vpop.f32.mrb[0].mxu0
        %3615 = vmatprep.mubr.f32.mxu0 0.0
        %3616 = vmatmul.mubr.f32.gmra.mrb[0].mxu0 %v3407
        %v3617 = vpop.f32.mrb[0].mxu0
        %v3618 = vadd.f32 0.0, %v3617
        %v3619 = vpop.f32.mrb[0].mxu0
        %3620 = vmatprep.mubr.f32.mxu0 0.0
        %3621 = vmatmul.mubr.f32.gmra.mrb[0].mxu0 %v3409
        %v3622 = vpop.f32.mrb[0].mxu0
        %v3623 = vadd.f32 0.0, %v3622
        %v3624 = vpop.f32.mrb[0].mxu0
        %3625 = vmatprep.mubr.f32.mxu0 0.0
        %3626 = vmatmul.mubr.f32.gmra.mrb[0].mxu0 %v3411
        %v3627 = vpop.f32.mrb[0].mxu0
        %v3628 = vadd.f32 0.0, %v3627
        %v3629 = vpop.f32.mrb[0].mxu0
        %3630 = vmatprep.mubr.f32.mxu0 0.0
        %3631 = vmatmul.mubr.f32.gmra.mrb[0].mxu0 %v3413
        %v3632 = vpop.f32.mrb[0].mxu0
        %v3633 = vadd.f32 0.0, %v3632
        %v3634 = vpop.f32.mrb[0].mxu0
        %3635 = vmatprep.mubr.f32.mxu0 0.0
        %3636 = vmatmul.mubr.f32.gmra.mrb[0].mxu0 %v3415
        %v3637 = vpop.f32.mrb[0].mxu0
        %v3638 = vadd.f32 0.0, %v3637
        %v3639 = vpop.f32.mrb[0].mxu0
        %3640 = vmatprep.mubr.f32.mxu0 0.0
        %3641 = vmatmul.mubr.f32.gmra.mrb[0].mxu0 %v3417
        %v3642 = vpop.f32.mrb[0].mxu0
        %v3643 = vadd.f32 0.0, %v3642
        %v3644 = vpop.f32.mrb[0].mxu0
        %3645 = vmatprep.mubr.f32.mxu0 0.0
        %3646 = vmatmul.mubr.f32.gmra.mrb[0].mxu0 %v3419
        %v3647 = vpop.f32.mrb[0].mxu0
        %v3648 = vadd.f32 0.0, %v3647
        %v3649 = vpop.f32.mrb[0].mxu0
        %3650 = vmatprep.mubr.f32.mxu0 0.0
        %3651 = vmatmul.mubr.f32.gmra.mrb[0].mxu0 %v3421
        %v3652 = vpop.f32.mrb[0].mxu0
        %v3653 = vadd.f32 0.0, %v3652
        %v3654 = vpop.f32.mrb[0].mxu0
        %3655 = vmatprep.mubr.f32.mxu0 0.0
        %3656 = vmatmul.mubr.f32.gmra.mrb[0].mxu0 %v3423
        %v3657 = vpop.f32.mrb[0].mxu0
        %v3658 = vadd.f32 0.0, %v3657
        %v3659 = vpop.f32.mrb[0].mxu0
        %3660 = vmatprep.mubr.f32.mxu0 0.0
        %3661 = vmatmul.mubr.f32.gmra.mrb[0].mxu0 %v3425
        %v3662 = vpop.f32.mrb[0].mxu0
        %v3663 = vadd.f32 0.0, %v3662
        %v3664 = vpop.f32.mrb[0].mxu0
        %3665 = vmatprep.mubr.f32.mxu0 0.0
        %3666 = vmatmul.mubr.f32.gmra.mrb[0].mxu0 %v3427
        %v3667 = vpop.f32.mrb[0].mxu0
        %v3668 = vadd.f32 0.0, %v3667
        %v3669 = vpop.f32.mrb[0].mxu0
        %3670 = vmatprep.mubr.f32.mxu0 0.0
        %3671 = vmatmul.mubr.f32.gmra.mrb[0].mxu0 %v3429
        %v3672 = vpop.f32.mrb[0].mxu0
        %v3673 = vadd.f32 0.0, %v3672
        %v3674 = vpop.f32.mrb[0].mxu0
        %3675 = vmatprep.mubr.f32.mxu0 0.0
        %3676 = vmatmul.mubr.f32.gmra.mrb[0].mxu0 %v3431
        %v3677 = vpop.f32.mrb[0].mxu0
        %v3678 = vadd.f32 0.0, %v3677
        %v3679 = vpop.f32.mrb[0].mxu0
        %3680 = vdwg.mxu0
        %v3681 = vld [vmem:[#allocation2] sm:$0xff]
        %v3682 = vld [vmem:[#allocation2 + $0x8] sm:$0xff]
        %v3683 = vld [vmem:[#allocation2 + $0x10] sm:$0xff]
        %v3684 = vld [vmem:[#allocation2 + $0x18] sm:$0xff]
        %v3685 = vld [vmem:[#allocation2 + $0x20] sm:$0xff]
        %v3686 = vld [vmem:[#allocation2 + $0x28] sm:$0xff]
        %v3687 = vld [vmem:[#allocation2 + $0x30] sm:$0xff]
        %v3688 = vld [vmem:[#allocation2 + $0x38] sm:$0xff]
        %v3689 = vld [vmem:[#allocation2 + $0x40] sm:$0xff]
        %v3690 = vld [vmem:[#allocation2 + $0x48] sm:$0xff]
        %v3691 = vld [vmem:[#allocation2 + $0x50] sm:$0xff]
        %v3692 = vld [vmem:[#allocation2 + $0x58] sm:$0xff]
        %v3693 = vld [vmem:[#allocation2 + $0x60] sm:$0xff]
        %v3694 = vld [vmem:[#allocation2 + $0x68] sm:$0xff]
        %v3695 = vld [vmem:[#allocation2 + $0x70] sm:$0xff]
        %v3696 = vld [vmem:[#allocation2 + $0x78] sm:$0xff]
        %v3697 = vld [vmem:[#allocation2 + $0x80] sm:$0xff]
        %v3698 = vld [vmem:[#allocation2 + $0x88] sm:$0xff]
        %v3699 = vld [vmem:[#allocation2 + $0x90] sm:$0xff]
        %v3700 = vld [vmem:[#allocation2 + $0x98] sm:$0xff]
        %v3701 = vld [vmem:[#allocation2 + $0xa0] sm:$0xff]
        %v3702 = vld [vmem:[#allocation2 + $0xa8] sm:$0xff]
        %v3703 = vld [vmem:[#allocation2 + $0xb0] sm:$0xff]
        %v3704 = vld [vmem:[#allocation2 + $0xb8] sm:$0xff]
        %v3705 = vld [vmem:[#allocation2 + $0xc0] sm:$0xff]
        %v3706 = vld [vmem:[#allocation2 + $0xc8] sm:$0xff]
        %v3707 = vld [vmem:[#allocation2 + $0xd0] sm:$0xff]
        %v3708 = vld [vmem:[#allocation2 + $0xd8] sm:$0xff]
        %v3709 = vld [vmem:[#allocation2 + $0xe0] sm:$0xff]
        %v3710 = vld [vmem:[#allocation2 + $0xe8] sm:$0xff]
        %v3711 = vld [vmem:[#allocation2 + $0xf0] sm:$0xff]
        %v3712 = vld [vmem:[#allocation2 + $0xf8] sm:$0xff]
        %v3713 = vld [vmem:[#allocation2 + $0x100] sm:$0xff]
        %v3714 = vld [vmem:[#allocation2 + $0x108] sm:$0xff]
        %v3715 = vld [vmem:[#allocation2 + $0x110] sm:$0xff]
        %v3716 = vld [vmem:[#allocation2 + $0x118] sm:$0xff]
        %v3717 = vadd.f32 %v3681, %v3503
        %v3718 = vadd.f32 %v3682, %v3508
        %v3719 = vadd.f32 %v3683, %v3513
        %v3720 = vadd.f32 %v3684, %v3518
        %v3721 = vadd.f32 %v3685, %v3523
        %v3722 = vadd.f32 %v3686, %v3528
        %v3723 = vadd.f32 %v3687, %v3533
        %v3724 = vadd.f32 %v3688, %v3538
        %v3725 = vadd.f32 %v3689, %v3543
        %v3726 = vadd.f32 %v3690, %v3548
        %v3727 = vadd.f32 %v3691, %v3553
        %v3728 = vadd.f32 %v3692, %v3558
        %v3729 = vadd.f32 %v3693, %v3563
        %v3730 = vadd.f32 %v3694, %v3568
        %v3731 = vadd.f32 %v3695, %v3573
        %v3732 = vadd.f32 %v3696, %v3578
        %v3733 = vadd.f32 %v3697, %v3583
        %v3734 = vadd.f32 %v3698, %v3588
        %v3735 = vadd.f32 %v3699, %v3593
        %v3736 = vadd.f32 %v3700, %v3598
        %v3737 = vadd.f32 %v3701, %v3603
        %v3738 = vadd.f32 %v3702, %v3608
        %v3739 = vadd.f32 %v3703, %v3613
        %v3740 = vadd.f32 %v3704, %v3618
        %v3741 = vadd.f32 %v3705, %v3623
        %v3742 = vadd.f32 %v3706, %v3628
        %v3743 = vadd.f32 %v3707, %v3633
        %v3744 = vadd.f32 %v3708, %v3638
        %v3745 = vadd.f32 %v3709, %v3643
        %v3746 = vadd.f32 %v3710, %v3648
        %v3747 = vadd.f32 %v3711, %v3653
        %v3748 = vadd.f32 %v3712, %v3658
        %v3749 = vadd.f32 %v3713, %v3663
        %v3750 = vadd.f32 %v3714, %v3668
        %v3751 = vadd.f32 %v3715, %v3673
        %v3752 = vadd.f32 %v3716, %v3678
        %3753 = vst [vmem:[#allocation2] sm:$0xff] %v3717
        %3754 = vst [vmem:[#allocation2 + $0x8] sm:$0xff] %v3718
        %3755 = vst [vmem:[#allocation2 + $0x10] sm:$0xff] %v3719
        %3756 = vst [vmem:[#allocation2 + $0x18] sm:$0xff] %v3720
        %3757 = vst [vmem:[#allocation2 + $0x20] sm:$0xff] %v3721
        %3758 = vst [vmem:[#allocation2 + $0x28] sm:$0xff] %v3722
        %3759 = vst [vmem:[#allocation2 + $0x30] sm:$0xff] %v3723
        %3760 = vst [vmem:[#allocation2 + $0x38] sm:$0xff] %v3724
        %3761 = vst [vmem:[#allocation2 + $0x40] sm:$0xff] %v3725
        %3762 = vst [vmem:[#allocation2 + $0x48] sm:$0xff] %v3726
        %3763 = vst [vmem:[#allocation2 + $0x50] sm:$0xff] %v3727
        %3764 = vst [vmem:[#allocation2 + $0x58] sm:$0xff] %v3728
        %3765 = vst [vmem:[#allocation2 + $0x60] sm:$0xff] %v3729
        %3766 = vst [vmem:[#allocation2 + $0x68] sm:$0xff] %v3730
        %3767 = vst [vmem:[#allocation2 + $0x70] sm:$0xff] %v3731
        %3768 = vst [vmem:[#allocation2 + $0x78] sm:$0xff] %v3732
        %3769 = vst [vmem:[#allocation2 + $0x80] sm:$0xff] %v3733
        %3770 = vst [vmem:[#allocation2 + $0x88] sm:$0xff] %v3734
        %3771 = vst [vmem:[#allocation2 + $0x90] sm:$0xff] %v3735
        %3772 = vst [vmem:[#allocation2 + $0x98] sm:$0xff] %v3736
        %3773 = vst [vmem:[#allocation2 + $0xa0] sm:$0xff] %v3737
        %3774 = vst [vmem:[#allocation2 + $0xa8] sm:$0xff] %v3738
        %3775 = vst [vmem:[#allocation2 + $0xb0] sm:$0xff] %v3739
        %3776 = vst [vmem:[#allocation2 + $0xb8] sm:$0xff] %v3740
        %3777 = vst [vmem:[#allocation2 + $0xc0] sm:$0xff] %v3741
        %3778 = vst [vmem:[#allocation2 + $0xc8] sm:$0xff] %v3742
        %3779 = vst [vmem:[#allocation2 + $0xd0] sm:$0xff] %v3743
        %3780 = vst [vmem:[#allocation2 + $0xd8] sm:$0xff] %v3744
        %3781 = vst [vmem:[#allocation2 + $0xe0] sm:$0xff] %v3745
        %3782 = vst [vmem:[#allocation2 + $0xe8] sm:$0xff] %v3746
        %3783 = vst [vmem:[#allocation2 + $0xf0] sm:$0xff] %v3747
        %3784 = vst [vmem:[#allocation2 + $0xf8] sm:$0xff] %v3748
        %3785 = vst [vmem:[#allocation2 + $0x100] sm:$0xff] %v3749
        %3786 = vst [vmem:[#allocation2 + $0x108] sm:$0xff] %v3750
        %3787 = vst [vmem:[#allocation2 + $0x110] sm:$0xff] %v3751
        %3788 = vst [vmem:[#allocation2 + $0x118] sm:$0xff] %v3752
        %v3789 = vld [vmem:[%s248 + $0x10] sm:$0xc]
        %v3790 = vld [vmem:[%s248 + $0x14] sm:$0xf]
        %v3791 = vld [vmem:[%s248 + $0x18] sm:$0xf]
        %v3792 = vld [vmem:[%s248 + $0x1c] sm:$0xf]
        %v3793 = vld [vmem:[%s248 + $0x20] sm:$0xf]
        %v3794 = vld [vmem:[%s248 + $0x24] sm:$0xf]
        %v3795 = vld [vmem:[%s248 + $0x28] sm:$0xf]
        %v3796 = vld [vmem:[%s248 + $0x2c] sm:$0xf]
        %v3797 = vld [vmem:[%s248 + $0x30] sm:$0xf]
        %v3798 = vld [vmem:[%s248 + $0x34] sm:$0xf]
        %v3799 = vld [vmem:[%s248 + $0x38] sm:$0xf]
        %v3800 = vld [vmem:[%s248 + $0x3c] sm:$0xf]
        %v3801 = vld [vmem:[%s248 + $0x40] sm:$0xf]
        %v3802 = vld [vmem:[%s248 + $0x44] sm:$0xf]
        %v3803 = vld [vmem:[%s248 + $0x48] sm:$0xf]
        %v3804 = vld [vmem:[%s248 + $0x4c] sm:$0xf]
        %v3805 = vld [vmem:[%s248 + $0x50] sm:$0xf]
        %v3806 = vld [vmem:[%s248 + $0x54] sm:$0xf]
        %v3807 = vld [vmem:[%s248 + $0x58] sm:$0xf]
        %v3808 = vld [vmem:[%s248 + $0x5c] sm:$0xf]
        %v3809 = vld [vmem:[%s248 + $0x60] sm:$0xf]
        %v3810 = vld [vmem:[%s248 + $0x64] sm:$0xf]
        %v3811 = vld [vmem:[%s248 + $0x68] sm:$0xf]
        %v3812 = vld [vmem:[%s248 + $0x6c] sm:$0xf]
        %v3813 = vld [vmem:[%s248 + $0x70] sm:$0xf]
        %v3814 = vld [vmem:[%s248 + $0x74] sm:$0xf]
        %v3815 = vld [vmem:[%s248 + $0x78] sm:$0xf]
        %v3816 = vld [vmem:[%s248 + $0x7c] sm:$0xf]
        %v3817 = vld [vmem:[%s248 + $0x80] sm:$0xf]
        %v3818 = vld [vmem:[%s248 + $0x84] sm:$0xf]
        %v3819 = vld [vmem:[%s248 + $0x88] sm:$0xf]
        %v3820 = vld [vmem:[%s248 + $0x8c] sm:$0xf]
        %v3821 = vld [vmem:[%s248 + $0x90] sm:$0xf]
        %v3822 = vld [vmem:[%s248 + $0x94] sm:$0xf]
        %v3823 = vld [vmem:[%s248 + $0x98] sm:$0xf]
        %v3824 = vld [vmem:[%s248 + $0x9c] sm:$0xf]
        %v3825 = vld [vmem:[%s248 + $0xa0] sm:$0x3]
        %v3826 = vunpack.c.l.bf16 %v3789
        %v3827 = vunpack.c.l.bf16 %v3790
        %v3828 = vunpack.c.l.bf16 %v3791
        %v3829 = vunpack.c.l.bf16 %v3792
        %v3830 = vunpack.c.l.bf16 %v3793
        %v3831 = vunpack.c.l.bf16 %v3794
        %v3832 = vunpack.c.l.bf16 %v3795
        %v3833 = vunpack.c.l.bf16 %v3796
        %v3834 = vunpack.c.l.bf16 %v3797
        %v3835 = vunpack.c.l.bf16 %v3798
        %v3836 = vunpack.c.l.bf16 %v3799
        %v3837 = vunpack.c.l.bf16 %v3800
        %v3838 = vunpack.c.l.bf16 %v3801
        %v3839 = vunpack.c.l.bf16 %v3802
        %v3840 = vunpack.c.l.bf16 %v3803
        %v3841 = vunpack.c.l.bf16 %v3804
        %v3842 = vunpack.c.l.bf16 %v3805
        %v3843 = vunpack.c.l.bf16 %v3806
        %v3844 = vunpack.c.l.bf16 %v3807
        %v3845 = vunpack.c.l.bf16 %v3808
        %v3846 = vunpack.c.l.bf16 %v3809
        %v3847 = vunpack.c.l.bf16 %v3810
        %v3848 = vunpack.c.l.bf16 %v3811
        %v3849 = vunpack.c.l.bf16 %v3812
        %v3850 = vunpack.c.l.bf16 %v3813
        %v3851 = vunpack.c.l.bf16 %v3814
        %v3852 = vunpack.c.l.bf16 %v3815
        %v3853 = vunpack.c.l.bf16 %v3816
        %v3854 = vunpack.c.l.bf16 %v3817
        %v3855 = vunpack.c.l.bf16 %v3818
        %v3856 = vunpack.c.l.bf16 %v3819
        %v3857 = vunpack.c.l.bf16 %v3820
        %v3858 = vunpack.c.l.bf16 %v3821
        %v3859 = vunpack.c.l.bf16 %v3822
        %v3860 = vunpack.c.l.bf16 %v3823
        %v3861 = vunpack.c.l.bf16 %v3824
        %v3862 = vunpack.c.l.bf16 %v3825
        %s3863 = scalar_lea.vmem %s1, 24
        %v3864 = vld [vmem:[%s3863] sm:$0xf]
        %v3902 = vrot.slane %v3826, 4
        %v3903 = vrot.slane %v3827, 4
        %v3904 = vsel %vm431, %v3902, %v3903
        %v3905 = vrot.slane %v3828, 4
        %v3906 = vsel %vm431, %v3903, %v3905
        %v3907 = vrot.slane %v3829, 4
        %v3908 = vsel %vm431, %v3905, %v3907
        %v3909 = vrot.slane %v3830, 4
        %v3910 = vsel %vm431, %v3907, %v3909
        %v3911 = vrot.slane %v3831, 4
        %v3912 = vsel %vm431, %v3909, %v3911
        %v3913 = vrot.slane %v3832, 4
        %v3914 = vsel %vm431, %v3911, %v3913
        %v3915 = vrot.slane %v3833, 4
        %v3916 = vsel %vm431, %v3913, %v3915
        %v3917 = vrot.slane %v3834, 4
        %v3918 = vsel %vm431, %v3915, %v3917
        %v3919 = vrot.slane %v3835, 4
        %v3920 = vsel %vm431, %v3917, %v3919
        %v3921 = vrot.slane %v3836, 4
        %v3922 = vsel %vm431, %v3919, %v3921
        %v3923 = vrot.slane %v3837, 4
        %v3924 = vsel %vm431, %v3921, %v3923
        %v3925 = vrot.slane %v3838, 4
        %v3926 = vsel %vm431, %v3923, %v3925
        %v3927 = vrot.slane %v3839, 4
        %v3928 = vsel %vm431, %v3925, %v3927
        %v3929 = vrot.slane %v3840, 4
        %v3930 = vsel %vm431, %v3927, %v3929
        %v3931 = vrot.slane %v3841, 4
        %v3932 = vsel %vm431, %v3929, %v3931
        %v3933 = vrot.slane %v3842, 4
        %v3934 = vsel %vm431, %v3931, %v3933
        %v3935 = vrot.slane %v3843, 4
        %v3936 = vsel %vm431, %v3933, %v3935
        %v3937 = vrot.slane %v3844, 4
        %v3938 = vsel %vm431, %v3935, %v3937
        %v3939 = vrot.slane %v3845, 4
        %v3940 = vsel %vm431, %v3937, %v3939
        %v3941 = vrot.slane %v3846, 4
        %v3942 = vsel %vm431, %v3939, %v3941
        %v3943 = vrot.slane %v3847, 4
        %v3944 = vsel %vm431, %v3941, %v3943
        %v3945 = vrot.slane %v3848, 4
        %v3946 = vsel %vm431, %v3943, %v3945
        %v3947 = vrot.slane %v3849, 4
        %v3948 = vsel %vm431, %v3945, %v3947
        %v3949 = vrot.slane %v3850, 4
        %v3950 = vsel %vm431, %v3947, %v3949
        %v3951 = vrot.slane %v3851, 4
        %v3952 = vsel %vm431, %v3949, %v3951
        %v3953 = vrot.slane %v3852, 4
        %v3954 = vsel %vm431, %v3951, %v3953
        %v3955 = vrot.slane %v3853, 4
        %v3956 = vsel %vm431, %v3953, %v3955
        %v3957 = vrot.slane %v3854, 4
        %v3958 = vsel %vm431, %v3955, %v3957
        %v3959 = vrot.slane %v3855, 4
        %v3960 = vsel %vm431, %v3957, %v3959
        %v3961 = vrot.slane %v3856, 4
        %v3962 = vsel %vm431, %v3959, %v3961
        %v3963 = vrot.slane %v3857, 4
        %v3964 = vsel %vm431, %v3961, %v3963
        %v3965 = vrot.slane %v3858, 4
        %v3966 = vsel %vm431, %v3963, %v3965
        %v3967 = vrot.slane %v3859, 4
        %v3968 = vsel %vm431, %v3965, %v3967
        %v3969 = vrot.slane %v3860, 4
        %v3970 = vsel %vm431, %v3967, %v3969
        %v3971 = vrot.slane %v3861, 4
        %v3972 = vsel %vm431, %v3969, %v3971
        %v3973 = vrot.slane %v3862, 4
        %v3974 = vsel %vm431, %v3971, %v3973
        %v3975 = vsel %vm322, %v3904, 0
        %v3977 = vsel %vm322, %v3906, 0
        %v3979 = vsel %vm322, %v3908, 0
        %v3981 = vsel %vm322, %v3910, 0
        %v3983 = vsel %vm322, %v3912, 0
        %v3985 = vsel %vm322, %v3914, 0
        %v3987 = vsel %vm322, %v3916, 0
        %v3989 = vsel %vm322, %v3918, 0
        %v3991 = vsel %vm322, %v3920, 0
        %v3993 = vsel %vm322, %v3922, 0
        %v3995 = vsel %vm322, %v3924, 0
        %v3997 = vsel %vm322, %v3926, 0
        %v3999 = vsel %vm322, %v3928, 0
        %v4001 = vsel %vm322, %v3930, 0
        %v4003 = vsel %vm322, %v3932, 0
        %v4005 = vsel %vm322, %v3934, 0
        %v4007 = vsel %vm322, %v3936, 0
        %v4009 = vsel %vm322, %v3938, 0
        %v4011 = vsel %vm322, %v3940, 0
        %v4013 = vsel %vm322, %v3942, 0
        %v4015 = vsel %vm322, %v3944, 0
        %v4017 = vsel %vm322, %v3946, 0
        %v4019 = vsel %vm322, %v3948, 0
        %v4021 = vsel %vm322, %v3950, 0
        %v4023 = vsel %vm322, %v3952, 0
        %v4025 = vsel %vm322, %v3954, 0
        %v4027 = vsel %vm322, %v3956, 0
        %v4029 = vsel %vm322, %v3958, 0
        %v4031 = vsel %vm322, %v3960, 0
        %v4033 = vsel %vm322, %v3962, 0
        %v4035 = vsel %vm322, %v3964, 0
        %v4037 = vsel %vm322, %v3966, 0
        %v4039 = vsel %vm322, %v3968, 0
        %v4041 = vsel %vm322, %v3970, 0
        %v4043 = vsel %vm322, %v3972, 0
        %v4045 = vsel %vm322, %v3974, 0
        %v4048 = vsel %vm431, %v3864, 0
        %4050 = vmatprep.subr.mxu0 0.0
        %4051 = vmatpush1.msra.mxu0 %v4048
        %4052 = vmatprep.subr.mxu0 0.0
        %4053 = vmatpush1.msra.mxu0 0.0
        %4054 = vmatprep.subr.mxu0 0.0
        %4055 = vmatpush1.msra.mxu0 0.0
        %4056 = vmatprep.subr.mxu0 0.0
        %4057 = vmatpush1.msra.mxu0 0.0
        %4058 = vmatprep.subr.mxu0 0.0
        %4059 = vmatpush1.msra.mxu0 0.0
        %4060 = vmatprep.subr.mxu0 0.0
        %4061 = vmatpush1.msra.mxu0 0.0
        %4062 = vmatprep.subr.mxu0 0.0
        %4063 = vmatpush1.msra.mxu0 0.0
        %4064 = vmatprep.subr.mxu0 0.0
        %4065 = vmatpush1.msra.mxu0 0.0
        %4066 = vmatprep.subr.mxu0 0.0
        %4067 = vmatpush1.msra.mxu0 0.0
        %4068 = vmatprep.subr.mxu0 0.0
        %4069 = vmatpush1.msra.mxu0 0.0
        %4070 = vmatprep.subr.mxu0 0.0
        %4071 = vmatpush1.msra.mxu0 0.0
        %4072 = vmatprep.subr.mxu0 0.0
        %4073 = vmatpush1.msra.mxu0 0.0
        %4074 = vmatprep.subr.mxu0 0.0
        %4075 = vmatpush1.msra.mxu0 0.0
        %4076 = vmatprep.subr.mxu0 0.0
        %4077 = vmatpush1.msra.mxu0 0.0
        %4078 = vmatprep.subr.mxu0 0.0
        %4079 = vmatpush1.msra.mxu0 0.0
        %4080 = vmatprep.subr.mxu0 0.0
        %4081 = vmatpush1.msra.mxu0 0.0
        %4082 = vmatprep.subr.mxu0 0.0
        %4083 = vmatpush1.msra.mxu0 0.0
        %4084 = vmatprep.subr.mxu0 0.0
        %4085 = vmatpush1.msra.mxu0 0.0
        %4086 = vmatprep.subr.mxu0 0.0
        %4087 = vmatpush1.msra.mxu0 0.0
        %4088 = vmatprep.subr.mxu0 0.0
        %4089 = vmatpush1.msra.mxu0 0.0
        %4090 = vmatprep.subr.mxu0 0.0
        %4091 = vmatpush1.msra.mxu0 0.0
        %4092 = vmatprep.subr.mxu0 0.0
        %4093 = vmatpush1.msra.mxu0 0.0
        %4094 = vmatprep.subr.mxu0 0.0
        %4095 = vmatpush1.msra.mxu0 0.0
        %4096 = vmatprep.subr.mxu0 0.0
        %4097 = vmatpush1.msra.mxu0 0.0
        %4098 = vmatprep.subr.mxu0 0.0
        %4099 = vmatpush1.msra.mxu0 0.0
        %4100 = vmatprep.subr.mxu0 0.0
        %4101 = vmatpush1.msra.mxu0 0.0
        %4102 = vmatprep.subr.mxu0 0.0
        %4103 = vmatpush1.msra.mxu0 0.0
        %4104 = vmatprep.subr.mxu0 0.0
        %4105 = vmatpush1.msra.mxu0 0.0
        %4106 = vmatprep.subr.mxu0 0.0
        %4107 = vmatpush1.msra.mxu0 0.0
        %4108 = vmatprep.subr.mxu0 0.0
        %4109 = vmatpush1.msra.mxu0 0.0
        %4110 = vmatprep.subr.mxu0 0.0
        %4111 = vmatpush1.msra.mxu0 0.0
        %4112 = vmatprep.subr.mxu0 0.0
        %4113 = vmatpush1.msra.mxu0 0.0
        %4114 = vmatprep.mubr.f32.mxu0 0.0
        %4115 = vmatmul.mubr.f32.gmra.mrb[0].mxu0 %v3975
        %v4116 = vpop.f32.mrb[0].mxu0
        %v4117 = vadd.f32 0.0, %v4116
        %v4118 = vpop.f32.mrb[0].mxu0
        %4119 = vmatprep.mubr.f32.mxu0 0.0
        %4120 = vmatmul.mubr.f32.gmra.mrb[0].mxu0 %v3977
        %v4121 = vpop.f32.mrb[0].mxu0
        %v4122 = vadd.f32 0.0, %v4121
        %v4123 = vpop.f32.mrb[0].mxu0
        %4124 = vmatprep.mubr.f32.mxu0 0.0
        %4125 = vmatmul.mubr.f32.gmra.mrb[0].mxu0 %v3979
        %v4126 = vpop.f32.mrb[0].mxu0
        %v4127 = vadd.f32 0.0, %v4126
        %v4128 = vpop.f32.mrb[0].mxu0
        %4129 = vmatprep.mubr.f32.mxu0 0.0
        %4130 = vmatmul.mubr.f32.gmra.mrb[0].mxu0 %v3981
        %v4131 = vpop.f32.mrb[0].mxu0
        %v4132 = vadd.f32 0.0, %v4131
        %v4133 = vpop.f32.mrb[0].mxu0
        %4134 = vmatprep.mubr.f32.mxu0 0.0
        %4135 = vmatmul.mubr.f32.gmra.mrb[0].mxu0 %v3983
        %v4136 = vpop.f32.mrb[0].mxu0
        %v4137 = vadd.f32 0.0, %v4136
        %v4138 = vpop.f32.mrb[0].mxu0
        %4139 = vmatprep.mubr.f32.mxu0 0.0
        %4140 = vmatmul.mubr.f32.gmra.mrb[0].mxu0 %v3985
        %v4141 = vpop.f32.mrb[0].mxu0
        %v4142 = vadd.f32 0.0, %v4141
        %v4143 = vpop.f32.mrb[0].mxu0
        %4144 = vmatprep.mubr.f32.mxu0 0.0
        %4145 = vmatmul.mubr.f32.gmra.mrb[0].mxu0 %v3987
        %v4146 = vpop.f32.mrb[0].mxu0
        %v4147 = vadd.f32 0.0, %v4146
        %v4148 = vpop.f32.mrb[0].mxu0
        %4149 = vmatprep.mubr.f32.mxu0 0.0
        %4150 = vmatmul.mubr.f32.gmra.mrb[0].mxu0 %v3989
        %v4151 = vpop.f32.mrb[0].mxu0
        %v4152 = vadd.f32 0.0, %v4151
        %v4153 = vpop.f32.mrb[0].mxu0
        %4154 = vmatprep.mubr.f32.mxu0 0.0
        %4155 = vmatmul.mubr.f32.gmra.mrb[0].mxu0 %v3991
        %v4156 = vpop.f32.mrb[0].mxu0
        %v4157 = vadd.f32 0.0, %v4156
        %v4158 = vpop.f32.mrb[0].mxu0
        %4159 = vmatprep.mubr.f32.mxu0 0.0
        %4160 = vmatmul.mubr.f32.gmra.mrb[0].mxu0 %v3993
        %v4161 = vpop.f32.mrb[0].mxu0
        %v4162 = vadd.f32 0.0, %v4161
        %v4163 = vpop.f32.mrb[0].mxu0
        %4164 = vmatprep.mubr.f32.mxu0 0.0
        %4165 = vmatmul.mubr.f32.gmra.mrb[0].mxu0 %v3995
        %v4166 = vpop.f32.mrb[0].mxu0
        %v4167 = vadd.f32 0.0, %v4166
        %v4168 = vpop.f32.mrb[0].mxu0
        %4169 = vmatprep.mubr.f32.mxu0 0.0
        %4170 = vmatmul.mubr.f32.gmra.mrb[0].mxu0 %v3997
        %v4171 = vpop.f32.mrb[0].mxu0
        %v4172 = vadd.f32 0.0, %v4171
        %v4173 = vpop.f32.mrb[0].mxu0
        %4174 = vmatprep.mubr.f32.mxu0 0.0
        %4175 = vmatmul.mubr.f32.gmra.mrb[0].mxu0 %v3999
        %v4176 = vpop.f32.mrb[0].mxu0
        %v4177 = vadd.f32 0.0, %v4176
        %v4178 = vpop.f32.mrb[0].mxu0
        %4179 = vmatprep.mubr.f32.mxu0 0.0
        %4180 = vmatmul.mubr.f32.gmra.mrb[0].mxu0 %v4001
        %v4181 = vpop.f32.mrb[0].mxu0
        %v4182 = vadd.f32 0.0, %v4181
        %v4183 = vpop.f32.mrb[0].mxu0
        %4184 = vmatprep.mubr.f32.mxu0 0.0
        %4185 = vmatmul.mubr.f32.gmra.mrb[0].mxu0 %v4003
        %v4186 = vpop.f32.mrb[0].mxu0
        %v4187 = vadd.f32 0.0, %v4186
        %v4188 = vpop.f32.mrb[0].mxu0
        %4189 = vmatprep.mubr.f32.mxu0 0.0
        %4190 = vmatmul.mubr.f32.gmra.mrb[0].mxu0 %v4005
        %v4191 = vpop.f32.mrb[0].mxu0
        %v4192 = vadd.f32 0.0, %v4191
        %v4193 = vpop.f32.mrb[0].mxu0
        %4194 = vmatprep.mubr.f32.mxu0 0.0
        %4195 = vmatmul.mubr.f32.gmra.mrb[0].mxu0 %v4007
        %v4196 = vpop.f32.mrb[0].mxu0
        %v4197 = vadd.f32 0.0, %v4196
        %v4198 = vpop.f32.mrb[0].mxu0
        %4199 = vmatprep.mubr.f32.mxu0 0.0
        %4200 = vmatmul.mubr.f32.gmra.mrb[0].mxu0 %v4009
        %v4201 = vpop.f32.mrb[0].mxu0
        %v4202 = vadd.f32 0.0, %v4201
        %v4203 = vpop.f32.mrb[0].mxu0
        %4204 = vmatprep.mubr.f32.mxu0 0.0
        %4205 = vmatmul.mubr.f32.gmra.mrb[0].mxu0 %v4011
        %v4206 = vpop.f32.mrb[0].mxu0
        %v4207 = vadd.f32 0.0, %v4206
        %v4208 = vpop.f32.mrb[0].mxu0
        %4209 = vmatprep.mubr.f32.mxu0 0.0
        %4210 = vmatmul.mubr.f32.gmra.mrb[0].mxu0 %v4013
        %v4211 = vpop.f32.mrb[0].mxu0
        %v4212 = vadd.f32 0.0, %v4211
        %v4213 = vpop.f32.mrb[0].mxu0
        %4214 = vmatprep.mubr.f32.mxu0 0.0
        %4215 = vmatmul.mubr.f32.gmra.mrb[0].mxu0 %v4015
        %v4216 = vpop.f32.mrb[0].mxu0
        %v4217 = vadd.f32 0.0, %v4216
        %v4218 = vpop.f32.mrb[0].mxu0
        %4219 = vmatprep.mubr.f32.mxu0 0.0
        %4220 = vmatmul.mubr.f32.gmra.mrb[0].mxu0 %v4017
        %v4221 = vpop.f32.mrb[0].mxu0
        %v4222 = vadd.f32 0.0, %v4221
        %v4223 = vpop.f32.mrb[0].mxu0
        %4224 = vmatprep.mubr.f32.mxu0 0.0
        %4225 = vmatmul.mubr.f32.gmra.mrb[0].mxu0 %v4019
        %v4226 = vpop.f32.mrb[0].mxu0
        %v4227 = vadd.f32 0.0, %v4226
        %v4228 = vpop.f32.mrb[0].mxu0
        %4229 = vmatprep.mubr.f32.mxu0 0.0
        %4230 = vmatmul.mubr.f32.gmra.mrb[0].mxu0 %v4021
        %v4231 = vpop.f32.mrb[0].mxu0
        %v4232 = vadd.f32 0.0, %v4231
        %v4233 = vpop.f32.mrb[0].mxu0
        %4234 = vmatprep.mubr.f32.mxu0 0.0
        %4235 = vmatmul.mubr.f32.gmra.mrb[0].mxu0 %v4023
        %v4236 = vpop.f32.mrb[0].mxu0
        %v4237 = vadd.f32 0.0, %v4236
        %v4238 = vpop.f32.mrb[0].mxu0
        %4239 = vmatprep.mubr.f32.mxu0 0.0
        %4240 = vmatmul.mubr.f32.gmra.mrb[0].mxu0 %v4025
        %v4241 = vpop.f32.mrb[0].mxu0
        %v4242 = vadd.f32 0.0, %v4241
        %v4243 = vpop.f32.mrb[0].mxu0
        %4244 = vmatprep.mubr.f32.mxu0 0.0
        %4245 = vmatmul.mubr.f32.gmra.mrb[0].mxu0 %v4027
        %v4246 = vpop.f32.mrb[0].mxu0
        %v4247 = vadd.f32 0.0, %v4246
        %v4248 = vpop.f32.mrb[0].mxu0
        %4249 = vmatprep.mubr.f32.mxu0 0.0
        %4250 = vmatmul.mubr.f32.gmra.mrb[0].mxu0 %v4029
        %v4251 = vpop.f32.mrb[0].mxu0
        %v4252 = vadd.f32 0.0, %v4251
        %v4253 = vpop.f32.mrb[0].mxu0
        %4254 = vmatprep.mubr.f32.mxu0 0.0
        %4255 = vmatmul.mubr.f32.gmra.mrb[0].mxu0 %v4031
        %v4256 = vpop.f32.mrb[0].mxu0
        %v4257 = vadd.f32 0.0, %v4256
        %v4258 = vpop.f32.mrb[0].mxu0
        %4259 = vmatprep.mubr.f32.mxu0 0.0
        %4260 = vmatmul.mubr.f32.gmra.mrb[0].mxu0 %v4033
        %v4261 = vpop.f32.mrb[0].mxu0
        %v4262 = vadd.f32 0.0, %v4261
        %v4263 = vpop.f32.mrb[0].mxu0
        %4264 = vmatprep.mubr.f32.mxu0 0.0
        %4265 = vmatmul.mubr.f32.gmra.mrb[0].mxu0 %v4035
        %v4266 = vpop.f32.mrb[0].mxu0
        %v4267 = vadd.f32 0.0, %v4266
        %v4268 = vpop.f32.mrb[0].mxu0
        %4269 = vmatprep.mubr.f32.mxu0 0.0
        %4270 = vmatmul.mubr.f32.gmra.mrb[0].mxu0 %v4037
        %v4271 = vpop.f32.mrb[0].mxu0
        %v4272 = vadd.f32 0.0, %v4271
        %v4273 = vpop.f32.mrb[0].mxu0
        %4274 = vmatprep.mubr.f32.mxu0 0.0
        %4275 = vmatmul.mubr.f32.gmra.mrb[0].mxu0 %v4039
        %v4276 = vpop.f32.mrb[0].mxu0
        %v4277 = vadd.f32 0.0, %v4276
        %v4278 = vpop.f32.mrb[0].mxu0
        %4279 = vmatprep.mubr.f32.mxu0 0.0
        %4280 = vmatmul.mubr.f32.gmra.mrb[0].mxu0 %v4041
        %v4281 = vpop.f32.mrb[0].mxu0
        %v4282 = vadd.f32 0.0, %v4281
        %v4283 = vpop.f32.mrb[0].mxu0
        %4284 = vmatprep.mubr.f32.mxu0 0.0
        %4285 = vmatmul.mubr.f32.gmra.mrb[0].mxu0 %v4043
        %v4286 = vpop.f32.mrb[0].mxu0
        %v4287 = vadd.f32 0.0, %v4286
        %v4288 = vpop.f32.mrb[0].mxu0
        %4289 = vmatprep.mubr.f32.mxu0 0.0
        %4290 = vmatmul.mubr.f32.gmra.mrb[0].mxu0 %v4045
        %v4291 = vpop.f32.mrb[0].mxu0
        %v4292 = vadd.f32 0.0, %v4291
        %v4293 = vpop.f32.mrb[0].mxu0
        %4294 = vdwg.mxu0
        %v4295 = vld [vmem:[#allocation2] sm:$0xff]
        %v4296 = vld [vmem:[#allocation2 + $0x8] sm:$0xff]
        %v4297 = vld [vmem:[#allocation2 + $0x10] sm:$0xff]
        %v4298 = vld [vmem:[#allocation2 + $0x18] sm:$0xff]
        %v4299 = vld [vmem:[#allocation2 + $0x20] sm:$0xff]
        %v4300 = vld [vmem:[#allocation2 + $0x28] sm:$0xff]
        %v4301 = vld [vmem:[#allocation2 + $0x30] sm:$0xff]
        %v4302 = vld [vmem:[#allocation2 + $0x38] sm:$0xff]
        %v4303 = vld [vmem:[#allocation2 + $0x40] sm:$0xff]
        %v4304 = vld [vmem:[#allocation2 + $0x48] sm:$0xff]
        %v4305 = vld [vmem:[#allocation2 + $0x50] sm:$0xff]
        %v4306 = vld [vmem:[#allocation2 + $0x58] sm:$0xff]
        %v4307 = vld [vmem:[#allocation2 + $0x60] sm:$0xff]
        %v4308 = vld [vmem:[#allocation2 + $0x68] sm:$0xff]
        %v4309 = vld [vmem:[#allocation2 + $0x70] sm:$0xff]
        %v4310 = vld [vmem:[#allocation2 + $0x78] sm:$0xff]
        %v4311 = vld [vmem:[#allocation2 + $0x80] sm:$0xff]
        %v4312 = vld [vmem:[#allocation2 + $0x88] sm:$0xff]
        %v4313 = vld [vmem:[#allocation2 + $0x90] sm:$0xff]
        %v4314 = vld [vmem:[#allocation2 + $0x98] sm:$0xff]
        %v4315 = vld [vmem:[#allocation2 + $0xa0] sm:$0xff]
        %v4316 = vld [vmem:[#allocation2 + $0xa8] sm:$0xff]
        %v4317 = vld [vmem:[#allocation2 + $0xb0] sm:$0xff]
        %v4318 = vld [vmem:[#allocation2 + $0xb8] sm:$0xff]
        %v4319 = vld [vmem:[#allocation2 + $0xc0] sm:$0xff]
        %v4320 = vld [vmem:[#allocation2 + $0xc8] sm:$0xff]
        %v4321 = vld [vmem:[#allocation2 + $0xd0] sm:$0xff]
        %v4322 = vld [vmem:[#allocation2 + $0xd8] sm:$0xff]
        %v4323 = vld [vmem:[#allocation2 + $0xe0] sm:$0xff]
        %v4324 = vld [vmem:[#allocation2 + $0xe8] sm:$0xff]
        %v4325 = vld [vmem:[#allocation2 + $0xf0] sm:$0xff]
        %v4326 = vld [vmem:[#allocation2 + $0xf8] sm:$0xff]
        %v4327 = vld [vmem:[#allocation2 + $0x100] sm:$0xff]
        %v4328 = vld [vmem:[#allocation2 + $0x108] sm:$0xff]
        %v4329 = vld [vmem:[#allocation2 + $0x110] sm:$0xff]
        %v4330 = vld [vmem:[#allocation2 + $0x118] sm:$0xff]
        %v4331 = vadd.f32 %v4295, %v4117
        %v4332 = vadd.f32 %v4296, %v4122
        %v4333 = vadd.f32 %v4297, %v4127
        %v4334 = vadd.f32 %v4298, %v4132
        %v4335 = vadd.f32 %v4299, %v4137
        %v4336 = vadd.f32 %v4300, %v4142
        %v4337 = vadd.f32 %v4301, %v4147
        %v4338 = vadd.f32 %v4302, %v4152
        %v4339 = vadd.f32 %v4303, %v4157
        %v4340 = vadd.f32 %v4304, %v4162
        %v4341 = vadd.f32 %v4305, %v4167
        %v4342 = vadd.f32 %v4306, %v4172
        %v4343 = vadd.f32 %v4307, %v4177
        %v4344 = vadd.f32 %v4308, %v4182
        %v4345 = vadd.f32 %v4309, %v4187
        %v4346 = vadd.f32 %v4310, %v4192
        %v4347 = vadd.f32 %v4311, %v4197
        %v4348 = vadd.f32 %v4312, %v4202
        %v4349 = vadd.f32 %v4313, %v4207
        %v4350 = vadd.f32 %v4314, %v4212
        %v4351 = vadd.f32 %v4315, %v4217
        %v4352 = vadd.f32 %v4316, %v4222
        %v4353 = vadd.f32 %v4317, %v4227
        %v4354 = vadd.f32 %v4318, %v4232
        %v4355 = vadd.f32 %v4319, %v4237
        %v4356 = vadd.f32 %v4320, %v4242
        %v4357 = vadd.f32 %v4321, %v4247
        %v4358 = vadd.f32 %v4322, %v4252
        %v4359 = vadd.f32 %v4323, %v4257
        %v4360 = vadd.f32 %v4324, %v4262
        %v4361 = vadd.f32 %v4325, %v4267
        %v4362 = vadd.f32 %v4326, %v4272
        %v4363 = vadd.f32 %v4327, %v4277
        %v4364 = vadd.f32 %v4328, %v4282
        %v4365 = vadd.f32 %v4329, %v4287
        %v4366 = vadd.f32 %v4330, %v4292
        %4367 = vst [vmem:[#allocation2] sm:$0xff] %v4331
        %4368 = vst [vmem:[#allocation2 + $0x8] sm:$0xff] %v4332
        %4369 = vst [vmem:[#allocation2 + $0x10] sm:$0xff] %v4333
        %4370 = vst [vmem:[#allocation2 + $0x18] sm:$0xff] %v4334
        %4371 = vst [vmem:[#allocation2 + $0x20] sm:$0xff] %v4335
        %4372 = vst [vmem:[#allocation2 + $0x28] sm:$0xff] %v4336
        %4373 = vst [vmem:[#allocation2 + $0x30] sm:$0xff] %v4337
        %4374 = vst [vmem:[#allocation2 + $0x38] sm:$0xff] %v4338
        %4375 = vst [vmem:[#allocation2 + $0x40] sm:$0xff] %v4339
        %4376 = vst [vmem:[#allocation2 + $0x48] sm:$0xff] %v4340
        %4377 = vst [vmem:[#allocation2 + $0x50] sm:$0xff] %v4341
        %4378 = vst [vmem:[#allocation2 + $0x58] sm:$0xff] %v4342
        %4379 = vst [vmem:[#allocation2 + $0x60] sm:$0xff] %v4343
        %4380 = vst [vmem:[#allocation2 + $0x68] sm:$0xff] %v4344
        %4381 = vst [vmem:[#allocation2 + $0x70] sm:$0xff] %v4345
        %4382 = vst [vmem:[#allocation2 + $0x78] sm:$0xff] %v4346
        %4383 = vst [vmem:[#allocation2 + $0x80] sm:$0xff] %v4347
        %4384 = vst [vmem:[#allocation2 + $0x88] sm:$0xff] %v4348
        %4385 = vst [vmem:[#allocation2 + $0x90] sm:$0xff] %v4349
        %4386 = vst [vmem:[#allocation2 + $0x98] sm:$0xff] %v4350
        %4387 = vst [vmem:[#allocation2 + $0xa0] sm:$0xff] %v4351
        %4388 = vst [vmem:[#allocation2 + $0xa8] sm:$0xff] %v4352
        %4389 = vst [vmem:[#allocation2 + $0xb0] sm:$0xff] %v4353
        %4390 = vst [vmem:[#allocation2 + $0xb8] sm:$0xff] %v4354
        %4391 = vst [vmem:[#allocation2 + $0xc0] sm:$0xff] %v4355
        %4392 = vst [vmem:[#allocation2 + $0xc8] sm:$0xff] %v4356
        %4393 = vst [vmem:[#allocation2 + $0xd0] sm:$0xff] %v4357
        %4394 = vst [vmem:[#allocation2 + $0xd8] sm:$0xff] %v4358
        %4395 = vst [vmem:[#allocation2 + $0xe0] sm:$0xff] %v4359
        %4396 = vst [vmem:[#allocation2 + $0xe8] sm:$0xff] %v4360
        %4397 = vst [vmem:[#allocation2 + $0xf0] sm:$0xff] %v4361
        %4398 = vst [vmem:[#allocation2 + $0xf8] sm:$0xff] %v4362
        %4399 = vst [vmem:[#allocation2 + $0x100] sm:$0xff] %v4363
        %4400 = vst [vmem:[#allocation2 + $0x108] sm:$0xff] %v4364
        %4401 = vst [vmem:[#allocation2 + $0x110] sm:$0xff] %v4365
        %4402 = vst [vmem:[#allocation2 + $0x118] sm:$0xff] %v4366
        %v4403 = vld [vmem:[%s248 + $0x10] sm:$0xc]
        %v4404 = vld [vmem:[%s248 + $0x14] sm:$0xf]
        %v4405 = vld [vmem:[%s248 + $0x18] sm:$0xf]
        %v4406 = vld [vmem:[%s248 + $0x1c] sm:$0xf]
        %v4407 = vld [vmem:[%s248 + $0x20] sm:$0xf]
        %v4408 = vld [vmem:[%s248 + $0x24] sm:$0xf]
        %v4409 = vld [vmem:[%s248 + $0x28] sm:$0xf]
        %v4410 = vld [vmem:[%s248 + $0x2c] sm:$0xf]
        %v4411 = vld [vmem:[%s248 + $0x30] sm:$0xf]
        %v4412 = vld [vmem:[%s248 + $0x34] sm:$0xf]
        %v4413 = vld [vmem:[%s248 + $0x38] sm:$0xf]
        %v4414 = vld [vmem:[%s248 + $0x3c] sm:$0xf]
        %v4415 = vld [vmem:[%s248 + $0x40] sm:$0xf]
        %v4416 = vld [vmem:[%s248 + $0x44] sm:$0xf]
        %v4417 = vld [vmem:[%s248 + $0x48] sm:$0xf]
        %v4418 = vld [vmem:[%s248 + $0x4c] sm:$0xf]
        %v4419 = vld [vmem:[%s248 + $0x50] sm:$0xf]
        %v4420 = vld [vmem:[%s248 + $0x54] sm:$0xf]
        %v4421 = vld [vmem:[%s248 + $0x58] sm:$0xf]
        %v4422 = vld [vmem:[%s248 + $0x5c] sm:$0xf]
        %v4423 = vld [vmem:[%s248 + $0x60] sm:$0xf]
        %v4424 = vld [vmem:[%s248 + $0x64] sm:$0xf]
        %v4425 = vld [vmem:[%s248 + $0x68] sm:$0xf]
        %v4426 = vld [vmem:[%s248 + $0x6c] sm:$0xf]
        %v4427 = vld [vmem:[%s248 + $0x70] sm:$0xf]
        %v4428 = vld [vmem:[%s248 + $0x74] sm:$0xf]
        %v4429 = vld [vmem:[%s248 + $0x78] sm:$0xf]
        %v4430 = vld [vmem:[%s248 + $0x7c] sm:$0xf]
        %v4431 = vld [vmem:[%s248 + $0x80] sm:$0xf]
        %v4432 = vld [vmem:[%s248 + $0x84] sm:$0xf]
        %v4433 = vld [vmem:[%s248 + $0x88] sm:$0xf]
        %v4434 = vld [vmem:[%s248 + $0x8c] sm:$0xf]
        %v4435 = vld [vmem:[%s248 + $0x90] sm:$0xf]
        %v4436 = vld [vmem:[%s248 + $0x94] sm:$0xf]
        %v4437 = vld [vmem:[%s248 + $0x98] sm:$0xf]
        %v4438 = vld [vmem:[%s248 + $0x9c] sm:$0xf]
        %v4439 = vld [vmem:[%s248 + $0xa0] sm:$0x7]
        %v4440 = vunpack.c.l.bf16 %v4403
        %v4441 = vunpack.c.l.bf16 %v4404
        %v4442 = vunpack.c.l.bf16 %v4405
        %v4443 = vunpack.c.l.bf16 %v4406
        %v4444 = vunpack.c.l.bf16 %v4407
        %v4445 = vunpack.c.l.bf16 %v4408
        %v4446 = vunpack.c.l.bf16 %v4409
        %v4447 = vunpack.c.l.bf16 %v4410
        %v4448 = vunpack.c.l.bf16 %v4411
        %v4449 = vunpack.c.l.bf16 %v4412
        %v4450 = vunpack.c.l.bf16 %v4413
        %v4451 = vunpack.c.l.bf16 %v4414
        %v4452 = vunpack.c.l.bf16 %v4415
        %v4453 = vunpack.c.l.bf16 %v4416
        %v4454 = vunpack.c.l.bf16 %v4417
        %v4455 = vunpack.c.l.bf16 %v4418
        %v4456 = vunpack.c.l.bf16 %v4419
        %v4457 = vunpack.c.l.bf16 %v4420
        %v4458 = vunpack.c.l.bf16 %v4421
        %v4459 = vunpack.c.l.bf16 %v4422
        %v4460 = vunpack.c.l.bf16 %v4423
        %v4461 = vunpack.c.l.bf16 %v4424
        %v4462 = vunpack.c.l.bf16 %v4425
        %v4463 = vunpack.c.l.bf16 %v4426
        %v4464 = vunpack.c.l.bf16 %v4427
        %v4465 = vunpack.c.l.bf16 %v4428
        %v4466 = vunpack.c.l.bf16 %v4429
        %v4467 = vunpack.c.l.bf16 %v4430
        %v4468 = vunpack.c.l.bf16 %v4431
        %v4469 = vunpack.c.l.bf16 %v4432
        %v4470 = vunpack.c.l.bf16 %v4433
        %v4471 = vunpack.c.l.bf16 %v4434
        %v4472 = vunpack.c.l.bf16 %v4435
        %v4473 = vunpack.c.l.bf16 %v4436
        %v4474 = vunpack.c.l.bf16 %v4437
        %v4475 = vunpack.c.l.bf16 %v4438
        %v4476 = vunpack.c.l.bf16 %v4439
        %s4477 = scalar_lea.vmem %s1, 28
        %v4478 = vld [vmem:[%s4477] sm:$0xf]
        %vm4516 = vcmask 1042432
        %v4517 = vrot.slane %v4440, 5
        %v4518 = vrot.slane %v4441, 5
        %v4519 = vsel %vm4516, %v4517, %v4518
        %v4520 = vrot.slane %v4442, 5
        %v4521 = vsel %vm4516, %v4518, %v4520
        %v4522 = vrot.slane %v4443, 5
        %v4523 = vsel %vm4516, %v4520, %v4522
        %v4524 = vrot.slane %v4444, 5
        %v4525 = vsel %vm4516, %v4522, %v4524
        %v4526 = vrot.slane %v4445, 5
        %v4527 = vsel %vm4516, %v4524, %v4526
        %v4528 = vrot.slane %v4446, 5
        %v4529 = vsel %vm4516, %v4526, %v4528
        %v4530 = vrot.slane %v4447, 5
        %v4531 = vsel %vm4516, %v4528, %v4530
        %v4532 = vrot.slane %v4448, 5
        %v4533 = vsel %vm4516, %v4530, %v4532
        %v4534 = vrot.slane %v4449, 5
        %v4535 = vsel %vm4516, %v4532, %v4534
        %v4536 = vrot.slane %v4450, 5
        %v4537 = vsel %vm4516, %v4534, %v4536
        %v4538 = vrot.slane %v4451, 5
        %v4539 = vsel %vm4516, %v4536, %v4538
        %v4540 = vrot.slane %v4452, 5
        %v4541 = vsel %vm4516, %v4538, %v4540
        %v4542 = vrot.slane %v4453, 5
        %v4543 = vsel %vm4516, %v4540, %v4542
        %v4544 = vrot.slane %v4454, 5
        %v4545 = vsel %vm4516, %v4542, %v4544
        %v4546 = vrot.slane %v4455, 5
        %v4547 = vsel %vm4516, %v4544, %v4546
        %v4548 = vrot.slane %v4456, 5
        %v4549 = vsel %vm4516, %v4546, %v4548
        %v4550 = vrot.slane %v4457, 5
        %v4551 = vsel %vm4516, %v4548, %v4550
        %v4552 = vrot.slane %v4458, 5
        %v4553 = vsel %vm4516, %v4550, %v4552
        %v4554 = vrot.slane %v4459, 5
        %v4555 = vsel %vm4516, %v4552, %v4554
        %v4556 = vrot.slane %v4460, 5
        %v4557 = vsel %vm4516, %v4554, %v4556
        %v4558 = vrot.slane %v4461, 5
        %v4559 = vsel %vm4516, %v4556, %v4558
        %v4560 = vrot.slane %v4462, 5
        %v4561 = vsel %vm4516, %v4558, %v4560
        %v4562 = vrot.slane %v4463, 5
        %v4563 = vsel %vm4516, %v4560, %v4562
        %v4564 = vrot.slane %v4464, 5
        %v4565 = vsel %vm4516, %v4562, %v4564
        %v4566 = vrot.slane %v4465, 5
        %v4567 = vsel %vm4516, %v4564, %v4566
        %v4568 = vrot.slane %v4466, 5
        %v4569 = vsel %vm4516, %v4566, %v4568
        %v4570 = vrot.slane %v4467, 5
        %v4571 = vsel %vm4516, %v4568, %v4570
        %v4572 = vrot.slane %v4468, 5
        %v4573 = vsel %vm4516, %v4570, %v4572
        %v4574 = vrot.slane %v4469, 5
        %v4575 = vsel %vm4516, %v4572, %v4574
        %v4576 = vrot.slane %v4470, 5
        %v4577 = vsel %vm4516, %v4574, %v4576
        %v4578 = vrot.slane %v4471, 5
        %v4579 = vsel %vm4516, %v4576, %v4578
        %v4580 = vrot.slane %v4472, 5
        %v4581 = vsel %vm4516, %v4578, %v4580
        %v4582 = vrot.slane %v4473, 5
        %v4583 = vsel %vm4516, %v4580, %v4582
        %v4584 = vrot.slane %v4474, 5
        %v4585 = vsel %vm4516, %v4582, %v4584
        %v4586 = vrot.slane %v4475, 5
        %v4587 = vsel %vm4516, %v4584, %v4586
        %v4588 = vrot.slane %v4476, 5
        %v4589 = vsel %vm4516, %v4586, %v4588
        %v4590 = vsel %vm322, %v4519, 0
        %v4592 = vsel %vm322, %v4521, 0
        %v4594 = vsel %vm322, %v4523, 0
        %v4596 = vsel %vm322, %v4525, 0
        %v4598 = vsel %vm322, %v4527, 0
        %v4600 = vsel %vm322, %v4529, 0
        %v4602 = vsel %vm322, %v4531, 0
        %v4604 = vsel %vm322, %v4533, 0
        %v4606 = vsel %vm322, %v4535, 0
        %v4608 = vsel %vm322, %v4537, 0
        %v4610 = vsel %vm322, %v4539, 0
        %v4612 = vsel %vm322, %v4541, 0
        %v4614 = vsel %vm322, %v4543, 0
        %v4616 = vsel %vm322, %v4545, 0
        %v4618 = vsel %vm322, %v4547, 0
        %v4620 = vsel %vm322, %v4549, 0
        %v4622 = vsel %vm322, %v4551, 0
        %v4624 = vsel %vm322, %v4553, 0
        %v4626 = vsel %vm322, %v4555, 0
        %v4628 = vsel %vm322, %v4557, 0
        %v4630 = vsel %vm322, %v4559, 0
        %v4632 = vsel %vm322, %v4561, 0
        %v4634 = vsel %vm322, %v4563, 0
        %v4636 = vsel %vm322, %v4565, 0
        %v4638 = vsel %vm322, %v4567, 0
        %v4640 = vsel %vm322, %v4569, 0
        %v4642 = vsel %vm322, %v4571, 0
        %v4644 = vsel %vm322, %v4573, 0
        %v4646 = vsel %vm322, %v4575, 0
        %v4648 = vsel %vm322, %v4577, 0
        %v4650 = vsel %vm322, %v4579, 0
        %v4652 = vsel %vm322, %v4581, 0
        %v4654 = vsel %vm322, %v4583, 0
        %v4656 = vsel %vm322, %v4585, 0
        %v4658 = vsel %vm322, %v4587, 0
        %v4660 = vsel %vm322, %v4589, 0
        %v4663 = vsel %vm431, %v4478, 0
        %4665 = vmatprep.subr.mxu0 0.0
        %4666 = vmatpush1.msra.mxu0 %v4663
        %4667 = vmatprep.subr.mxu0 0.0
        %4668 = vmatpush1.msra.mxu0 0.0
        %4669 = vmatprep.subr.mxu0 0.0
        %4670 = vmatpush1.msra.mxu0 0.0
        %4671 = vmatprep.subr.mxu0 0.0
        %4672 = vmatpush1.msra.mxu0 0.0
        %4673 = vmatprep.subr.mxu0 0.0
        %4674 = vmatpush1.msra.mxu0 0.0
        %4675 = vmatprep.subr.mxu0 0.0
        %4676 = vmatpush1.msra.mxu0 0.0
        %4677 = vmatprep.subr.mxu0 0.0
        %4678 = vmatpush1.msra.mxu0 0.0
        %4679 = vmatprep.subr.mxu0 0.0
        %4680 = vmatpush1.msra.mxu0 0.0
        %4681 = vmatprep.subr.mxu0 0.0
        %4682 = vmatpush1.msra.mxu0 0.0
        %4683 = vmatprep.subr.mxu0 0.0
        %4684 = vmatpush1.msra.mxu0 0.0
        %4685 = vmatprep.subr.mxu0 0.0
        %4686 = vmatpush1.msra.mxu0 0.0
        %4687 = vmatprep.subr.mxu0 0.0
        %4688 = vmatpush1.msra.mxu0 0.0
        %4689 = vmatprep.subr.mxu0 0.0
        %4690 = vmatpush1.msra.mxu0 0.0
        %4691 = vmatprep.subr.mxu0 0.0
        %4692 = vmatpush1.msra.mxu0 0.0
        %4693 = vmatprep.subr.mxu0 0.0
        %4694 = vmatpush1.msra.mxu0 0.0
        %4695 = vmatprep.subr.mxu0 0.0
        %4696 = vmatpush1.msra.mxu0 0.0
        %4697 = vmatprep.subr.mxu0 0.0
        %4698 = vmatpush1.msra.mxu0 0.0
        %4699 = vmatprep.subr.mxu0 0.0
        %4700 = vmatpush1.msra.mxu0 0.0
        %4701 = vmatprep.subr.mxu0 0.0
        %4702 = vmatpush1.msra.mxu0 0.0
        %4703 = vmatprep.subr.mxu0 0.0
        %4704 = vmatpush1.msra.mxu0 0.0
        %4705 = vmatprep.subr.mxu0 0.0
        %4706 = vmatpush1.msra.mxu0 0.0
        %4707 = vmatprep.subr.mxu0 0.0
        %4708 = vmatpush1.msra.mxu0 0.0
        %4709 = vmatprep.subr.mxu0 0.0
        %4710 = vmatpush1.msra.mxu0 0.0
        %4711 = vmatprep.subr.mxu0 0.0
        %4712 = vmatpush1.msra.mxu0 0.0
        %4713 = vmatprep.subr.mxu0 0.0
        %4714 = vmatpush1.msra.mxu0 0.0
        %4715 = vmatprep.subr.mxu0 0.0
        %4716 = vmatpush1.msra.mxu0 0.0
        %4717 = vmatprep.subr.mxu0 0.0
        %4718 = vmatpush1.msra.mxu0 0.0
        %4719 = vmatprep.subr.mxu0 0.0
        %4720 = vmatpush1.msra.mxu0 0.0
        %4721 = vmatprep.subr.mxu0 0.0
        %4722 = vmatpush1.msra.mxu0 0.0
        %4723 = vmatprep.subr.mxu0 0.0
        %4724 = vmatpush1.msra.mxu0 0.0
        %4725 = vmatprep.subr.mxu0 0.0
        %4726 = vmatpush1.msra.mxu0 0.0
        %4727 = vmatprep.subr.mxu0 0.0
        %4728 = vmatpush1.msra.mxu0 0.0
        %4729 = vmatprep.mubr.f32.mxu0 0.0
        %4730 = vmatmul.mubr.f32.gmra.mrb[0].mxu0 %v4590
        %v4731 = vpop.f32.mrb[0].mxu0
        %v4732 = vadd.f32 0.0, %v4731
        %v4733 = vpop.f32.mrb[0].mxu0
        %4734 = vmatprep.mubr.f32.mxu0 0.0
        %4735 = vmatmul.mubr.f32.gmra.mrb[0].mxu0 %v4592
        %v4736 = vpop.f32.mrb[0].mxu0
        %v4737 = vadd.f32 0.0, %v4736
        %v4738 = vpop.f32.mrb[0].mxu0
        %4739 = vmatprep.mubr.f32.mxu0 0.0
        %4740 = vmatmul.mubr.f32.gmra.mrb[0].mxu0 %v4594
        %v4741 = vpop.f32.mrb[0].mxu0
        %v4742 = vadd.f32 0.0, %v4741
        %v4743 = vpop.f32.mrb[0].mxu0
        %4744 = vmatprep.mubr.f32.mxu0 0.0
        %4745 = vmatmul.mubr.f32.gmra.mrb[0].mxu0 %v4596
        %v4746 = vpop.f32.mrb[0].mxu0
        %v4747 = vadd.f32 0.0, %v4746
        %v4748 = vpop.f32.mrb[0].mxu0
        %4749 = vmatprep.mubr.f32.mxu0 0.0
        %4750 = vmatmul.mubr.f32.gmra.mrb[0].mxu0 %v4598
        %v4751 = vpop.f32.mrb[0].mxu0
        %v4752 = vadd.f32 0.0, %v4751
        %v4753 = vpop.f32.mrb[0].mxu0
        %4754 = vmatprep.mubr.f32.mxu0 0.0
        %4755 = vmatmul.mubr.f32.gmra.mrb[0].mxu0 %v4600
        %v4756 = vpop.f32.mrb[0].mxu0
        %v4757 = vadd.f32 0.0, %v4756
        %v4758 = vpop.f32.mrb[0].mxu0
        %4759 = vmatprep.mubr.f32.mxu0 0.0
        %4760 = vmatmul.mubr.f32.gmra.mrb[0].mxu0 %v4602
        %v4761 = vpop.f32.mrb[0].mxu0
        %v4762 = vadd.f32 0.0, %v4761
        %v4763 = vpop.f32.mrb[0].mxu0
        %4764 = vmatprep.mubr.f32.mxu0 0.0
        %4765 = vmatmul.mubr.f32.gmra.mrb[0].mxu0 %v4604
        %v4766 = vpop.f32.mrb[0].mxu0
        %v4767 = vadd.f32 0.0, %v4766
        %v4768 = vpop.f32.mrb[0].mxu0
        %4769 = vmatprep.mubr.f32.mxu0 0.0
        %4770 = vmatmul.mubr.f32.gmra.mrb[0].mxu0 %v4606
        %v4771 = vpop.f32.mrb[0].mxu0
        %v4772 = vadd.f32 0.0, %v4771
        %v4773 = vpop.f32.mrb[0].mxu0
        %4774 = vmatprep.mubr.f32.mxu0 0.0
        %4775 = vmatmul.mubr.f32.gmra.mrb[0].mxu0 %v4608
        %v4776 = vpop.f32.mrb[0].mxu0
        %v4777 = vadd.f32 0.0, %v4776
        %v4778 = vpop.f32.mrb[0].mxu0
        %4779 = vmatprep.mubr.f32.mxu0 0.0
        %4780 = vmatmul.mubr.f32.gmra.mrb[0].mxu0 %v4610
        %v4781 = vpop.f32.mrb[0].mxu0
        %v4782 = vadd.f32 0.0, %v4781
        %v4783 = vpop.f32.mrb[0].mxu0
        %4784 = vmatprep.mubr.f32.mxu0 0.0
        %4785 = vmatmul.mubr.f32.gmra.mrb[0].mxu0 %v4612
        %v4786 = vpop.f32.mrb[0].mxu0
        %v4787 = vadd.f32 0.0, %v4786
        %v4788 = vpop.f32.mrb[0].mxu0
        %4789 = vmatprep.mubr.f32.mxu0 0.0
        %4790 = vmatmul.mubr.f32.gmra.mrb[0].mxu0 %v4614
        %v4791 = vpop.f32.mrb[0].mxu0
        %v4792 = vadd.f32 0.0, %v4791
        %v4793 = vpop.f32.mrb[0].mxu0
        %4794 = vmatprep.mubr.f32.mxu0 0.0
        %4795 = vmatmul.mubr.f32.gmra.mrb[0].mxu0 %v4616
        %v4796 = vpop.f32.mrb[0].mxu0
        %v4797 = vadd.f32 0.0, %v4796
        %v4798 = vpop.f32.mrb[0].mxu0
        %4799 = vmatprep.mubr.f32.mxu0 0.0
        %4800 = vmatmul.mubr.f32.gmra.mrb[0].mxu0 %v4618
        %v4801 = vpop.f32.mrb[0].mxu0
        %v4802 = vadd.f32 0.0, %v4801
        %v4803 = vpop.f32.mrb[0].mxu0
        %4804 = vmatprep.mubr.f32.mxu0 0.0
        %4805 = vmatmul.mubr.f32.gmra.mrb[0].mxu0 %v4620
        %v4806 = vpop.f32.mrb[0].mxu0
        %v4807 = vadd.f32 0.0, %v4806
        %v4808 = vpop.f32.mrb[0].mxu0
        %4809 = vmatprep.mubr.f32.mxu0 0.0
        %4810 = vmatmul.mubr.f32.gmra.mrb[0].mxu0 %v4622
        %v4811 = vpop.f32.mrb[0].mxu0
        %v4812 = vadd.f32 0.0, %v4811
        %v4813 = vpop.f32.mrb[0].mxu0
        %4814 = vmatprep.mubr.f32.mxu0 0.0
        %4815 = vmatmul.mubr.f32.gmra.mrb[0].mxu0 %v4624
        %v4816 = vpop.f32.mrb[0].mxu0
        %v4817 = vadd.f32 0.0, %v4816
        %v4818 = vpop.f32.mrb[0].mxu0
        %4819 = vmatprep.mubr.f32.mxu0 0.0
        %4820 = vmatmul.mubr.f32.gmra.mrb[0].mxu0 %v4626
        %v4821 = vpop.f32.mrb[0].mxu0
        %v4822 = vadd.f32 0.0, %v4821
        %v4823 = vpop.f32.mrb[0].mxu0
        %4824 = vmatprep.mubr.f32.mxu0 0.0
        %4825 = vmatmul.mubr.f32.gmra.mrb[0].mxu0 %v4628
        %v4826 = vpop.f32.mrb[0].mxu0
        %v4827 = vadd.f32 0.0, %v4826
        %v4828 = vpop.f32.mrb[0].mxu0
        %4829 = vmatprep.mubr.f32.mxu0 0.0
        %4830 = vmatmul.mubr.f32.gmra.mrb[0].mxu0 %v4630
        %v4831 = vpop.f32.mrb[0].mxu0
        %v4832 = vadd.f32 0.0, %v4831
        %v4833 = vpop.f32.mrb[0].mxu0
        %4834 = vmatprep.mubr.f32.mxu0 0.0
        %4835 = vmatmul.mubr.f32.gmra.mrb[0].mxu0 %v4632
        %v4836 = vpop.f32.mrb[0].mxu0
        %v4837 = vadd.f32 0.0, %v4836
        %v4838 = vpop.f32.mrb[0].mxu0
        %4839 = vmatprep.mubr.f32.mxu0 0.0
        %4840 = vmatmul.mubr.f32.gmra.mrb[0].mxu0 %v4634
        %v4841 = vpop.f32.mrb[0].mxu0
        %v4842 = vadd.f32 0.0, %v4841
        %v4843 = vpop.f32.mrb[0].mxu0
        %4844 = vmatprep.mubr.f32.mxu0 0.0
        %4845 = vmatmul.mubr.f32.gmra.mrb[0].mxu0 %v4636
        %v4846 = vpop.f32.mrb[0].mxu0
        %v4847 = vadd.f32 0.0, %v4846
        %v4848 = vpop.f32.mrb[0].mxu0
        %4849 = vmatprep.mubr.f32.mxu0 0.0
        %4850 = vmatmul.mubr.f32.gmra.mrb[0].mxu0 %v4638
        %v4851 = vpop.f32.mrb[0].mxu0
        %v4852 = vadd.f32 0.0, %v4851
        %v4853 = vpop.f32.mrb[0].mxu0
        %4854 = vmatprep.mubr.f32.mxu0 0.0
        %4855 = vmatmul.mubr.f32.gmra.mrb[0].mxu0 %v4640
        %v4856 = vpop.f32.mrb[0].mxu0
        %v4857 = vadd.f32 0.0, %v4856
        %v4858 = vpop.f32.mrb[0].mxu0
        %4859 = vmatprep.mubr.f32.mxu0 0.0
        %4860 = vmatmul.mubr.f32.gmra.mrb[0].mxu0 %v4642
        %v4861 = vpop.f32.mrb[0].mxu0
        %v4862 = vadd.f32 0.0, %v4861
        %v4863 = vpop.f32.mrb[0].mxu0
        %4864 = vmatprep.mubr.f32.mxu0 0.0
        %4865 = vmatmul.mubr.f32.gmra.mrb[0].mxu0 %v4644
        %v4866 = vpop.f32.mrb[0].mxu0
        %v4867 = vadd.f32 0.0, %v4866
        %v4868 = vpop.f32.mrb[0].mxu0
        %4869 = vmatprep.mubr.f32.mxu0 0.0
        %4870 = vmatmul.mubr.f32.gmra.mrb[0].mxu0 %v4646
        %v4871 = vpop.f32.mrb[0].mxu0
        %v4872 = vadd.f32 0.0, %v4871
        %v4873 = vpop.f32.mrb[0].mxu0
        %4874 = vmatprep.mubr.f32.mxu0 0.0
        %4875 = vmatmul.mubr.f32.gmra.mrb[0].mxu0 %v4648
        %v4876 = vpop.f32.mrb[0].mxu0
        %v4877 = vadd.f32 0.0, %v4876
        %v4878 = vpop.f32.mrb[0].mxu0
        %4879 = vmatprep.mubr.f32.mxu0 0.0
        %4880 = vmatmul.mubr.f32.gmra.mrb[0].mxu0 %v4650
        %v4881 = vpop.f32.mrb[0].mxu0
        %v4882 = vadd.f32 0.0, %v4881
        %v4883 = vpop.f32.mrb[0].mxu0
        %4884 = vmatprep.mubr.f32.mxu0 0.0
        %4885 = vmatmul.mubr.f32.gmra.mrb[0].mxu0 %v4652
        %v4886 = vpop.f32.mrb[0].mxu0
        %v4887 = vadd.f32 0.0, %v4886
        %v4888 = vpop.f32.mrb[0].mxu0
        %4889 = vmatprep.mubr.f32.mxu0 0.0
        %4890 = vmatmul.mubr.f32.gmra.mrb[0].mxu0 %v4654
        %v4891 = vpop.f32.mrb[0].mxu0
        %v4892 = vadd.f32 0.0, %v4891
        %v4893 = vpop.f32.mrb[0].mxu0
        %4894 = vmatprep.mubr.f32.mxu0 0.0
        %4895 = vmatmul.mubr.f32.gmra.mrb[0].mxu0 %v4656
        %v4896 = vpop.f32.mrb[0].mxu0
        %v4897 = vadd.f32 0.0, %v4896
        %v4898 = vpop.f32.mrb[0].mxu0
        %4899 = vmatprep.mubr.f32.mxu0 0.0
        %4900 = vmatmul.mubr.f32.gmra.mrb[0].mxu0 %v4658
        %v4901 = vpop.f32.mrb[0].mxu0
        %v4902 = vadd.f32 0.0, %v4901
        %v4903 = vpop.f32.mrb[0].mxu0
        %4904 = vmatprep.mubr.f32.mxu0 0.0
        %4905 = vmatmul.mubr.f32.gmra.mrb[0].mxu0 %v4660
        %v4906 = vpop.f32.mrb[0].mxu0
        %v4907 = vadd.f32 0.0, %v4906
        %v4908 = vpop.f32.mrb[0].mxu0
        %4909 = vdwg.mxu0
        %v4910 = vld [vmem:[#allocation2] sm:$0xff]
        %v4911 = vld [vmem:[#allocation2 + $0x8] sm:$0xff]
        %v4912 = vld [vmem:[#allocation2 + $0x10] sm:$0xff]
        %v4913 = vld [vmem:[#allocation2 + $0x18] sm:$0xff]
        %v4914 = vld [vmem:[#allocation2 + $0x20] sm:$0xff]
        %v4915 = vld [vmem:[#allocation2 + $0x28] sm:$0xff]
        %v4916 = vld [vmem:[#allocation2 + $0x30] sm:$0xff]
        %v4917 = vld [vmem:[#allocation2 + $0x38] sm:$0xff]
        %v4918 = vld [vmem:[#allocation2 + $0x40] sm:$0xff]
        %v4919 = vld [vmem:[#allocation2 + $0x48] sm:$0xff]
        %v4920 = vld [vmem:[#allocation2 + $0x50] sm:$0xff]
        %v4921 = vld [vmem:[#allocation2 + $0x58] sm:$0xff]
        %v4922 = vld [vmem:[#allocation2 + $0x60] sm:$0xff]
        %v4923 = vld [vmem:[#allocation2 + $0x68] sm:$0xff]
        %v4924 = vld [vmem:[#allocation2 + $0x70] sm:$0xff]
        %v4925 = vld [vmem:[#allocation2 + $0x78] sm:$0xff]
        %v4926 = vld [vmem:[#allocation2 + $0x80] sm:$0xff]
        %v4927 = vld [vmem:[#allocation2 + $0x88] sm:$0xff]
        %v4928 = vld [vmem:[#allocation2 + $0x90] sm:$0xff]
        %v4929 = vld [vmem:[#allocation2 + $0x98] sm:$0xff]
        %v4930 = vld [vmem:[#allocation2 + $0xa0] sm:$0xff]
        %v4931 = vld [vmem:[#allocation2 + $0xa8] sm:$0xff]
        %v4932 = vld [vmem:[#allocation2 + $0xb0] sm:$0xff]
        %v4933 = vld [vmem:[#allocation2 + $0xb8] sm:$0xff]
        %v4934 = vld [vmem:[#allocation2 + $0xc0] sm:$0xff]
        %v4935 = vld [vmem:[#allocation2 + $0xc8] sm:$0xff]
        %v4936 = vld [vmem:[#allocation2 + $0xd0] sm:$0xff]
        %v4937 = vld [vmem:[#allocation2 + $0xd8] sm:$0xff]
        %v4938 = vld [vmem:[#allocation2 + $0xe0] sm:$0xff]
        %v4939 = vld [vmem:[#allocation2 + $0xe8] sm:$0xff]
        %v4940 = vld [vmem:[#allocation2 + $0xf0] sm:$0xff]
        %v4941 = vld [vmem:[#allocation2 + $0xf8] sm:$0xff]
        %v4942 = vld [vmem:[#allocation2 + $0x100] sm:$0xff]
        %v4943 = vld [vmem:[#allocation2 + $0x108] sm:$0xff]
        %v4944 = vld [vmem:[#allocation2 + $0x110] sm:$0xff]
        %v4945 = vld [vmem:[#allocation2 + $0x118] sm:$0xff]
        %v4946 = vadd.f32 %v4910, %v4732
        %v4947 = vadd.f32 %v4911, %v4737
        %v4948 = vadd.f32 %v4912, %v4742
        %v4949 = vadd.f32 %v4913, %v4747
        %v4950 = vadd.f32 %v4914, %v4752
        %v4951 = vadd.f32 %v4915, %v4757
        %v4952 = vadd.f32 %v4916, %v4762
        %v4953 = vadd.f32 %v4917, %v4767
        %v4954 = vadd.f32 %v4918, %v4772
        %v4955 = vadd.f32 %v4919, %v4777
        %v4956 = vadd.f32 %v4920, %v4782
        %v4957 = vadd.f32 %v4921, %v4787
        %v4958 = vadd.f32 %v4922, %v4792
        %v4959 = vadd.f32 %v4923, %v4797
        %v4960 = vadd.f32 %v4924, %v4802
        %v4961 = vadd.f32 %v4925, %v4807
        %v4962 = vadd.f32 %v4926, %v4812
        %v4963 = vadd.f32 %v4927, %v4817
        %v4964 = vadd.f32 %v4928, %v4822
        %v4965 = vadd.f32 %v4929, %v4827
        %v4966 = vadd.f32 %v4930, %v4832
        %v4967 = vadd.f32 %v4931, %v4837
        %v4968 = vadd.f32 %v4932, %v4842
        %v4969 = vadd.f32 %v4933, %v4847
        %v4970 = vadd.f32 %v4934, %v4852
        %v4971 = vadd.f32 %v4935, %v4857
        %v4972 = vadd.f32 %v4936, %v4862
        %v4973 = vadd.f32 %v4937, %v4867
        %v4974 = vadd.f32 %v4938, %v4872
        %v4975 = vadd.f32 %v4939, %v4877
        %v4976 = vadd.f32 %v4940, %v4882
        %v4977 = vadd.f32 %v4941, %v4887
        %v4978 = vadd.f32 %v4942, %v4892
        %v4979 = vadd.f32 %v4943, %v4897
        %v4980 = vadd.f32 %v4944, %v4902
        %v4981 = vadd.f32 %v4945, %v4907
        %4982 = vst [vmem:[#allocation2] sm:$0xff] %v4946
        %4983 = vst [vmem:[#allocation2 + $0x8] sm:$0xff] %v4947
        %4984 = vst [vmem:[#allocation2 + $0x10] sm:$0xff] %v4948
        %4985 = vst [vmem:[#allocation2 + $0x18] sm:$0xff] %v4949
        %4986 = vst [vmem:[#allocation2 + $0x20] sm:$0xff] %v4950
        %4987 = vst [vmem:[#allocation2 + $0x28] sm:$0xff] %v4951
        %4988 = vst [vmem:[#allocation2 + $0x30] sm:$0xff] %v4952
        %4989 = vst [vmem:[#allocation2 + $0x38] sm:$0xff] %v4953
        %4990 = vst [vmem:[#allocation2 + $0x40] sm:$0xff] %v4954
        %4991 = vst [vmem:[#allocation2 + $0x48] sm:$0xff] %v4955
        %4992 = vst [vmem:[#allocation2 + $0x50] sm:$0xff] %v4956
        %4993 = vst [vmem:[#allocation2 + $0x58] sm:$0xff] %v4957
        %4994 = vst [vmem:[#allocation2 + $0x60] sm:$0xff] %v4958
        %4995 = vst [vmem:[#allocation2 + $0x68] sm:$0xff] %v4959
        %4996 = vst [vmem:[#allocation2 + $0x70] sm:$0xff] %v4960
        %4997 = vst [vmem:[#allocation2 + $0x78] sm:$0xff] %v4961
        %4998 = vst [vmem:[#allocation2 + $0x80] sm:$0xff] %v4962
        %4999 = vst [vmem:[#allocation2 + $0x88] sm:$0xff] %v4963
        %5000 = vst [vmem:[#allocation2 + $0x90] sm:$0xff] %v4964
        %5001 = vst [vmem:[#allocation2 + $0x98] sm:$0xff] %v4965
        %5002 = vst [vmem:[#allocation2 + $0xa0] sm:$0xff] %v4966
        %5003 = vst [vmem:[#allocation2 + $0xa8] sm:$0xff] %v4967
        %5004 = vst [vmem:[#allocation2 + $0xb0] sm:$0xff] %v4968
        %5005 = vst [vmem:[#allocation2 + $0xb8] sm:$0xff] %v4969
        %5006 = vst [vmem:[#allocation2 + $0xc0] sm:$0xff] %v4970
        %5007 = vst [vmem:[#allocation2 + $0xc8] sm:$0xff] %v4971
        %5008 = vst [vmem:[#allocation2 + $0xd0] sm:$0xff] %v4972
        %5009 = vst [vmem:[#allocation2 + $0xd8] sm:$0xff] %v4973
        %5010 = vst [vmem:[#allocation2 + $0xe0] sm:$0xff] %v4974
        %5011 = vst [vmem:[#allocation2 + $0xe8] sm:$0xff] %v4975
        %5012 = vst [vmem:[#allocation2 + $0xf0] sm:$0xff] %v4976
        %5013 = vst [vmem:[#allocation2 + $0xf8] sm:$0xff] %v4977
        %5014 = vst [vmem:[#allocation2 + $0x100] sm:$0xff] %v4978
        %5015 = vst [vmem:[#allocation2 + $0x108] sm:$0xff] %v4979
        %5016 = vst [vmem:[#allocation2 + $0x110] sm:$0xff] %v4980
        %5017 = vst [vmem:[#allocation2 + $0x118] sm:$0xff] %v4981
        %v5018 = vld [vmem:[%s248 + $0x10] sm:$0x8]
        %v5019 = vld [vmem:[%s248 + $0x14] sm:$0xf]
        %v5020 = vld [vmem:[%s248 + $0x18] sm:$0xf]
        %v5021 = vld [vmem:[%s248 + $0x1c] sm:$0xf]
        %v5022 = vld [vmem:[%s248 + $0x20] sm:$0xf]
        %v5023 = vld [vmem:[%s248 + $0x24] sm:$0xf]
        %v5024 = vld [vmem:[%s248 + $0x28] sm:$0xf]
        %v5025 = vld [vmem:[%s248 + $0x2c] sm:$0xf]
        %v5026 = vld [vmem:[%s248 + $0x30] sm:$0xf]
        %v5027 = vld [vmem:[%s248 + $0x34] sm:$0xf]
        %v5028 = vld [vmem:[%s248 + $0x38] sm:$0xf]
        %v5029 = vld [vmem:[%s248 + $0x3c] sm:$0xf]
        %v5030 = vld [vmem:[%s248 + $0x40] sm:$0xf]
        %v5031 = vld [vmem:[%s248 + $0x44] sm:$0xf]
        %v5032 = vld [vmem:[%s248 + $0x48] sm:$0xf]
        %v5033 = vld [vmem:[%s248 + $0x4c] sm:$0xf]
        %v5034 = vld [vmem:[%s248 + $0x50] sm:$0xf]
        %v5035 = vld [vmem:[%s248 + $0x54] sm:$0xf]
        %v5036 = vld [vmem:[%s248 + $0x58] sm:$0xf]
        %v5037 = vld [vmem:[%s248 + $0x5c] sm:$0xf]
        %v5038 = vld [vmem:[%s248 + $0x60] sm:$0xf]
        %v5039 = vld [vmem:[%s248 + $0x64] sm:$0xf]
        %v5040 = vld [vmem:[%s248 + $0x68] sm:$0xf]
        %v5041 = vld [vmem:[%s248 + $0x6c] sm:$0xf]
        %v5042 = vld [vmem:[%s248 + $0x70] sm:$0xf]
        %v5043 = vld [vmem:[%s248 + $0x74] sm:$0xf]
        %v5044 = vld [vmem:[%s248 + $0x78] sm:$0xf]
        %v5045 = vld [vmem:[%s248 + $0x7c] sm:$0xf]
        %v5046 = vld [vmem:[%s248 + $0x80] sm:$0xf]
        %v5047 = vld [vmem:[%s248 + $0x84] sm:$0xf]
        %v5048 = vld [vmem:[%s248 + $0x88] sm:$0xf]
        %v5049 = vld [vmem:[%s248 + $0x8c] sm:$0xf]
        %v5050 = vld [vmem:[%s248 + $0x90] sm:$0xf]
        %v5051 = vld [vmem:[%s248 + $0x94] sm:$0xf]
        %v5052 = vld [vmem:[%s248 + $0x98] sm:$0xf]
        %v5053 = vld [vmem:[%s248 + $0x9c] sm:$0xf]
        %v5054 = vld [vmem:[%s248 + $0xa0] sm:$0x7]
        %v5055 = vunpack.c.l.bf16 %v5018
        %v5056 = vunpack.c.l.bf16 %v5019
        %v5057 = vunpack.c.l.bf16 %v5020
        %v5058 = vunpack.c.l.bf16 %v5021
        %v5059 = vunpack.c.l.bf16 %v5022
        %v5060 = vunpack.c.l.bf16 %v5023
        %v5061 = vunpack.c.l.bf16 %v5024
        %v5062 = vunpack.c.l.bf16 %v5025
        %v5063 = vunpack.c.l.bf16 %v5026
        %v5064 = vunpack.c.l.bf16 %v5027
        %v5065 = vunpack.c.l.bf16 %v5028
        %v5066 = vunpack.c.l.bf16 %v5029
        %v5067 = vunpack.c.l.bf16 %v5030
        %v5068 = vunpack.c.l.bf16 %v5031
        %v5069 = vunpack.c.l.bf16 %v5032
        %v5070 = vunpack.c.l.bf16 %v5033
        %v5071 = vunpack.c.l.bf16 %v5034
        %v5072 = vunpack.c.l.bf16 %v5035
        %v5073 = vunpack.c.l.bf16 %v5036
        %v5074 = vunpack.c.l.bf16 %v5037
        %v5075 = vunpack.c.l.bf16 %v5038
        %v5076 = vunpack.c.l.bf16 %v5039
        %v5077 = vunpack.c.l.bf16 %v5040
        %v5078 = vunpack.c.l.bf16 %v5041
        %v5079 = vunpack.c.l.bf16 %v5042
        %v5080 = vunpack.c.l.bf16 %v5043
        %v5081 = vunpack.c.l.bf16 %v5044
        %v5082 = vunpack.c.l.bf16 %v5045
        %v5083 = vunpack.c.l.bf16 %v5046
        %v5084 = vunpack.c.l.bf16 %v5047
        %v5085 = vunpack.c.l.bf16 %v5048
        %v5086 = vunpack.c.l.bf16 %v5049
        %v5087 = vunpack.c.l.bf16 %v5050
        %v5088 = vunpack.c.l.bf16 %v5051
        %v5089 = vunpack.c.l.bf16 %v5052
        %v5090 = vunpack.c.l.bf16 %v5053
        %v5091 = vunpack.c.l.bf16 %v5054
        %s5092 = scalar_lea.vmem %s1, 32
        %v5093 = vld [vmem:[%s5092] sm:$0xf]
        %vm5131 = vcmask 1041408
        %v5132 = vrot.slane %v5055, 6
        %v5133 = vrot.slane %v5056, 6
        %v5134 = vsel %vm5131, %v5132, %v5133
        %v5135 = vrot.slane %v5057, 6
        %v5136 = vsel %vm5131, %v5133, %v5135
        %v5137 = vrot.slane %v5058, 6
        %v5138 = vsel %vm5131, %v5135, %v5137
        %v5139 = vrot.slane %v5059, 6
        %v5140 = vsel %vm5131, %v5137, %v5139
        %v5141 = vrot.slane %v5060, 6
        %v5142 = vsel %vm5131, %v5139, %v5141
        %v5143 = vrot.slane %v5061, 6
        %v5144 = vsel %vm5131, %v5141, %v5143
        %v5145 = vrot.slane %v5062, 6
        %v5146 = vsel %vm5131, %v5143, %v5145
        %v5147 = vrot.slane %v5063, 6
        %v5148 = vsel %vm5131, %v5145, %v5147
        %v5149 = vrot.slane %v5064, 6
        %v5150 = vsel %vm5131, %v5147, %v5149
        %v5151 = vrot.slane %v5065, 6
        %v5152 = vsel %vm5131, %v5149, %v5151
        %v5153 = vrot.slane %v5066, 6
        %v5154 = vsel %vm5131, %v5151, %v5153
        %v5155 = vrot.slane %v5067, 6
        %v5156 = vsel %vm5131, %v5153, %v5155
        %v5157 = vrot.slane %v5068, 6
        %v5158 = vsel %vm5131, %v5155, %v5157
        %v5159 = vrot.slane %v5069, 6
        %v5160 = vsel %vm5131, %v5157, %v5159
        %v5161 = vrot.slane %v5070, 6
        %v5162 = vsel %vm5131, %v5159, %v5161
        %v5163 = vrot.slane %v5071, 6
        %v5164 = vsel %vm5131, %v5161, %v5163
        %v5165 = vrot.slane %v5072, 6
        %v5166 = vsel %vm5131, %v5163, %v5165
        %v5167 = vrot.slane %v5073, 6
        %v5168 = vsel %vm5131, %v5165, %v5167
        %v5169 = vrot.slane %v5074, 6
        %v5170 = vsel %vm5131, %v5167, %v5169
        %v5171 = vrot.slane %v5075, 6
        %v5172 = vsel %vm5131, %v5169, %v5171
        %v5173 = vrot.slane %v5076, 6
        %v5174 = vsel %vm5131, %v5171, %v5173
        %v5175 = vrot.slane %v5077, 6
        %v5176 = vsel %vm5131, %v5173, %v5175
        %v5177 = vrot.slane %v5078, 6
        %v5178 = vsel %vm5131, %v5175, %v5177
        %v5179 = vrot.slane %v5079, 6
        %v5180 = vsel %vm5131, %v5177, %v5179
        %v5181 = vrot.slane %v5080, 6
        %v5182 = vsel %vm5131, %v5179, %v5181
        %v5183 = vrot.slane %v5081, 6
        %v5184 = vsel %vm5131, %v5181, %v5183
        %v5185 = vrot.slane %v5082, 6
        %v5186 = vsel %vm5131, %v5183, %v5185
        %v5187 = vrot.slane %v5083, 6
        %v5188 = vsel %vm5131, %v5185, %v5187
        %v5189 = vrot.slane %v5084, 6
        %v5190 = vsel %vm5131, %v5187, %v5189
        %v5191 = vrot.slane %v5085, 6
        %v5192 = vsel %vm5131, %v5189, %v5191
        %v5193 = vrot.slane %v5086, 6
        %v5194 = vsel %vm5131, %v5191, %v5193
        %v5195 = vrot.slane %v5087, 6
        %v5196 = vsel %vm5131, %v5193, %v5195
        %v5197 = vrot.slane %v5088, 6
        %v5198 = vsel %vm5131, %v5195, %v5197
        %v5199 = vrot.slane %v5089, 6
        %v5200 = vsel %vm5131, %v5197, %v5199
        %v5201 = vrot.slane %v5090, 6
        %v5202 = vsel %vm5131, %v5199, %v5201
        %v5203 = vrot.slane %v5091, 6
        %v5204 = vsel %vm5131, %v5201, %v5203
        %v5205 = vsel %vm322, %v5134, 0
        %v5207 = vsel %vm322, %v5136, 0
        %v5209 = vsel %vm322, %v5138, 0
        %v5211 = vsel %vm322, %v5140, 0
        %v5213 = vsel %vm322, %v5142, 0
        %v5215 = vsel %vm322, %v5144, 0
        %v5217 = vsel %vm322, %v5146, 0
        %v5219 = vsel %vm322, %v5148, 0
        %v5221 = vsel %vm322, %v5150, 0
        %v5223 = vsel %vm322, %v5152, 0
        %v5225 = vsel %vm322, %v5154, 0
        %v5227 = vsel %vm322, %v5156, 0
        %v5229 = vsel %vm322, %v5158, 0
        %v5231 = vsel %vm322, %v5160, 0
        %v5233 = vsel %vm322, %v5162, 0
        %v5235 = vsel %vm322, %v5164, 0
        %v5237 = vsel %vm322, %v5166, 0
        %v5239 = vsel %vm322, %v5168, 0
        %v5241 = vsel %vm322, %v5170, 0
        %v5243 = vsel %vm322, %v5172, 0
        %v5245 = vsel %vm322, %v5174, 0
        %v5247 = vsel %vm322, %v5176, 0
        %v5249 = vsel %vm322, %v5178, 0
        %v5251 = vsel %vm322, %v5180, 0
        %v5253 = vsel %vm322, %v5182, 0
        %v5255 = vsel %vm322, %v5184, 0
        %v5257 = vsel %vm322, %v5186, 0
        %v5259 = vsel %vm322, %v5188, 0
        %v5261 = vsel %vm322, %v5190, 0
        %v5263 = vsel %vm322, %v5192, 0
        %v5265 = vsel %vm322, %v5194, 0
        %v5267 = vsel %vm322, %v5196, 0
        %v5269 = vsel %vm322, %v5198, 0
        %v5271 = vsel %vm322, %v5200, 0
        %v5273 = vsel %vm322, %v5202, 0
        %v5275 = vsel %vm322, %v5204, 0
        %v5278 = vsel %vm431, %v5093, 0
        %5280 = vmatprep.subr.mxu0 0.0
        %5281 = vmatpush1.msra.mxu0 %v5278
        %5282 = vmatprep.subr.mxu0 0.0
        %5283 = vmatpush1.msra.mxu0 0.0
        %5284 = vmatprep.subr.mxu0 0.0
        %5285 = vmatpush1.msra.mxu0 0.0
        %5286 = vmatprep.subr.mxu0 0.0
        %5287 = vmatpush1.msra.mxu0 0.0
        %5288 = vmatprep.subr.mxu0 0.0
        %5289 = vmatpush1.msra.mxu0 0.0
        %5290 = vmatprep.subr.mxu0 0.0
        %5291 = vmatpush1.msra.mxu0 0.0
        %5292 = vmatprep.subr.mxu0 0.0
        %5293 = vmatpush1.msra.mxu0 0.0
        %5294 = vmatprep.subr.mxu0 0.0
        %5295 = vmatpush1.msra.mxu0 0.0
        %5296 = vmatprep.subr.mxu0 0.0
        %5297 = vmatpush1.msra.mxu0 0.0
        %5298 = vmatprep.subr.mxu0 0.0
        %5299 = vmatpush1.msra.mxu0 0.0
        %5300 = vmatprep.subr.mxu0 0.0
        %5301 = vmatpush1.msra.mxu0 0.0
        %5302 = vmatprep.subr.mxu0 0.0
        %5303 = vmatpush1.msra.mxu0 0.0
        %5304 = vmatprep.subr.mxu0 0.0
        %5305 = vmatpush1.msra.mxu0 0.0
        %5306 = vmatprep.subr.mxu0 0.0
        %5307 = vmatpush1.msra.mxu0 0.0
        %5308 = vmatprep.subr.mxu0 0.0
        %5309 = vmatpush1.msra.mxu0 0.0
        %5310 = vmatprep.subr.mxu0 0.0
        %5311 = vmatpush1.msra.mxu0 0.0
        %5312 = vmatprep.subr.mxu0 0.0
        %5313 = vmatpush1.msra.mxu0 0.0
        %5314 = vmatprep.subr.mxu0 0.0
        %5315 = vmatpush1.msra.mxu0 0.0
        %5316 = vmatprep.subr.mxu0 0.0
        %5317 = vmatpush1.msra.mxu0 0.0
        %5318 = vmatprep.subr.mxu0 0.0
        %5319 = vmatpush1.msra.mxu0 0.0
        %5320 = vmatprep.subr.mxu0 0.0
        %5321 = vmatpush1.msra.mxu0 0.0
        %5322 = vmatprep.subr.mxu0 0.0
        %5323 = vmatpush1.msra.mxu0 0.0
        %5324 = vmatprep.subr.mxu0 0.0
        %5325 = vmatpush1.msra.mxu0 0.0
        %5326 = vmatprep.subr.mxu0 0.0
        %5327 = vmatpush1.msra.mxu0 0.0
        %5328 = vmatprep.subr.mxu0 0.0
        %5329 = vmatpush1.msra.mxu0 0.0
        %5330 = vmatprep.subr.mxu0 0.0
        %5331 = vmatpush1.msra.mxu0 0.0
        %5332 = vmatprep.subr.mxu0 0.0
        %5333 = vmatpush1.msra.mxu0 0.0
        %5334 = vmatprep.subr.mxu0 0.0
        %5335 = vmatpush1.msra.mxu0 0.0
        %5336 = vmatprep.subr.mxu0 0.0
        %5337 = vmatpush1.msra.mxu0 0.0
        %5338 = vmatprep.subr.mxu0 0.0
        %5339 = vmatpush1.msra.mxu0 0.0
        %5340 = vmatprep.subr.mxu0 0.0
        %5341 = vmatpush1.msra.mxu0 0.0
        %5342 = vmatprep.subr.mxu0 0.0
        %5343 = vmatpush1.msra.mxu0 0.0
        %5344 = vmatprep.mubr.f32.mxu0 0.0
        %5345 = vmatmul.mubr.f32.gmra.mrb[0].mxu0 %v5205
        %v5346 = vpop.f32.mrb[0].mxu0
        %v5347 = vadd.f32 0.0, %v5346
        %v5348 = vpop.f32.mrb[0].mxu0
        %5349 = vmatprep.mubr.f32.mxu0 0.0
        %5350 = vmatmul.mubr.f32.gmra.mrb[0].mxu0 %v5207
        %v5351 = vpop.f32.mrb[0].mxu0
        %v5352 = vadd.f32 0.0, %v5351
        %v5353 = vpop.f32.mrb[0].mxu0
        %5354 = vmatprep.mubr.f32.mxu0 0.0
        %5355 = vmatmul.mubr.f32.gmra.mrb[0].mxu0 %v5209
        %v5356 = vpop.f32.mrb[0].mxu0
        %v5357 = vadd.f32 0.0, %v5356
        %v5358 = vpop.f32.mrb[0].mxu0
        %5359 = vmatprep.mubr.f32.mxu0 0.0
        %5360 = vmatmul.mubr.f32.gmra.mrb[0].mxu0 %v5211
        %v5361 = vpop.f32.mrb[0].mxu0
        %v5362 = vadd.f32 0.0, %v5361
        %v5363 = vpop.f32.mrb[0].mxu0
        %5364 = vmatprep.mubr.f32.mxu0 0.0
        %5365 = vmatmul.mubr.f32.gmra.mrb[0].mxu0 %v5213
        %v5366 = vpop.f32.mrb[0].mxu0
        %v5367 = vadd.f32 0.0, %v5366
        %v5368 = vpop.f32.mrb[0].mxu0
        %5369 = vmatprep.mubr.f32.mxu0 0.0
        %5370 = vmatmul.mubr.f32.gmra.mrb[0].mxu0 %v5215
        %v5371 = vpop.f32.mrb[0].mxu0
        %v5372 = vadd.f32 0.0, %v5371
        %v5373 = vpop.f32.mrb[0].mxu0
        %5374 = vmatprep.mubr.f32.mxu0 0.0
        %5375 = vmatmul.mubr.f32.gmra.mrb[0].mxu0 %v5217
        %v5376 = vpop.f32.mrb[0].mxu0
        %v5377 = vadd.f32 0.0, %v5376
        %v5378 = vpop.f32.mrb[0].mxu0
        %5379 = vmatprep.mubr.f32.mxu0 0.0
        %5380 = vmatmul.mubr.f32.gmra.mrb[0].mxu0 %v5219
        %v5381 = vpop.f32.mrb[0].mxu0
        %v5382 = vadd.f32 0.0, %v5381
        %v5383 = vpop.f32.mrb[0].mxu0
        %5384 = vmatprep.mubr.f32.mxu0 0.0
        %5385 = vmatmul.mubr.f32.gmra.mrb[0].mxu0 %v5221
        %v5386 = vpop.f32.mrb[0].mxu0
        %v5387 = vadd.f32 0.0, %v5386
        %v5388 = vpop.f32.mrb[0].mxu0
        %5389 = vmatprep.mubr.f32.mxu0 0.0
        %5390 = vmatmul.mubr.f32.gmra.mrb[0].mxu0 %v5223
        %v5391 = vpop.f32.mrb[0].mxu0
        %v5392 = vadd.f32 0.0, %v5391
        %v5393 = vpop.f32.mrb[0].mxu0
        %5394 = vmatprep.mubr.f32.mxu0 0.0
        %5395 = vmatmul.mubr.f32.gmra.mrb[0].mxu0 %v5225
        %v5396 = vpop.f32.mrb[0].mxu0
        %v5397 = vadd.f32 0.0, %v5396
        %v5398 = vpop.f32.mrb[0].mxu0
        %5399 = vmatprep.mubr.f32.mxu0 0.0
        %5400 = vmatmul.mubr.f32.gmra.mrb[0].mxu0 %v5227
        %v5401 = vpop.f32.mrb[0].mxu0
        %v5402 = vadd.f32 0.0, %v5401
        %v5403 = vpop.f32.mrb[0].mxu0
        %5404 = vmatprep.mubr.f32.mxu0 0.0
        %5405 = vmatmul.mubr.f32.gmra.mrb[0].mxu0 %v5229
        %v5406 = vpop.f32.mrb[0].mxu0
        %v5407 = vadd.f32 0.0, %v5406
        %v5408 = vpop.f32.mrb[0].mxu0
        %5409 = vmatprep.mubr.f32.mxu0 0.0
        %5410 = vmatmul.mubr.f32.gmra.mrb[0].mxu0 %v5231
        %v5411 = vpop.f32.mrb[0].mxu0
        %v5412 = vadd.f32 0.0, %v5411
        %v5413 = vpop.f32.mrb[0].mxu0
        %5414 = vmatprep.mubr.f32.mxu0 0.0
        %5415 = vmatmul.mubr.f32.gmra.mrb[0].mxu0 %v5233
        %v5416 = vpop.f32.mrb[0].mxu0
        %v5417 = vadd.f32 0.0, %v5416
        %v5418 = vpop.f32.mrb[0].mxu0
        %5419 = vmatprep.mubr.f32.mxu0 0.0
        %5420 = vmatmul.mubr.f32.gmra.mrb[0].mxu0 %v5235
        %v5421 = vpop.f32.mrb[0].mxu0
        %v5422 = vadd.f32 0.0, %v5421
        %v5423 = vpop.f32.mrb[0].mxu0
        %5424 = vmatprep.mubr.f32.mxu0 0.0
        %5425 = vmatmul.mubr.f32.gmra.mrb[0].mxu0 %v5237
        %v5426 = vpop.f32.mrb[0].mxu0
        %v5427 = vadd.f32 0.0, %v5426
        %v5428 = vpop.f32.mrb[0].mxu0
        %5429 = vmatprep.mubr.f32.mxu0 0.0
        %5430 = vmatmul.mubr.f32.gmra.mrb[0].mxu0 %v5239
        %v5431 = vpop.f32.mrb[0].mxu0
        %v5432 = vadd.f32 0.0, %v5431
        %v5433 = vpop.f32.mrb[0].mxu0
        %5434 = vmatprep.mubr.f32.mxu0 0.0
        %5435 = vmatmul.mubr.f32.gmra.mrb[0].mxu0 %v5241
        %v5436 = vpop.f32.mrb[0].mxu0
        %v5437 = vadd.f32 0.0, %v5436
        %v5438 = vpop.f32.mrb[0].mxu0
        %5439 = vmatprep.mubr.f32.mxu0 0.0
        %5440 = vmatmul.mubr.f32.gmra.mrb[0].mxu0 %v5243
        %v5441 = vpop.f32.mrb[0].mxu0
        %v5442 = vadd.f32 0.0, %v5441
        %v5443 = vpop.f32.mrb[0].mxu0
        %5444 = vmatprep.mubr.f32.mxu0 0.0
        %5445 = vmatmul.mubr.f32.gmra.mrb[0].mxu0 %v5245
        %v5446 = vpop.f32.mrb[0].mxu0
        %v5447 = vadd.f32 0.0, %v5446
        %v5448 = vpop.f32.mrb[0].mxu0
        %5449 = vmatprep.mubr.f32.mxu0 0.0
        %5450 = vmatmul.mubr.f32.gmra.mrb[0].mxu0 %v5247
        %v5451 = vpop.f32.mrb[0].mxu0
        %v5452 = vadd.f32 0.0, %v5451
        %v5453 = vpop.f32.mrb[0].mxu0
        %5454 = vmatprep.mubr.f32.mxu0 0.0
        %5455 = vmatmul.mubr.f32.gmra.mrb[0].mxu0 %v5249
        %v5456 = vpop.f32.mrb[0].mxu0
        %v5457 = vadd.f32 0.0, %v5456
        %v5458 = vpop.f32.mrb[0].mxu0
        %5459 = vmatprep.mubr.f32.mxu0 0.0
        %5460 = vmatmul.mubr.f32.gmra.mrb[0].mxu0 %v5251
        %v5461 = vpop.f32.mrb[0].mxu0
        %v5462 = vadd.f32 0.0, %v5461
        %v5463 = vpop.f32.mrb[0].mxu0
        %5464 = vmatprep.mubr.f32.mxu0 0.0
        %5465 = vmatmul.mubr.f32.gmra.mrb[0].mxu0 %v5253
        %v5466 = vpop.f32.mrb[0].mxu0
        %v5467 = vadd.f32 0.0, %v5466
        %v5468 = vpop.f32.mrb[0].mxu0
        %5469 = vmatprep.mubr.f32.mxu0 0.0
        %5470 = vmatmul.mubr.f32.gmra.mrb[0].mxu0 %v5255
        %v5471 = vpop.f32.mrb[0].mxu0
        %v5472 = vadd.f32 0.0, %v5471
        %v5473 = vpop.f32.mrb[0].mxu0
        %5474 = vmatprep.mubr.f32.mxu0 0.0
        %5475 = vmatmul.mubr.f32.gmra.mrb[0].mxu0 %v5257
        %v5476 = vpop.f32.mrb[0].mxu0
        %v5477 = vadd.f32 0.0, %v5476
        %v5478 = vpop.f32.mrb[0].mxu0
        %5479 = vmatprep.mubr.f32.mxu0 0.0
        %5480 = vmatmul.mubr.f32.gmra.mrb[0].mxu0 %v5259
        %v5481 = vpop.f32.mrb[0].mxu0
        %v5482 = vadd.f32 0.0, %v5481
        %v5483 = vpop.f32.mrb[0].mxu0
        %5484 = vmatprep.mubr.f32.mxu0 0.0
        %5485 = vmatmul.mubr.f32.gmra.mrb[0].mxu0 %v5261
        %v5486 = vpop.f32.mrb[0].mxu0
        %v5487 = vadd.f32 0.0, %v5486
        %v5488 = vpop.f32.mrb[0].mxu0
        %5489 = vmatprep.mubr.f32.mxu0 0.0
        %5490 = vmatmul.mubr.f32.gmra.mrb[0].mxu0 %v5263
        %v5491 = vpop.f32.mrb[0].mxu0
        %v5492 = vadd.f32 0.0, %v5491
        %v5493 = vpop.f32.mrb[0].mxu0
        %5494 = vmatprep.mubr.f32.mxu0 0.0
        %5495 = vmatmul.mubr.f32.gmra.mrb[0].mxu0 %v5265
        %v5496 = vpop.f32.mrb[0].mxu0
        %v5497 = vadd.f32 0.0, %v5496
        %v5498 = vpop.f32.mrb[0].mxu0
        %5499 = vmatprep.mubr.f32.mxu0 0.0
        %5500 = vmatmul.mubr.f32.gmra.mrb[0].mxu0 %v5267
        %v5501 = vpop.f32.mrb[0].mxu0
        %v5502 = vadd.f32 0.0, %v5501
        %v5503 = vpop.f32.mrb[0].mxu0
        %5504 = vmatprep.mubr.f32.mxu0 0.0
        %5505 = vmatmul.mubr.f32.gmra.mrb[0].mxu0 %v5269
        %v5506 = vpop.f32.mrb[0].mxu0
        %v5507 = vadd.f32 0.0, %v5506
        %v5508 = vpop.f32.mrb[0].mxu0
        %5509 = vmatprep.mubr.f32.mxu0 0.0
        %5510 = vmatmul.mubr.f32.gmra.mrb[0].mxu0 %v5271
        %v5511 = vpop.f32.mrb[0].mxu0
        %v5512 = vadd.f32 0.0, %v5511
        %v5513 = vpop.f32.mrb[0].mxu0
        %5514 = vmatprep.mubr.f32.mxu0 0.0
        %5515 = vmatmul.mubr.f32.gmra.mrb[0].mxu0 %v5273
        %v5516 = vpop.f32.mrb[0].mxu0
        %v5517 = vadd.f32 0.0, %v5516
        %v5518 = vpop.f32.mrb[0].mxu0
        %5519 = vmatprep.mubr.f32.mxu0 0.0
        %5520 = vmatmul.mubr.f32.gmra.mrb[0].mxu0 %v5275
        %v5521 = vpop.f32.mrb[0].mxu0
        %v5522 = vadd.f32 0.0, %v5521
        %v5523 = vpop.f32.mrb[0].mxu0
        %5524 = vdwg.mxu0
        %v5525 = vld [vmem:[#allocation2] sm:$0xff]
        %v5526 = vld [vmem:[#allocation2 + $0x8] sm:$0xff]
        %v5527 = vld [vmem:[#allocation2 + $0x10] sm:$0xff]
        %v5528 = vld [vmem:[#allocation2 + $0x18] sm:$0xff]
        %v5529 = vld [vmem:[#allocation2 + $0x20] sm:$0xff]
        %v5530 = vld [vmem:[#allocation2 + $0x28] sm:$0xff]
        %v5531 = vld [vmem:[#allocation2 + $0x30] sm:$0xff]
        %v5532 = vld [vmem:[#allocation2 + $0x38] sm:$0xff]
        %v5533 = vld [vmem:[#allocation2 + $0x40] sm:$0xff]
        %v5534 = vld [vmem:[#allocation2 + $0x48] sm:$0xff]
        %v5535 = vld [vmem:[#allocation2 + $0x50] sm:$0xff]
        %v5536 = vld [vmem:[#allocation2 + $0x58] sm:$0xff]
        %v5537 = vld [vmem:[#allocation2 + $0x60] sm:$0xff]
        %v5538 = vld [vmem:[#allocation2 + $0x68] sm:$0xff]
        %v5539 = vld [vmem:[#allocation2 + $0x70] sm:$0xff]
        %v5540 = vld [vmem:[#allocation2 + $0x78] sm:$0xff]
        %v5541 = vld [vmem:[#allocation2 + $0x80] sm:$0xff]
        %v5542 = vld [vmem:[#allocation2 + $0x88] sm:$0xff]
        %v5543 = vld [vmem:[#allocation2 + $0x90] sm:$0xff]
        %v5544 = vld [vmem:[#allocation2 + $0x98] sm:$0xff]
        %v5545 = vld [vmem:[#allocation2 + $0xa0] sm:$0xff]
        %v5546 = vld [vmem:[#allocation2 + $0xa8] sm:$0xff]
        %v5547 = vld [vmem:[#allocation2 + $0xb0] sm:$0xff]
        %v5548 = vld [vmem:[#allocation2 + $0xb8] sm:$0xff]
        %v5549 = vld [vmem:[#allocation2 + $0xc0] sm:$0xff]
        %v5550 = vld [vmem:[#allocation2 + $0xc8] sm:$0xff]
        %v5551 = vld [vmem:[#allocation2 + $0xd0] sm:$0xff]
        %v5552 = vld [vmem:[#allocation2 + $0xd8] sm:$0xff]
        %v5553 = vld [vmem:[#allocation2 + $0xe0] sm:$0xff]
        %v5554 = vld [vmem:[#allocation2 + $0xe8] sm:$0xff]
        %v5555 = vld [vmem:[#allocation2 + $0xf0] sm:$0xff]
        %v5556 = vld [vmem:[#allocation2 + $0xf8] sm:$0xff]
        %v5557 = vld [vmem:[#allocation2 + $0x100] sm:$0xff]
        %v5558 = vld [vmem:[#allocation2 + $0x108] sm:$0xff]
        %v5559 = vld [vmem:[#allocation2 + $0x110] sm:$0xff]
        %v5560 = vld [vmem:[#allocation2 + $0x118] sm:$0xff]
        %v5561 = vadd.f32 %v5525, %v5347
        %v5562 = vadd.f32 %v5526, %v5352
        %v5563 = vadd.f32 %v5527, %v5357
        %v5564 = vadd.f32 %v5528, %v5362
        %v5565 = vadd.f32 %v5529, %v5367
        %v5566 = vadd.f32 %v5530, %v5372
        %v5567 = vadd.f32 %v5531, %v5377
        %v5568 = vadd.f32 %v5532, %v5382
        %v5569 = vadd.f32 %v5533, %v5387
        %v5570 = vadd.f32 %v5534, %v5392
        %v5571 = vadd.f32 %v5535, %v5397
        %v5572 = vadd.f32 %v5536, %v5402
        %v5573 = vadd.f32 %v5537, %v5407
        %v5574 = vadd.f32 %v5538, %v5412
        %v5575 = vadd.f32 %v5539, %v5417
        %v5576 = vadd.f32 %v5540, %v5422
        %v5577 = vadd.f32 %v5541, %v5427
        %v5578 = vadd.f32 %v5542, %v5432
        %v5579 = vadd.f32 %v5543, %v5437
        %v5580 = vadd.f32 %v5544, %v5442
        %v5581 = vadd.f32 %v5545, %v5447
        %v5582 = vadd.f32 %v5546, %v5452
        %v5583 = vadd.f32 %v5547, %v5457
        %v5584 = vadd.f32 %v5548, %v5462
        %v5585 = vadd.f32 %v5549, %v5467
        %v5586 = vadd.f32 %v5550, %v5472
        %v5587 = vadd.f32 %v5551, %v5477
        %v5588 = vadd.f32 %v5552, %v5482
        %v5589 = vadd.f32 %v5553, %v5487
        %v5590 = vadd.f32 %v5554, %v5492
        %v5591 = vadd.f32 %v5555, %v5497
        %v5592 = vadd.f32 %v5556, %v5502
        %v5593 = vadd.f32 %v5557, %v5507
        %v5594 = vadd.f32 %v5558, %v5512
        %v5595 = vadd.f32 %v5559, %v5517
        %v5596 = vadd.f32 %v5560, %v5522
        %5597 = vst [vmem:[#allocation2] sm:$0xff] %v5561
        %5598 = vst [vmem:[#allocation2 + $0x8] sm:$0xff] %v5562
        %5599 = vst [vmem:[#allocation2 + $0x10] sm:$0xff] %v5563
        %5600 = vst [vmem:[#allocation2 + $0x18] sm:$0xff] %v5564
        %5601 = vst [vmem:[#allocation2 + $0x20] sm:$0xff] %v5565
        %5602 = vst [vmem:[#allocation2 + $0x28] sm:$0xff] %v5566
        %5603 = vst [vmem:[#allocation2 + $0x30] sm:$0xff] %v5567
        %5604 = vst [vmem:[#allocation2 + $0x38] sm:$0xff] %v5568
        %5605 = vst [vmem:[#allocation2 + $0x40] sm:$0xff] %v5569
        %5606 = vst [vmem:[#allocation2 + $0x48] sm:$0xff] %v5570
        %5607 = vst [vmem:[#allocation2 + $0x50] sm:$0xff] %v5571
        %5608 = vst [vmem:[#allocation2 + $0x58] sm:$0xff] %v5572
        %5609 = vst [vmem:[#allocation2 + $0x60] sm:$0xff] %v5573
        %5610 = vst [vmem:[#allocation2 + $0x68] sm:$0xff] %v5574
        %5611 = vst [vmem:[#allocation2 + $0x70] sm:$0xff] %v5575
        %5612 = vst [vmem:[#allocation2 + $0x78] sm:$0xff] %v5576
        %5613 = vst [vmem:[#allocation2 + $0x80] sm:$0xff] %v5577
        %5614 = vst [vmem:[#allocation2 + $0x88] sm:$0xff] %v5578
        %5615 = vst [vmem:[#allocation2 + $0x90] sm:$0xff] %v5579
        %5616 = vst [vmem:[#allocation2 + $0x98] sm:$0xff] %v5580
        %5617 = vst [vmem:[#allocation2 + $0xa0] sm:$0xff] %v5581
        %5618 = vst [vmem:[#allocation2 + $0xa8] sm:$0xff] %v5582
        %5619 = vst [vmem:[#allocation2 + $0xb0] sm:$0xff] %v5583
        %5620 = vst [vmem:[#allocation2 + $0xb8] sm:$0xff] %v5584
        %5621 = vst [vmem:[#allocation2 + $0xc0] sm:$0xff] %v5585
        %5622 = vst [vmem:[#allocation2 + $0xc8] sm:$0xff] %v5586
        %5623 = vst [vmem:[#allocation2 + $0xd0] sm:$0xff] %v5587
        %5624 = vst [vmem:[#allocation2 + $0xd8] sm:$0xff] %v5588
        %5625 = vst [vmem:[#allocation2 + $0xe0] sm:$0xff] %v5589
        %5626 = vst [vmem:[#allocation2 + $0xe8] sm:$0xff] %v5590
        %5627 = vst [vmem:[#allocation2 + $0xf0] sm:$0xff] %v5591
        %5628 = vst [vmem:[#allocation2 + $0xf8] sm:$0xff] %v5592
        %5629 = vst [vmem:[#allocation2 + $0x100] sm:$0xff] %v5593
        %5630 = vst [vmem:[#allocation2 + $0x108] sm:$0xff] %v5594
        %5631 = vst [vmem:[#allocation2 + $0x110] sm:$0xff] %v5595
        %5632 = vst [vmem:[#allocation2 + $0x118] sm:$0xff] %v5596
        %v5633 = vld [vmem:[#allocation2] sm:$0xff]
        %v5634 = vld [vmem:[#allocation2 + $0x8] sm:$0xff]
        %v5635 = vld [vmem:[#allocation2 + $0x10] sm:$0xff]
        %v5636 = vld [vmem:[#allocation2 + $0x18] sm:$0xff]
        %v5637 = vld [vmem:[#allocation2 + $0x20] sm:$0xff]
        %v5638 = vld [vmem:[#allocation2 + $0x28] sm:$0xff]
        %v5639 = vld [vmem:[#allocation2 + $0x30] sm:$0xff]
        %v5640 = vld [vmem:[#allocation2 + $0x38] sm:$0xff]
        %v5641 = vld [vmem:[#allocation2 + $0x40] sm:$0xff]
        %v5642 = vld [vmem:[#allocation2 + $0x48] sm:$0xff]
        %v5643 = vld [vmem:[#allocation2 + $0x50] sm:$0xff]
        %v5644 = vld [vmem:[#allocation2 + $0x58] sm:$0xff]
        %v5645 = vld [vmem:[#allocation2 + $0x60] sm:$0xff]
        %v5646 = vld [vmem:[#allocation2 + $0x68] sm:$0xff]
        %v5647 = vld [vmem:[#allocation2 + $0x70] sm:$0xff]
        %v5648 = vld [vmem:[#allocation2 + $0x78] sm:$0xff]
        %v5649 = vld [vmem:[#allocation2 + $0x80] sm:$0xff]
        %v5650 = vld [vmem:[#allocation2 + $0x88] sm:$0xff]
        %v5651 = vld [vmem:[#allocation2 + $0x90] sm:$0xff]
        %v5652 = vld [vmem:[#allocation2 + $0x98] sm:$0xff]
        %v5653 = vld [vmem:[#allocation2 + $0xa0] sm:$0xff]
        %v5654 = vld [vmem:[#allocation2 + $0xa8] sm:$0xff]
        %v5655 = vld [vmem:[#allocation2 + $0xb0] sm:$0xff]
        %v5656 = vld [vmem:[#allocation2 + $0xb8] sm:$0xff]
        %v5657 = vld [vmem:[#allocation2 + $0xc0] sm:$0xff]
        %v5658 = vld [vmem:[#allocation2 + $0xc8] sm:$0xff]
        %v5659 = vld [vmem:[#allocation2 + $0xd0] sm:$0xff]
        %v5660 = vld [vmem:[#allocation2 + $0xd8] sm:$0xff]
        %v5661 = vld [vmem:[#allocation2 + $0xe0] sm:$0xff]
        %v5662 = vld [vmem:[#allocation2 + $0xe8] sm:$0xff]
        %v5663 = vld [vmem:[#allocation2 + $0xf0] sm:$0xff]
        %v5664 = vld [vmem:[#allocation2 + $0xf8] sm:$0xff]
        %v5665 = vld [vmem:[#allocation2 + $0x100] sm:$0xff]
        %v5666 = vld [vmem:[#allocation2 + $0x108] sm:$0xff]
        %v5667 = vld [vmem:[#allocation2 + $0x110] sm:$0xff]
        %v5668 = vld [vmem:[#allocation2 + $0x118] sm:$0xff]
        %v5669 = vld [vmem:[%s2] sm:$0x1]
        %v5671 = vlaneseq
        %v5672 = vshrl.u32 %v5671, 7
        %v5673 = vsub.s32 0, %v5672
        %v5674 = vrot.slane %v5669, %v5673
        %v5676 = vadd.f32 %v5633, %v5674
        %v5677 = vadd.f32 %v5634, %v5674
        %v5678 = vadd.f32 %v5635, %v5674
        %v5679 = vadd.f32 %v5636, %v5674
        %v5680 = vadd.f32 %v5637, %v5674
        %v5681 = vadd.f32 %v5638, %v5674
        %v5682 = vadd.f32 %v5639, %v5674
        %v5683 = vadd.f32 %v5640, %v5674
        %v5684 = vadd.f32 %v5641, %v5674
        %v5685 = vadd.f32 %v5642, %v5674
        %v5686 = vadd.f32 %v5643, %v5674
        %v5687 = vadd.f32 %v5644, %v5674
        %v5688 = vadd.f32 %v5645, %v5674
        %v5689 = vadd.f32 %v5646, %v5674
        %v5690 = vadd.f32 %v5647, %v5674
        %v5691 = vadd.f32 %v5648, %v5674
        %v5692 = vadd.f32 %v5649, %v5674
        %v5693 = vadd.f32 %v5650, %v5674
        %v5694 = vadd.f32 %v5651, %v5674
        %v5695 = vadd.f32 %v5652, %v5674
        %v5696 = vadd.f32 %v5653, %v5674
        %v5697 = vadd.f32 %v5654, %v5674
        %v5698 = vadd.f32 %v5655, %v5674
        %v5699 = vadd.f32 %v5656, %v5674
        %v5700 = vadd.f32 %v5657, %v5674
        %v5701 = vadd.f32 %v5658, %v5674
        %v5702 = vadd.f32 %v5659, %v5674
        %v5703 = vadd.f32 %v5660, %v5674
        %v5704 = vadd.f32 %v5661, %v5674
        %v5705 = vadd.f32 %v5662, %v5674
        %v5706 = vadd.f32 %v5663, %v5674
        %v5707 = vadd.f32 %v5664, %v5674
        %v5708 = vadd.f32 %v5665, %v5674
        %v5709 = vadd.f32 %v5666, %v5674
        %v5710 = vadd.f32 %v5667, %v5674
        %v5711 = vadd.f32 %v5668, %v5674
        %v5712 = vmax.f32 %v5676, 0.0
        %v5713 = vmax.f32 %v5677, 0.0
        %v5714 = vmax.f32 %v5678, 0.0
        %v5715 = vmax.f32 %v5679, 0.0
        %v5716 = vmax.f32 %v5680, 0.0
        %v5717 = vmax.f32 %v5681, 0.0
        %v5718 = vmax.f32 %v5682, 0.0
        %v5719 = vmax.f32 %v5683, 0.0
        %v5720 = vmax.f32 %v5684, 0.0
        %v5721 = vmax.f32 %v5685, 0.0
        %v5722 = vmax.f32 %v5686, 0.0
        %v5723 = vmax.f32 %v5687, 0.0
        %v5724 = vmax.f32 %v5688, 0.0
        %v5725 = vmax.f32 %v5689, 0.0
        %v5726 = vmax.f32 %v5690, 0.0
        %v5727 = vmax.f32 %v5691, 0.0
        %v5728 = vmax.f32 %v5692, 0.0
        %v5729 = vmax.f32 %v5693, 0.0
        %v5730 = vmax.f32 %v5694, 0.0
        %v5731 = vmax.f32 %v5695, 0.0
        %v5732 = vmax.f32 %v5696, 0.0
        %v5733 = vmax.f32 %v5697, 0.0
        %v5734 = vmax.f32 %v5698, 0.0
        %v5735 = vmax.f32 %v5699, 0.0
        %v5736 = vmax.f32 %v5700, 0.0
        %v5737 = vmax.f32 %v5701, 0.0
        %v5738 = vmax.f32 %v5702, 0.0
        %v5739 = vmax.f32 %v5703, 0.0
        %v5740 = vmax.f32 %v5704, 0.0
        %v5741 = vmax.f32 %v5705, 0.0
        %v5742 = vmax.f32 %v5706, 0.0
        %v5743 = vmax.f32 %v5707, 0.0
        %v5744 = vmax.f32 %v5708, 0.0
        %v5745 = vmax.f32 %v5709, 0.0
        %v5746 = vmax.f32 %v5710, 0.0
        %v5747 = vmax.f32 %v5711, 0.0
        %v5748 = vld [vmem:[%s3] sm:$0x7]
        %v5750 = vlaneseq
        %v5751 = vshrl.u32 %v5750, 7
        %v5752 = vsub.s32 0, %v5751
        %v5753 = vrot.slane %v5748, %v5752
        %v5754 = vlaneseq
        %v5755 = vshrl.u32 %v5754, 7
        %v5756 = vsub.s32 1, %v5755
        %v5757 = vrot.slane %v5748, %v5756
        %v5758 = vlaneseq
        %v5759 = vshrl.u32 %v5758, 7
        %v5760 = vsub.s32 2, %v5759
        %v5761 = vrot.slane %v5748, %v5760
        %vm5764 = vcmask 261120
        %v5765 = vsel %vm5764, %v5761, 0
        %5767 = vmatprep.subr.mxu0 0.0
        %5768 = vmatpush1.msra.mxu0 %v5712
        %5769 = vmatprep.subr.mxu0 0.0
        %5770 = vmatpush1.msra.mxu0 %v5713
        %5771 = vmatprep.subr.mxu0 0.0
        %5772 = vmatpush1.msra.mxu0 %v5714
        %5773 = vmatprep.subr.mxu0 0.0
        %5774 = vmatpush1.msra.mxu0 %v5715
        %5775 = vmatprep.subr.mxu0 0.0
        %5776 = vmatpush1.msra.mxu0 %v5716
        %5777 = vmatprep.subr.mxu0 0.0
        %5778 = vmatpush1.msra.mxu0 %v5717
        %5779 = vmatprep.subr.mxu0 0.0
        %5780 = vmatpush1.msra.mxu0 %v5718
        %5781 = vmatprep.subr.mxu0 0.0
        %5782 = vmatpush1.msra.mxu0 %v5719
        %5783 = vmatprep.subr.mxu0 0.0
        %5784 = vmatpush1.msra.mxu0 %v5720
        %5785 = vmatprep.subr.mxu0 0.0
        %5786 = vmatpush1.msra.mxu0 %v5721
        %5787 = vmatprep.subr.mxu0 0.0
        %5788 = vmatpush1.msra.mxu0 %v5722
        %5789 = vmatprep.subr.mxu0 0.0
        %5790 = vmatpush1.msra.mxu0 %v5723
        %5791 = vmatprep.subr.mxu0 0.0
        %5792 = vmatpush1.msra.mxu0 %v5724
        %5793 = vmatprep.subr.mxu0 0.0
        %5794 = vmatpush1.msra.mxu0 %v5725
        %5795 = vmatprep.subr.mxu0 0.0
        %5796 = vmatpush1.msra.mxu0 %v5726
        %5797 = vmatprep.subr.mxu0 0.0
        %5798 = vmatpush1.msra.mxu0 %v5727
        %5799 = vmatprep.subr.mxu0 0.0
        %5800 = vmatpush1.msra.mxu0 %v5728
        %5801 = vmatprep.subr.mxu0 0.0
        %5802 = vmatpush1.msra.mxu0 %v5729
        %5803 = vmatprep.subr.mxu0 0.0
        %5804 = vmatpush1.msra.mxu0 %v5730
        %5805 = vmatprep.subr.mxu0 0.0
        %5806 = vmatpush1.msra.mxu0 %v5731
        %5807 = vmatprep.subr.mxu0 0.0
        %5808 = vmatpush1.msra.mxu0 %v5732
        %5809 = vmatprep.subr.mxu0 0.0
        %5810 = vmatpush1.msra.mxu0 %v5733
        %5811 = vmatprep.subr.mxu0 0.0
        %5812 = vmatpush1.msra.mxu0 %v5734
        %5813 = vmatprep.subr.mxu0 0.0
        %5814 = vmatpush1.msra.mxu0 %v5735
        %5815 = vmatprep.subr.mxu0 0.0
        %5816 = vmatpush1.msra.mxu0 %v5736
        %5817 = vmatprep.subr.mxu0 0.0
        %5818 = vmatpush1.msra.mxu0 %v5737
        %5819 = vmatprep.subr.mxu0 0.0
        %5820 = vmatpush1.msra.mxu0 %v5738
        %5821 = vmatprep.subr.mxu0 0.0
        %5822 = vmatpush1.msra.mxu0 %v5739
        %5823 = vmatprep.subr.mxu0 0.0
        %5824 = vmatpush1.msra.mxu0 %v5740
        %5825 = vmatprep.subr.mxu0 0.0
        %5826 = vmatpush1.msra.mxu0 %v5741
        %5827 = vmatprep.subr.mxu0 0.0
        %5828 = vmatpush1.msra.mxu0 %v5742
        %5829 = vmatprep.subr.mxu0 0.0
        %5830 = vmatpush1.msra.mxu0 %v5743
        %5831 = vmatprep.mubr.f32.mxu0 %v5757
        %5832 = vmatmul.mubr.f32.gmra.mrb[0].mxu0 %v5753
        %v5833 = vpop.f32.mrb[0].mxu0
        %v5834 = vadd.f32 0.0, %v5833
        %v5835 = vpop.f32.mrb[0].mxu0
        %5836 = vdwg.mxu0
        %5837 = vmatprep.subr.mxu0 0.0
        %5838 = vmatpush1.msra.mxu0 %v5744
        %5839 = vmatprep.subr.mxu0 0.0
        %5840 = vmatpush1.msra.mxu0 %v5745
        %5841 = vmatprep.subr.mxu0 0.0
        %5842 = vmatpush1.msra.mxu0 %v5746
        %5843 = vmatprep.subr.mxu0 0.0
        %5844 = vmatpush1.msra.mxu0 %v5747
        %5845 = vmatprep.subr.mxu0 0.0
        %5846 = vmatpush1.msra.mxu0 0.0
        %5847 = vmatprep.subr.mxu0 0.0
        %5848 = vmatpush1.msra.mxu0 0.0
        %5849 = vmatprep.subr.mxu0 0.0
        %5850 = vmatpush1.msra.mxu0 0.0
        %5851 = vmatprep.subr.mxu0 0.0
        %5852 = vmatpush1.msra.mxu0 0.0
        %5853 = vmatprep.subr.mxu0 0.0
        %5854 = vmatpush1.msra.mxu0 0.0
        %5855 = vmatprep.subr.mxu0 0.0
        %5856 = vmatpush1.msra.mxu0 0.0
        %5857 = vmatprep.subr.mxu0 0.0
        %5858 = vmatpush1.msra.mxu0 0.0
        %5859 = vmatprep.subr.mxu0 0.0
        %5860 = vmatpush1.msra.mxu0 0.0
        %5861 = vmatprep.subr.mxu0 0.0
        %5862 = vmatpush1.msra.mxu0 0.0
        %5863 = vmatprep.subr.mxu0 0.0
        %5864 = vmatpush1.msra.mxu0 0.0
        %5865 = vmatprep.subr.mxu0 0.0
        %5866 = vmatpush1.msra.mxu0 0.0
        %5867 = vmatprep.subr.mxu0 0.0
        %5868 = vmatpush1.msra.mxu0 0.0
        %5869 = vmatprep.subr.mxu0 0.0
        %5870 = vmatpush1.msra.mxu0 0.0
        %5871 = vmatprep.subr.mxu0 0.0
        %5872 = vmatpush1.msra.mxu0 0.0
        %5873 = vmatprep.subr.mxu0 0.0
        %5874 = vmatpush1.msra.mxu0 0.0
        %5875 = vmatprep.subr.mxu0 0.0
        %5876 = vmatpush1.msra.mxu0 0.0
        %5877 = vmatprep.subr.mxu0 0.0
        %5878 = vmatpush1.msra.mxu0 0.0
        %5879 = vmatprep.subr.mxu0 0.0
        %5880 = vmatpush1.msra.mxu0 0.0
        %5881 = vmatprep.subr.mxu0 0.0
        %5882 = vmatpush1.msra.mxu0 0.0
        %5883 = vmatprep.subr.mxu0 0.0
        %5884 = vmatpush1.msra.mxu0 0.0
        %5885 = vmatprep.subr.mxu0 0.0
        %5886 = vmatpush1.msra.mxu0 0.0
        %5887 = vmatprep.subr.mxu0 0.0
        %5888 = vmatpush1.msra.mxu0 0.0
        %5889 = vmatprep.subr.mxu0 0.0
        %5890 = vmatpush1.msra.mxu0 0.0
        %5891 = vmatprep.subr.mxu0 0.0
        %5892 = vmatpush1.msra.mxu0 0.0
        %5893 = vmatprep.subr.mxu0 0.0
        %5894 = vmatpush1.msra.mxu0 0.0
        %5895 = vmatprep.subr.mxu0 0.0
        %5896 = vmatpush1.msra.mxu0 0.0
        %5897 = vmatprep.subr.mxu0 0.0
        %5898 = vmatpush1.msra.mxu0 0.0
        %5899 = vmatprep.subr.mxu0 0.0
        %5900 = vmatpush1.msra.mxu0 0.0
        %5901 = vmatprep.mubr.f32.mxu0 0.0
        %5902 = vmatmul.mubr.f32.gmra.mrb[0].mxu0 %v5765
        %v5903 = vpop.f32.mrb[0].mxu0
        %v5904 = vadd.f32 %v5834, %v5903
        %v5905 = vpop.f32.mrb[0].mxu0
        %5906 = vdwg.mxu0
        %v5907 = vld [vmem:[%s4] sm:$0xff]
        %v5908 = vld [vmem:[%s4 + $0x8] sm:$0xff]
        %v5909 = vld [vmem:[%s4 + $0x10] sm:$0xff]
        %v5910 = vld [vmem:[%s4 + $0x18] sm:$0xff]
        %v5911 = vld [vmem:[%s4 + $0x20] sm:$0xff]
        %v5912 = vld [vmem:[%s4 + $0x28] sm:$0xff]
        %v5913 = vld [vmem:[%s4 + $0x30] sm:$0xff]
        %v5914 = vld [vmem:[%s4 + $0x38] sm:$0xff]
        %v5915 = vld [vmem:[%s4 + $0x40] sm:$0xff]
        %v5916 = vld [vmem:[%s4 + $0x48] sm:$0xff]
        %v5917 = vld [vmem:[%s4 + $0x50] sm:$0xff]
        %v5918 = vld [vmem:[%s4 + $0x58] sm:$0xff]
        %v5919 = vld [vmem:[%s4 + $0x60] sm:$0xff]
        %v5920 = vld [vmem:[%s4 + $0x68] sm:$0xff]
        %v5921 = vld [vmem:[%s4 + $0x70] sm:$0xff]
        %v5922 = vld [vmem:[%s4 + $0x78] sm:$0xff]
        %v5923 = vld [vmem:[%s5] sm:$0x1]
        %5924 = vmatprep.subr.mxu0 0.0
        %5925 = vmatpush1.msra.mxu0 %v5907
        %5926 = vmatprep.subr.mxu0 0.0
        %5927 = vmatpush1.msra.mxu0 %v5908
        %5928 = vmatprep.subr.mxu0 0.0
        %5929 = vmatpush1.msra.mxu0 %v5909
        %5930 = vmatprep.subr.mxu0 0.0
        %5931 = vmatpush1.msra.mxu0 %v5910
        %5932 = vmatprep.subr.mxu0 0.0
        %5933 = vmatpush1.msra.mxu0 %v5911
        %5934 = vmatprep.subr.mxu0 0.0
        %5935 = vmatpush1.msra.mxu0 %v5912
        %5936 = vmatprep.subr.mxu0 0.0
        %5937 = vmatpush1.msra.mxu0 %v5913
        %5938 = vmatprep.subr.mxu0 0.0
        %5939 = vmatpush1.msra.mxu0 %v5914
        %5940 = vmatprep.subr.mxu0 0.0
        %5941 = vmatpush1.msra.mxu0 %v5915
        %5942 = vmatprep.subr.mxu0 0.0
        %5943 = vmatpush1.msra.mxu0 %v5916
        %5944 = vmatprep.subr.mxu0 0.0
        %5945 = vmatpush1.msra.mxu0 %v5917
        %5946 = vmatprep.subr.mxu0 0.0
        %5947 = vmatpush1.msra.mxu0 %v5918
        %5948 = vmatprep.subr.mxu0 0.0
        %5949 = vmatpush1.msra.mxu0 %v5919
        %5950 = vmatprep.subr.mxu0 0.0
        %5951 = vmatpush1.msra.mxu0 %v5920
        %5952 = vmatprep.subr.mxu0 0.0
        %5953 = vmatpush1.msra.mxu0 %v5921
        %5954 = vmatprep.subr.mxu0 0.0
        %5955 = vmatpush1.msra.mxu0 %v5922
        %5956 = vmatprep.subr.mxu0 0.0
        %5957 = vmatpush1.msra.mxu0 0.0
        %5958 = vmatprep.subr.mxu0 0.0
        %5959 = vmatpush1.msra.mxu0 0.0
        %5960 = vmatprep.subr.mxu0 0.0
        %5961 = vmatpush1.msra.mxu0 0.0
        %5962 = vmatprep.subr.mxu0 0.0
        %5963 = vmatpush1.msra.mxu0 0.0
        %5964 = vmatprep.subr.mxu0 0.0
        %5965 = vmatpush1.msra.mxu0 0.0
        %5966 = vmatprep.subr.mxu0 0.0
        %5967 = vmatpush1.msra.mxu0 0.0
        %5968 = vmatprep.subr.mxu0 0.0
        %5969 = vmatpush1.msra.mxu0 0.0
        %5970 = vmatprep.subr.mxu0 0.0
        %5971 = vmatpush1.msra.mxu0 0.0
        %5972 = vmatprep.subr.mxu0 0.0
        %5973 = vmatpush1.msra.mxu0 0.0
        %5974 = vmatprep.subr.mxu0 0.0
        %5975 = vmatpush1.msra.mxu0 0.0
        %5976 = vmatprep.subr.mxu0 0.0
        %5977 = vmatpush1.msra.mxu0 0.0
        %5978 = vmatprep.subr.mxu0 0.0
        %5979 = vmatpush1.msra.mxu0 0.0
        %5980 = vmatprep.subr.mxu0 0.0
        %5981 = vmatpush1.msra.mxu0 0.0
        %5982 = vmatprep.subr.mxu0 0.0
        %5983 = vmatpush1.msra.mxu0 0.0
        %5984 = vmatprep.subr.mxu0 0.0
        %5985 = vmatpush1.msra.mxu0 0.0
        %5986 = vmatprep.subr.mxu0 0.0
        %5987 = vmatpush1.msra.mxu0 0.0
        %5988 = vmatprep.mubr.f32.mxu0 0.0
        %5989 = vmatmul.mubr.f32.gmra.mrb[0].mxu0 %v5904
        %v5990 = vpop.f32.mrb[0].mxu0
        %v5991 = vadd.f32 %v5923, %v5990
        %v5992 = vpop.f32.mrb[0].mxu0
        %5993 = vdwg.mxu0
        %5994 = vst [vmem:[%s243] sm:$0x1] %v5991
        %s5995 = sand.u32 %s159, 1
        %s5996 = scalar_lea.sflag [#allocation4], %s5995
        %s5997 = sand.u32 %s159, 1
        %s5998 = scalar_lea.vmem [#allocation3], %s5997
        // Predicated region
        $region45: #{bic_model_forward.1} parent=43 // pred_check
          %p5999 = pneg %p169
        $region46: #{bic_model_forward.1} parent=43 // pred_check_branch
          %6001 = sbr.rel (%p5999) target = $region48
        $region47: #{bic_model_forward.1} parent=43 // pred_region
          %s6003 = ssub.s32 16, 16
          %6004 = vsyncadd %s5996, %s6003
          %s6005 = smul.addr %s20, 16
          %s6006 = scalar_lea.hbm %s6, %s6005
          %s6008 = sshll.u32 %s5998, 4
          %s6009 = int_to_ptr.vmem [resolvable:$true] %s6008
          %6011 = dma.vmem_to_hbm [thread:$0]  %s6009, 16, %s6006, %s5996
        $region48: #{bic_model_forward.1} parent=43 // pred_fallthru
          _
      $region44: #{bic_model_forward.1} parent=5 // pred_fallthru
        _
      %p6012 = scmp.le.s32.totalorder 2, %s15
      // Predicated region
      $region49: #{bic_model_forward.1} parent=5 // pred_check
        %p6013 = pneg %p6012
      $region50: #{bic_model_forward.1} parent=5 // pred_check_branch
        %6015 = sbr.rel (%p6013) target = $region52
      $region51: #{bic_model_forward.1} parent=5 // pred_region
        %s6016 = ssub.s32 %s15, 2
        // Predicated region
        $region53: #{bic_model_forward.1} parent=51 // pred_check
          %p6017 = pneg %p175
        $region54: #{bic_model_forward.1} parent=51 // pred_check_branch
          %6019 = sbr.rel (%p6017) target = $region56
        $region55: #{bic_model_forward.1} parent=51 // pred_region
          %s6020 = sand.u32 %s160, 1
          %s6021 = scalar_lea.sflag [#allocation4], %s6020
          %s6022 = sand.u32 %s160, 1
          %s6023 = scalar_lea.vmem [#allocation3], %s6022
          %6024 = dma.done %s6021, 16
        $region56: #{bic_model_forward.1} parent=51 // pred_fallthru
          _
      $region52: #{bic_model_forward.1} parent=5 // pred_fallthru
        _
    $region6: #{bic_model_forward.1} parent=1 // loop_footer
      %s19 = sadd.s32 1, %s15
    $region7: #{bic_model_forward.1} parent=1 // loop_footer_branch
      %14 = sbr.rel target = $region3
    $region8: #{bic_model_forward.1} parent=1 // loop_exit
      _
    %6025 = vsyncpa [#allocation4], 1
    %s6026 = scalar_lea.sflag [#allocation4], 1
    %6027 = vsyncpa %s6026, 1

</llo_original>
